<compile_context>
chip_gen: v7x
topology: tpu7x:2x2x1
jax: 0.10.0
libtpu: 0.0.40
codegen_flags: <defaults>
</compile_context>

<pallas_src>
import functools

import jax
import jax.numpy as jnp
from jax import lax
from jax.experimental import pallas as pl
from jax.experimental.pallas import tpu as pltpu


_N_SAC = 5
_NUM_W = 2 + 2 * _N_SAC      # conv1', conv2', then (wv, wt') per SAC layer
_NUM_VEC = 2 + 4 * _N_SAC    # bn1_shift, bn2_shift, then (bv, sh_t, alpha, beta)

# dot_general dimension numbers (no batch dims):
_TN = (((0,), (0,)), ((), ()))   # contract dim 0 of both:  A^T @ B
_NT = (((1,), (1,)), ((), ()))   # contract dim 1 of both:  A @ B^T


# ---------------------------------------------------------------------------
# Fused kernel: full forward for one batch element.
# ---------------------------------------------------------------------------
def _fused_kernel(x_ref, w_ref, vec_ref, o_ref, *, C, mxu_dtype, approx):
    # x_ref  : (C, N)          mxu_dtype input activation
    # w_ref  : (12, C, C)      mxu_dtype, BN-folded weight stack
    # vec_ref: (C, 22)         f32 packed per-channel column vectors
    # o_ref  : (5C, N)         f32 concatenated SAC outputs
    N = x_ref.shape[-1]
    f32 = jnp.float32

    def col(k):                                     # (C, 1) broadcast column
        return vec_ref[:, k:k + 1]

    def mm(wi, a):                                  # MXU matmul, f32 accumulate
        return jnp.dot(w_ref[wi], a.astype(mxu_dtype),
                       preferred_element_type=f32)

    # relu(bn1(conv1(x))) ; relu(bn2(conv2(x)))  -- BN scale folded into W.
    x = jnp.maximum(mm(0, x_ref[...]) + col(0), 0.0)
    x = jnp.maximum(mm(1, x) + col(1), 0.0)

    ones_row = jnp.ones((1, N), mxu_dtype)          # hoisted, reused per layer

    cur = x
    for l in range(_N_SAC):
        wv_i, wt_i = 2 + 2 * l, 3 + 2 * l
        bv = col(2 + 4 * l)
        sh_t = col(3 + 4 * l)            # bn_scale*bt + bn_shift
        alpha = col(4 + 4 * l)
        beta = col(5 + 4 * l)

        cur_bf = cur.astype(mxu_dtype)                               # hoisted

        # v_conv: x0 = Wv @ cur + bv
        x0 = jnp.dot(w_ref[wv_i], cur_bf, preferred_element_type=f32) + bv
        x0_bf = x0.astype(mxu_dtype)                                 # hoisted

        # energy[i, j] = sum_c cur[c, i] * x0[c, j]  (no materialized transpose)
        energy = lax.dot_general(cur_bf, x0_bf, _TN,
                                 preferred_element_type=f32)         # (N, N)

        # Softmax over j + column renormalization, with both reciprocals
        # folded into the (C, N) / (1, N) operands (never rescale (N, N)).
        m = jnp.max(energy, axis=-1, keepdims=True)                  # (N, 1)
        e = jnp.exp(energy - m)                                      # (N, N) f32
        # TODO(synk): bf16 exp on v6e/v7x would remove this N^2 cast.
        e_bf = e.astype(mxu_dtype)                                   # single cast

        # row sums (softmax denominator), directly in (1, N) lane orientation
        rowsum = lax.dot_general(ones_row, e_bf, _NT,
                                 preferred_element_type=f32)         # (1, N)
        r_row = pl.reciprocal(rowsum, approx=approx)                 # (1, N)

        # column sums of att = e * r_row  (torch: attention.sum(dim=1))
        colsum = jnp.dot(r_row.astype(mxu_dtype), e_bf,
                         preferred_element_type=f32)                 # (1, N)
        r_col = pl.reciprocal(1e-9 + colsum, approx=approx)          # (1, N)

        # x2 = x0 @ att,  att = e * r_row * r_col folded into the operands.
        x0s_bf = (x0 * r_row).astype(mxu_dtype)                      # (C, N)
        x2 = jnp.dot(x0s_bf, e_bf, preferred_element_type=f32) * r_col

        # x_r = relu(BN(trans_conv(cur - x2)))  (BN scale folded into Wt,
        # conv bias + BN shift folded into sh_t)
        x_r = jnp.maximum(mm(wt_i, cur - x2) + sh_t, 0.0)

        cur = cur + alpha * x_r + beta
        o_ref[l * C:(l + 1) * C, :] = cur


# ---------------------------------------------------------------------------
# Host-side folding / packing + wrapper
# ---------------------------------------------------------------------------
def _fold_and_pack(params, mxu_dtype):
    ws = [params["bn1_scale"][:, None] * params["conv1_w"],
          params["bn2_scale"][:, None] * params["conv2_w"]]
    vecs = [params["bn1_shift"], params["bn2_shift"]]
    for p in params["sac"]:
        ws.append(p["wv"])
        ws.append(p["bn_scale"][:, None] * p["wt"])
        vecs += [p["bv"],
                 p["bn_scale"] * p["bt"] + p["bn_shift"],
                 p["alpha"],
                 p["beta"]]
    w_stack = jnp.stack(ws, axis=0).astype(mxu_dtype)        # (12, C, C)
    vec_pack = jnp.stack(vecs, axis=1).astype(jnp.float32)   # (C, 22)
    return w_stack, vec_pack


def stacked_attention_forward(x, params, *, mxu_dtype=jnp.bfloat16,
                              approx_reciprocal=True,
                              vmem_limit_bytes=48 * 1024 * 1024):
    """Fused forward. Default config = performance config (bf16 MXU operands,
    EUP approx reciprocals). Use mxu_dtype=jnp.float32,
    approx_reciprocal=False for exact f32 math."""
    B, C, N = x.shape
    if N % 128 != 0:
        # TODO(synk): pad N and mask padded key columns in softmax/col-sum.
        raise NotImplementedError("N must be a multiple of 128 (lane width)")

    w_stack, vec_pack = _fold_and_pack(params, mxu_dtype)

    kernel = functools.partial(_fused_kernel, C=C, mxu_dtype=mxu_dtype,
                               approx=approx_reciprocal)
    return pl.pallas_call(
        kernel,
        out_shape=jax.ShapeDtypeStruct((B, _N_SAC * C, N), jnp.float32),
        grid=(B,),
        in_specs=[
            pl.BlockSpec((None, C, N), lambda b: (b, 0, 0)),        # activation
            pl.BlockSpec((_NUM_W, C, C), lambda b: (0, 0, 0)),      # weights
            pl.BlockSpec((C, _NUM_VEC), lambda b: (0, 0)),          # vectors
        ],
        out_specs=pl.BlockSpec((None, _N_SAC * C, N), lambda b: (b, 0, 0)),
        compiler_params=pltpu.CompilerParams(
            dimension_semantics=("parallel",),
            vmem_limit_bytes=vmem_limit_bytes),
    )(x.astype(mxu_dtype), w_stack, vec_pack)


# ---------------------------------------------------------------------------
# Pure-JAX reference (mirrors the PyTorch module, exact f32 math)
# ---------------------------------------------------------------------------
def _ref_forward(x, params):
    hp = dict(preferred_element_type=jnp.float32,
              precision=jax.lax.Precision.HIGHEST)

    def cbr(x, w, sc, sh):
        z = jnp.einsum("ij,bjn->bin", w, x, **hp)
        return jax.nn.relu(sc[None, :, None] * z + sh[None, :, None])

    x = cbr(x, params["conv1_w"], params["bn1_scale"], params["bn1_shift"])
    x = cbr(x, params["conv2_w"], params["bn2_scale"], params["bn2_shift"])
    outs, cur = [], x
    for p in params["sac"]:
        x0 = jnp.einsum("ij,bjn->bin", p["wv"], cur, **hp) + p["bv"][None, :, None]
        energy = jnp.einsum("bcn,bcm->bnm", cur, x0, **hp)
        att = jax.nn.softmax(energy, axis=-1)
        att = att / (1e-9 + jnp.sum(att, axis=1, keepdims=True))
        x2 = jnp.einsum("bcm,bmn->bcn", x0, att, **hp)
        z = jnp.einsum("ij,bjn->bin", p["wt"], cur - x2, **hp) + p["bt"][None, :, None]
        x_r = jax.nn.relu(p["bn_scale"][None, :, None] * z
                          + p["bn_shift"][None, :, None])
        cur = cur + p["alpha"][None, :, None] * x_r + p["beta"][None, :, None]
        outs.append(cur)
    return jnp.concatenate(outs, axis=1)


# ---------------------------------------------------------------------------
# Deterministic parameter construction
# ---------------------------------------------------------------------------
def _bn_fold(key, C, eps=1e-5):
    k1, k2, k3, k4 = jax.random.split(key, 4)
    gamma = 1.0 + 0.1 * jax.random.normal(k1, (C,), jnp.float32)
    beta = 0.1 * jax.random.normal(k2, (C,), jnp.float32)
    mean = 0.1 * jax.random.normal(k3, (C,), jnp.float32)
    var = jax.random.uniform(k4, (C,), jnp.float32, 0.5, 1.5)
    scale = gamma / jnp.sqrt(var + eps)
    shift = beta - mean * scale
    return scale, shift


def make_params(key, C):
    keys = jax.random.split(key, 4 + _N_SAC)
    wscale = 1.0 / jnp.sqrt(C).astype(jnp.float32)

    bn1_scale, bn1_shift = _bn_fold(keys[2], C)
    bn2_scale, bn2_shift = _bn_fold(keys[3], C)
    params = {
        "conv1_w": wscale * jax.random.normal(keys[0], (C, C), jnp.float32),
        "conv2_w": wscale * jax.random.normal(keys[1], (C, C), jnp.float32),
        "bn1_scale": bn1_scale, "bn1_shift": bn1_shift,
        "bn2_scale": bn2_scale, "bn2_shift": bn2_shift,
        "sac": [],
    }
    for i in range(_N_SAC):
        k = jax.random.split(keys[4 + i], 6)
        bn_scale, bn_shift = _bn_fold(k[4], C)
        params["sac"].append({
            "wv": wscale * jax.random.normal(k[0], (C, C), jnp.float32),
            "bv": 0.1 * jax.random.normal(k[1], (C,), jnp.float32),
            "wt": wscale * jax.random.normal(k[2], (C, C), jnp.float32),
            "bt": 0.1 * jax.random.normal(k[3], (C,), jnp.float32),
            "bn_scale": bn_scale, "bn_shift": bn_shift,
            # nn.Parameter(torch.ones/zeros([1, C, 1])) -- exact init values
            "alpha": jnp.ones((C,), jnp.float32),
            "beta": jnp.zeros((C,), jnp.float32),
        })
    return params


# ---------------------------------------------------------------------------
if __name__ == "__main__":
    B, C, N = 2, 32, 128     # small, lane-dense (N multiple of 128; module uses 256)
    key = jax.random.PRNGKey(0)
    kx, kp = jax.random.split(key)
    x = jax.random.normal(kx, (B, C, N), jnp.float32)
    params = make_params(kp, C)

    ref = jax.block_until_ready(_ref_forward(x, params))

    # 1) Exact-math configuration: f32 MXU operands + exact reciprocals.
    #    Tight check against the PyTorch-mirroring reference.
    out = jax.block_until_ready(
        stacked_attention_forward(x, params, mxu_dtype=jnp.float32,
                                  approx_reciprocal=False))
    assert out.shape == (B, _N_SAC * C, N), out.shape
    assert jnp.allclose(out, ref, atol=1e-3, rtol=1e-3), \
        float(jnp.abs(out - ref).max())

    # 2) Performance configuration (default): bf16 MXU operands + EUP approx
    #    reciprocals + folded reciprocals.  bf16 rounding is amplified by the
    #    softmax over five stacked layers, so only a gross-error smoke check
    #    vs the f32 reference is meaningful here; the exact config above
    #    validates the kernel structure/semantics.
    out_fast = jax.block_until_ready(stacked_attention_forward(x, params))
    assert out_fast.shape == (B, _N_SAC * C, N), out_fast.shape
    assert bool(jnp.all(jnp.isfinite(out_fast)))
    rel = float(jnp.linalg.norm(out_fast - ref) / jnp.linalg.norm(ref))
    assert rel < 0.5, rel

    print("KERNEL_OK")
</pallas_src>

<mosaic_0001>
module attributes {stable_mosaic.version = 11 : i64} {
  func.func @_fused_kernel(%arg0: i32, %arg1: memref<1x32x128xf32, #tpu.memory_space<vmem>>, %arg2: memref<12x32x32xf32, #tpu.memory_space<vmem>>, %arg3: memref<32x22xf32, #tpu.memory_space<vmem>>, %arg4: memref<1x160x128xf32, #tpu.memory_space<vmem>>) attributes {dimension_semantics = [#tpu.dimension_semantics<parallel>], iteration_bounds = array<i64: 2>, scalar_prefetch = 0 : i64, scratch_operands = 0 : i64, tpu.core_type = #tpu.core_type<tc>, window_params = [{transform_indices = @transform_0, window_bounds = array<i64: 1, 32, 128>}, {pipeline_mode = #tpu.pipeline_mode<synchronous>, transform_indices = @transform_1, window_bounds = array<i64: 12, 32, 32>}, {pipeline_mode = #tpu.pipeline_mode<synchronous>, transform_indices = @transform_2, window_bounds = array<i64: 32, 22>}, {transform_indices = @transform_3, window_bounds = array<i64: 1, 160, 128>}]} {
    %c0 = arith.constant 0 : index
    %c0_0 = arith.constant 0 : index
    %c0_1 = arith.constant 0 : index
    %0 = vector.load %arg1[%c0, %c0_0, %c0_1] : memref<1x32x128xf32, #tpu.memory_space<vmem>>, vector<1x32x128xf32>
    %1 = vector.shape_cast %0 : vector<1x32x128xf32> to vector<32x128xf32>
    %c0_2 = arith.constant 0 : index
    %c0_3 = arith.constant 0 : index
    %c0_4 = arith.constant 0 : index
    %2 = vector.load %arg2[%c0_2, %c0_3, %c0_4] : memref<12x32x32xf32, #tpu.memory_space<vmem>>, vector<1x32x32xf32>
    %3 = vector.shape_cast %2 : vector<1x32x32xf32> to vector<32x32xf32>
    %cst = arith.constant dense<0.000000e+00> : vector<32x128xf32>
    %4 = tpu.matmul %3, %1, %cst {dimension_numbers = #tpu.dot_dimension_numbers<[1], [0], [0], [1], [0, 0, 1, 1], [], []>} : vector<32x32xf32>, vector<32x128xf32>, vector<32x128xf32> -> vector<32x128xf32>
    %c0_5 = arith.constant 0 : index
    %c0_6 = arith.constant 0 : index
    %5 = vector.load %arg3[%c0_5, %c0_6] : memref<32x22xf32, #tpu.memory_space<vmem>>, vector<32x1xf32>
    %6 = vector.broadcast %5 : vector<32x1xf32> to vector<32x128xf32>
    %7 = arith.addf %4, %6 : vector<32x128xf32>
    %cst_7 = arith.constant 0.000000e+00 : f32
    %8 = vector.broadcast %cst_7 : f32 to vector<32x128xf32>
    %9 = arith.maximumf %7, %8 : vector<32x128xf32>
    %c1 = arith.constant 1 : index
    %c0_8 = arith.constant 0 : index
    %c0_9 = arith.constant 0 : index
    %10 = vector.load %arg2[%c1, %c0_8, %c0_9] : memref<12x32x32xf32, #tpu.memory_space<vmem>>, vector<1x32x32xf32>
    %11 = vector.shape_cast %10 : vector<1x32x32xf32> to vector<32x32xf32>
    %cst_10 = arith.constant dense<0.000000e+00> : vector<32x128xf32>
    %12 = tpu.matmul %11, %9, %cst_10 {dimension_numbers = #tpu.dot_dimension_numbers<[1], [0], [0], [1], [0, 0, 1, 1], [], []>} : vector<32x32xf32>, vector<32x128xf32>, vector<32x128xf32> -> vector<32x128xf32>
    %c0_11 = arith.constant 0 : index
    %c1_12 = arith.constant 1 : index
    %13 = vector.load %arg3[%c0_11, %c1_12] : memref<32x22xf32, #tpu.memory_space<vmem>>, vector<32x1xf32>
    %14 = vector.broadcast %13 : vector<32x1xf32> to vector<32x128xf32>
    %15 = arith.addf %12, %14 : vector<32x128xf32>
    %cst_13 = arith.constant 0.000000e+00 : f32
    %16 = vector.broadcast %cst_13 : f32 to vector<32x128xf32>
    %17 = arith.maximumf %15, %16 : vector<32x128xf32>
    %cst_14 = arith.constant 1.000000e+00 : f32
    %18 = vector.broadcast %cst_14 : f32 to vector<1x128xf32>
    %c0_15 = arith.constant 0 : index
    %c2 = arith.constant 2 : index
    %19 = vector.load %arg3[%c0_15, %c2] : memref<32x22xf32, #tpu.memory_space<vmem>>, vector<32x1xf32>
    %c0_16 = arith.constant 0 : index
    %c3 = arith.constant 3 : index
    %20 = vector.load %arg3[%c0_16, %c3] : memref<32x22xf32, #tpu.memory_space<vmem>>, vector<32x1xf32>
    %c0_17 = arith.constant 0 : index
    %c4 = arith.constant 4 : index
    %21 = vector.load %arg3[%c0_17, %c4] : memref<32x22xf32, #tpu.memory_space<vmem>>, vector<32x1xf32>
    %c0_18 = arith.constant 0 : index
    %c5 = arith.constant 5 : index
    %22 = vector.load %arg3[%c0_18, %c5] : memref<32x22xf32, #tpu.memory_space<vmem>>, vector<32x1xf32>
    %c2_19 = arith.constant 2 : index
    %c0_20 = arith.constant 0 : index
    %c0_21 = arith.constant 0 : index
    %23 = vector.load %arg2[%c2_19, %c0_20, %c0_21] : memref<12x32x32xf32, #tpu.memory_space<vmem>>, vector<1x32x32xf32>
    %24 = vector.shape_cast %23 : vector<1x32x32xf32> to vector<32x32xf32>
    %cst_22 = arith.constant dense<0.000000e+00> : vector<32x128xf32>
    %25 = tpu.matmul %24, %17, %cst_22 {dimension_numbers = #tpu.dot_dimension_numbers<[1], [0], [0], [1], [0, 0, 1, 1], [], []>} : vector<32x32xf32>, vector<32x128xf32>, vector<32x128xf32> -> vector<32x128xf32>
    %26 = vector.broadcast %19 : vector<32x1xf32> to vector<32x128xf32>
    %27 = arith.addf %25, %26 : vector<32x128xf32>
    %cst_23 = arith.constant dense<0.000000e+00> : vector<128x128xf32>
    %28 = tpu.matmul %17, %27, %cst_23 {dimension_numbers = #tpu.dot_dimension_numbers<[0], [0], [1], [1], [0, 1, 1, 1], [], []>} : vector<32x128xf32>, vector<32x128xf32>, vector<128x128xf32> -> vector<128x128xf32>
    %cst_24 = arith.constant dense<0xFF800000> : vector<128xf32>
    %29 = vector.multi_reduction <maximumf>, %28, %cst_24 [1] : vector<128x128xf32> to vector<128xf32>
    %30 = vector.shape_cast %29 : vector<128xf32> to vector<128x1xf32>
    %31 = vector.broadcast %30 : vector<128x1xf32> to vector<128x128xf32>
    %32 = arith.subf %28, %31 : vector<128x128xf32>
    %33 = math.exp %32 : vector<128x128xf32>
    %cst_25 = arith.constant dense<0.000000e+00> : vector<1x128xf32>
    %34 = tpu.matmul %18, %33, %cst_25 {dimension_numbers = #tpu.dot_dimension_numbers<[1], [1], [0], [0], [0, 0, 1, 0], [], []>} : vector<1x128xf32>, vector<128x128xf32>, vector<1x128xf32> -> vector<1x128xf32>
    %35 = tpu.reciprocal %34 : vector<1x128xf32> -> vector<1x128xf32>
    %cst_26 = arith.constant dense<0.000000e+00> : vector<1x128xf32>
    %36 = tpu.matmul %35, %33, %cst_26 {dimension_numbers = #tpu.dot_dimension_numbers<[1], [0], [0], [1], [0, 0, 1, 1], [], []>} : vector<1x128xf32>, vector<128x128xf32>, vector<1x128xf32> -> vector<1x128xf32>
    %cst_27 = arith.constant 9.99999971E-10 : f32
    %37 = vector.broadcast %cst_27 : f32 to vector<1x128xf32>
    %38 = arith.addf %37, %36 : vector<1x128xf32>
    %39 = tpu.reciprocal %38 : vector<1x128xf32> -> vector<1x128xf32>
    %40 = vector.broadcast %35 : vector<1x128xf32> to vector<32x128xf32>
    %41 = arith.mulf %27, %40 : vector<32x128xf32>
    %cst_28 = arith.constant dense<0.000000e+00> : vector<32x128xf32>
    %42 = tpu.matmul %41, %33, %cst_28 {dimension_numbers = #tpu.dot_dimension_numbers<[1], [0], [0], [1], [0, 0, 1, 1], [], []>} : vector<32x128xf32>, vector<128x128xf32>, vector<32x128xf32> -> vector<32x128xf32>
    %43 = vector.broadcast %39 : vector<1x128xf32> to vector<32x128xf32>
    %44 = arith.mulf %42, %43 : vector<32x128xf32>
    %45 = arith.subf %17, %44 : vector<32x128xf32>
    %c3_29 = arith.constant 3 : index
    %c0_30 = arith.constant 0 : index
    %c0_31 = arith.constant 0 : index
    %46 = vector.load %arg2[%c3_29, %c0_30, %c0_31] : memref<12x32x32xf32, #tpu.memory_space<vmem>>, vector<1x32x32xf32>
    %47 = vector.shape_cast %46 : vector<1x32x32xf32> to vector<32x32xf32>
    %cst_32 = arith.constant dense<0.000000e+00> : vector<32x128xf32>
    %48 = tpu.matmul %47, %45, %cst_32 {dimension_numbers = #tpu.dot_dimension_numbers<[1], [0], [0], [1], [0, 0, 1, 1], [], []>} : vector<32x32xf32>, vector<32x128xf32>, vector<32x128xf32> -> vector<32x128xf32>
    %49 = vector.broadcast %20 : vector<32x1xf32> to vector<32x128xf32>
    %50 = arith.addf %48, %49 : vector<32x128xf32>
    %cst_33 = arith.constant 0.000000e+00 : f32
    %51 = vector.broadcast %cst_33 : f32 to vector<32x128xf32>
    %52 = arith.maximumf %50, %51 : vector<32x128xf32>
    %53 = vector.broadcast %21 : vector<32x1xf32> to vector<32x128xf32>
    %54 = arith.mulf %53, %52 : vector<32x128xf32>
    %55 = arith.addf %17, %54 : vector<32x128xf32>
    %56 = vector.broadcast %22 : vector<32x1xf32> to vector<32x128xf32>
    %57 = arith.addf %55, %56 : vector<32x128xf32>
    %c0_34 = arith.constant 0 : index
    %c0_35 = arith.constant 0 : index
    %c0_36 = arith.constant 0 : index
    %58 = vector.load %arg4[%c0_34, %c0_35, %c0_36] : memref<1x160x128xf32, #tpu.memory_space<vmem>>, vector<1x32x128xf32>
    %59 = vector.shape_cast %58 : vector<1x32x128xf32> to vector<32x128xf32>
    %60 = vector.shape_cast %57 : vector<32x128xf32> to vector<1x32x128xf32>
    tpu.vector_store %arg4[%c0_34, %c0_35, %c0_36], %60 {strides = array<i32>} : memref<1x160x128xf32, #tpu.memory_space<vmem>>, vector<1x32x128xf32>,
    %c0_37 = arith.constant 0 : index
    %c6 = arith.constant 6 : index
    %61 = vector.load %arg3[%c0_37, %c6] : memref<32x22xf32, #tpu.memory_space<vmem>>, vector<32x1xf32>
    %c0_38 = arith.constant 0 : index
    %c7 = arith.constant 7 : index
    %62 = vector.load %arg3[%c0_38, %c7] : memref<32x22xf32, #tpu.memory_space<vmem>>, vector<32x1xf32>
    %c0_39 = arith.constant 0 : index
    %c8 = arith.constant 8 : index
    %63 = vector.load %arg3[%c0_39, %c8] : memref<32x22xf32, #tpu.memory_space<vmem>>, vector<32x1xf32>
    %c0_40 = arith.constant 0 : index
    %c9 = arith.constant 9 : index
    %64 = vector.load %arg3[%c0_40, %c9] : memref<32x22xf32, #tpu.memory_space<vmem>>, vector<32x1xf32>
    %c4_41 = arith.constant 4 : index
    %c0_42 = arith.constant 0 : index
    %c0_43 = arith.constant 0 : index
    %65 = vector.load %arg2[%c4_41, %c0_42, %c0_43] : memref<12x32x32xf32, #tpu.memory_space<vmem>>, vector<1x32x32xf32>
    %66 = vector.shape_cast %65 : vector<1x32x32xf32> to vector<32x32xf32>
    %cst_44 = arith.constant dense<0.000000e+00> : vector<32x128xf32>
    %67 = tpu.matmul %66, %57, %cst_44 {dimension_numbers = #tpu.dot_dimension_numbers<[1], [0], [0], [1], [0, 0, 1, 1], [], []>} : vector<32x32xf32>, vector<32x128xf32>, vector<32x128xf32> -> vector<32x128xf32>
    %68 = vector.broadcast %61 : vector<32x1xf32> to vector<32x128xf32>
    %69 = arith.addf %67, %68 : vector<32x128xf32>
    %cst_45 = arith.constant dense<0.000000e+00> : vector<128x128xf32>
    %70 = tpu.matmul %57, %69, %cst_45 {dimension_numbers = #tpu.dot_dimension_numbers<[0], [0], [1], [1], [0, 1, 1, 1], [], []>} : vector<32x128xf32>, vector<32x128xf32>, vector<128x128xf32> -> vector<128x128xf32>
    %cst_46 = arith.constant dense<0xFF800000> : vector<128xf32>
    %71 = vector.multi_reduction <maximumf>, %70, %cst_46 [1] : vector<128x128xf32> to vector<128xf32>
    %72 = vector.shape_cast %71 : vector<128xf32> to vector<128x1xf32>
    %73 = vector.broadcast %72 : vector<128x1xf32> to vector<128x128xf32>
    %74 = arith.subf %70, %73 : vector<128x128xf32>
    %75 = math.exp %74 : vector<128x128xf32>
    %cst_47 = arith.constant dense<0.000000e+00> : vector<1x128xf32>
    %76 = tpu.matmul %18, %75, %cst_47 {dimension_numbers = #tpu.dot_dimension_numbers<[1], [1], [0], [0], [0, 0, 1, 0], [], []>} : vector<1x128xf32>, vector<128x128xf32>, vector<1x128xf32> -> vector<1x128xf32>
    %77 = tpu.reciprocal %76 : vector<1x128xf32> -> vector<1x128xf32>
    %cst_48 = arith.constant dense<0.000000e+00> : vector<1x128xf32>
    %78 = tpu.matmul %77, %75, %cst_48 {dimension_numbers = #tpu.dot_dimension_numbers<[1], [0], [0], [1], [0, 0, 1, 1], [], []>} : vector<1x128xf32>, vector<128x128xf32>, vector<1x128xf32> -> vector<1x128xf32>
    %cst_49 = arith.constant 9.99999971E-10 : f32
    %79 = vector.broadcast %cst_49 : f32 to vector<1x128xf32>
    %80 = arith.addf %79, %78 : vector<1x128xf32>
    %81 = tpu.reciprocal %80 : vector<1x128xf32> -> vector<1x128xf32>
    %82 = vector.broadcast %77 : vector<1x128xf32> to vector<32x128xf32>
    %83 = arith.mulf %69, %82 : vector<32x128xf32>
    %cst_50 = arith.constant dense<0.000000e+00> : vector<32x128xf32>
    %84 = tpu.matmul %83, %75, %cst_50 {dimension_numbers = #tpu.dot_dimension_numbers<[1], [0], [0], [1], [0, 0, 1, 1], [], []>} : vector<32x128xf32>, vector<128x128xf32>, vector<32x128xf32> -> vector<32x128xf32>
    %85 = vector.broadcast %81 : vector<1x128xf32> to vector<32x128xf32>
    %86 = arith.mulf %84, %85 : vector<32x128xf32>
    %87 = arith.subf %57, %86 : vector<32x128xf32>
    %c5_51 = arith.constant 5 : index
    %c0_52 = arith.constant 0 : index
    %c0_53 = arith.constant 0 : index
    %88 = vector.load %arg2[%c5_51, %c0_52, %c0_53] : memref<12x32x32xf32, #tpu.memory_space<vmem>>, vector<1x32x32xf32>
    %89 = vector.shape_cast %88 : vector<1x32x32xf32> to vector<32x32xf32>
    %cst_54 = arith.constant dense<0.000000e+00> : vector<32x128xf32>
    %90 = tpu.matmul %89, %87, %cst_54 {dimension_numbers = #tpu.dot_dimension_numbers<[1], [0], [0], [1], [0, 0, 1, 1], [], []>} : vector<32x32xf32>, vector<32x128xf32>, vector<32x128xf32> -> vector<32x128xf32>
    %91 = vector.broadcast %62 : vector<32x1xf32> to vector<32x128xf32>
    %92 = arith.addf %90, %91 : vector<32x128xf32>
    %cst_55 = arith.constant 0.000000e+00 : f32
    %93 = vector.broadcast %cst_55 : f32 to vector<32x128xf32>
    %94 = arith.maximumf %92, %93 : vector<32x128xf32>
    %95 = vector.broadcast %63 : vector<32x1xf32> to vector<32x128xf32>
    %96 = arith.mulf %95, %94 : vector<32x128xf32>
    %97 = arith.addf %57, %96 : vector<32x128xf32>
    %98 = vector.broadcast %64 : vector<32x1xf32> to vector<32x128xf32>
    %99 = arith.addf %97, %98 : vector<32x128xf32>
    %c0_56 = arith.constant 0 : index
    %c32 = arith.constant 32 : index
    %c0_57 = arith.constant 0 : index
    %100 = vector.load %arg4[%c0_56, %c32, %c0_57] : memref<1x160x128xf32, #tpu.memory_space<vmem>>, vector<1x32x128xf32>
    %101 = vector.shape_cast %100 : vector<1x32x128xf32> to vector<32x128xf32>
    %102 = vector.shape_cast %99 : vector<32x128xf32> to vector<1x32x128xf32>
    tpu.vector_store %arg4[%c0_56, %c32, %c0_57], %102 {strides = array<i32>} : memref<1x160x128xf32, #tpu.memory_space<vmem>>, vector<1x32x128xf32>,
    %c0_58 = arith.constant 0 : index
    %c10 = arith.constant 10 : index
    %103 = vector.load %arg3[%c0_58, %c10] : memref<32x22xf32, #tpu.memory_space<vmem>>, vector<32x1xf32>
    %c0_59 = arith.constant 0 : index
    %c11 = arith.constant 11 : index
    %104 = vector.load %arg3[%c0_59, %c11] : memref<32x22xf32, #tpu.memory_space<vmem>>, vector<32x1xf32>
    %c0_60 = arith.constant 0 : index
    %c12 = arith.constant 12 : index
    %105 = vector.load %arg3[%c0_60, %c12] : memref<32x22xf32, #tpu.memory_space<vmem>>, vector<32x1xf32>
    %c0_61 = arith.constant 0 : index
    %c13 = arith.constant 13 : index
    %106 = vector.load %arg3[%c0_61, %c13] : memref<32x22xf32, #tpu.memory_space<vmem>>, vector<32x1xf32>
    %c6_62 = arith.constant 6 : index
    %c0_63 = arith.constant 0 : index
    %c0_64 = arith.constant 0 : index
    %107 = vector.load %arg2[%c6_62, %c0_63, %c0_64] : memref<12x32x32xf32, #tpu.memory_space<vmem>>, vector<1x32x32xf32>
    %108 = vector.shape_cast %107 : vector<1x32x32xf32> to vector<32x32xf32>
    %cst_65 = arith.constant dense<0.000000e+00> : vector<32x128xf32>
    %109 = tpu.matmul %108, %99, %cst_65 {dimension_numbers = #tpu.dot_dimension_numbers<[1], [0], [0], [1], [0, 0, 1, 1], [], []>} : vector<32x32xf32>, vector<32x128xf32>, vector<32x128xf32> -> vector<32x128xf32>
    %110 = vector.broadcast %103 : vector<32x1xf32> to vector<32x128xf32>
    %111 = arith.addf %109, %110 : vector<32x128xf32>
    %cst_66 = arith.constant dense<0.000000e+00> : vector<128x128xf32>
    %112 = tpu.matmul %99, %111, %cst_66 {dimension_numbers = #tpu.dot_dimension_numbers<[0], [0], [1], [1], [0, 1, 1, 1], [], []>} : vector<32x128xf32>, vector<32x128xf32>, vector<128x128xf32> -> vector<128x128xf32>
    %cst_67 = arith.constant dense<0xFF800000> : vector<128xf32>
    %113 = vector.multi_reduction <maximumf>, %112, %cst_67 [1] : vector<128x128xf32> to vector<128xf32>
    %114 = vector.shape_cast %113 : vector<128xf32> to vector<128x1xf32>
    %115 = vector.broadcast %114 : vector<128x1xf32> to vector<128x128xf32>
    %116 = arith.subf %112, %115 : vector<128x128xf32>
    %117 = math.exp %116 : vector<128x128xf32>
    %cst_68 = arith.constant dense<0.000000e+00> : vector<1x128xf32>
    %118 = tpu.matmul %18, %117, %cst_68 {dimension_numbers = #tpu.dot_dimension_numbers<[1], [1], [0], [0], [0, 0, 1, 0], [], []>} : vector<1x128xf32>, vector<128x128xf32>, vector<1x128xf32> -> vector<1x128xf32>
    %119 = tpu.reciprocal %118 : vector<1x128xf32> -> vector<1x128xf32>
    %cst_69 = arith.constant dense<0.000000e+00> : vector<1x128xf32>
    %120 = tpu.matmul %119, %117, %cst_69 {dimension_numbers = #tpu.dot_dimension_numbers<[1], [0], [0], [1], [0, 0, 1, 1], [], []>} : vector<1x128xf32>, vector<128x128xf32>, vector<1x128xf32> -> vector<1x128xf32>
    %cst_70 = arith.constant 9.99999971E-10 : f32
    %121 = vector.broadcast %cst_70 : f32 to vector<1x128xf32>
    %122 = arith.addf %121, %120 : vector<1x128xf32>
    %123 = tpu.reciprocal %122 : vector<1x128xf32> -> vector<1x128xf32>
    %124 = vector.broadcast %119 : vector<1x128xf32> to vector<32x128xf32>
    %125 = arith.mulf %111, %124 : vector<32x128xf32>
    %cst_71 = arith.constant dense<0.000000e+00> : vector<32x128xf32>
    %126 = tpu.matmul %125, %117, %cst_71 {dimension_numbers = #tpu.dot_dimension_numbers<[1], [0], [0], [1], [0, 0, 1, 1], [], []>} : vector<32x128xf32>, vector<128x128xf32>, vector<32x128xf32> -> vector<32x128xf32>
    %127 = vector.broadcast %123 : vector<1x128xf32> to vector<32x128xf32>
    %128 = arith.mulf %126, %127 : vector<32x128xf32>
    %129 = arith.subf %99, %128 : vector<32x128xf32>
    %c7_72 = arith.constant 7 : index
    %c0_73 = arith.constant 0 : index
    %c0_74 = arith.constant 0 : index
    %130 = vector.load %arg2[%c7_72, %c0_73, %c0_74] : memref<12x32x32xf32, #tpu.memory_space<vmem>>, vector<1x32x32xf32>
    %131 = vector.shape_cast %130 : vector<1x32x32xf32> to vector<32x32xf32>
    %cst_75 = arith.constant dense<0.000000e+00> : vector<32x128xf32>
    %132 = tpu.matmul %131, %129, %cst_75 {dimension_numbers = #tpu.dot_dimension_numbers<[1], [0], [0], [1], [0, 0, 1, 1], [], []>} : vector<32x32xf32>, vector<32x128xf32>, vector<32x128xf32> -> vector<32x128xf32>
    %133 = vector.broadcast %104 : vector<32x1xf32> to vector<32x128xf32>
    %134 = arith.addf %132, %133 : vector<32x128xf32>
    %cst_76 = arith.constant 0.000000e+00 : f32
    %135 = vector.broadcast %cst_76 : f32 to vector<32x128xf32>
    %136 = arith.maximumf %134, %135 : vector<32x128xf32>
    %137 = vector.broadcast %105 : vector<32x1xf32> to vector<32x128xf32>
    %138 = arith.mulf %137, %136 : vector<32x128xf32>
    %139 = arith.addf %99, %138 : vector<32x128xf32>
    %140 = vector.broadcast %106 : vector<32x1xf32> to vector<32x128xf32>
    %141 = arith.addf %139, %140 : vector<32x128xf32>
    %c0_77 = arith.constant 0 : index
    %c64 = arith.constant 64 : index
    %c0_78 = arith.constant 0 : index
    %142 = vector.load %arg4[%c0_77, %c64, %c0_78] : memref<1x160x128xf32, #tpu.memory_space<vmem>>, vector<1x32x128xf32>
    %143 = vector.shape_cast %142 : vector<1x32x128xf32> to vector<32x128xf32>
    %144 = vector.shape_cast %141 : vector<32x128xf32> to vector<1x32x128xf32>
    tpu.vector_store %arg4[%c0_77, %c64, %c0_78], %144 {strides = array<i32>} : memref<1x160x128xf32, #tpu.memory_space<vmem>>, vector<1x32x128xf32>,
    %c0_79 = arith.constant 0 : index
    %c14 = arith.constant 14 : index
    %145 = vector.load %arg3[%c0_79, %c14] : memref<32x22xf32, #tpu.memory_space<vmem>>, vector<32x1xf32>
    %c0_80 = arith.constant 0 : index
    %c15 = arith.constant 15 : index
    %146 = vector.load %arg3[%c0_80, %c15] : memref<32x22xf32, #tpu.memory_space<vmem>>, vector<32x1xf32>
    %c0_81 = arith.constant 0 : index
    %c16 = arith.constant 16 : index
    %147 = vector.load %arg3[%c0_81, %c16] : memref<32x22xf32, #tpu.memory_space<vmem>>, vector<32x1xf32>
    %c0_82 = arith.constant 0 : index
    %c17 = arith.constant 17 : index
    %148 = vector.load %arg3[%c0_82, %c17] : memref<32x22xf32, #tpu.memory_space<vmem>>, vector<32x1xf32>
    %c8_83 = arith.constant 8 : index
    %c0_84 = arith.constant 0 : index
    %c0_85 = arith.constant 0 : index
    %149 = vector.load %arg2[%c8_83, %c0_84, %c0_85] : memref<12x32x32xf32, #tpu.memory_space<vmem>>, vector<1x32x32xf32>
    %150 = vector.shape_cast %149 : vector<1x32x32xf32> to vector<32x32xf32>
    %cst_86 = arith.constant dense<0.000000e+00> : vector<32x128xf32>
    %151 = tpu.matmul %150, %141, %cst_86 {dimension_numbers = #tpu.dot_dimension_numbers<[1], [0], [0], [1], [0, 0, 1, 1], [], []>} : vector<32x32xf32>, vector<32x128xf32>, vector<32x128xf32> -> vector<32x128xf32>
    %152 = vector.broadcast %145 : vector<32x1xf32> to vector<32x128xf32>
    %153 = arith.addf %151, %152 : vector<32x128xf32>
    %cst_87 = arith.constant dense<0.000000e+00> : vector<128x128xf32>
    %154 = tpu.matmul %141, %153, %cst_87 {dimension_numbers = #tpu.dot_dimension_numbers<[0], [0], [1], [1], [0, 1, 1, 1], [], []>} : vector<32x128xf32>, vector<32x128xf32>, vector<128x128xf32> -> vector<128x128xf32>
    %cst_88 = arith.constant dense<0xFF800000> : vector<128xf32>
    %155 = vector.multi_reduction <maximumf>, %154, %cst_88 [1] : vector<128x128xf32> to vector<128xf32>
    %156 = vector.shape_cast %155 : vector<128xf32> to vector<128x1xf32>
    %157 = vector.broadcast %156 : vector<128x1xf32> to vector<128x128xf32>
    %158 = arith.subf %154, %157 : vector<128x128xf32>
    %159 = math.exp %158 : vector<128x128xf32>
    %cst_89 = arith.constant dense<0.000000e+00> : vector<1x128xf32>
    %160 = tpu.matmul %18, %159, %cst_89 {dimension_numbers = #tpu.dot_dimension_numbers<[1], [1], [0], [0], [0, 0, 1, 0], [], []>} : vector<1x128xf32>, vector<128x128xf32>, vector<1x128xf32> -> vector<1x128xf32>
    %161 = tpu.reciprocal %160 : vector<1x128xf32> -> vector<1x128xf32>
    %cst_90 = arith.constant dense<0.000000e+00> : vector<1x128xf32>
    %162 = tpu.matmul %161, %159, %cst_90 {dimension_numbers = #tpu.dot_dimension_numbers<[1], [0], [0], [1], [0, 0, 1, 1], [], []>} : vector<1x128xf32>, vector<128x128xf32>, vector<1x128xf32> -> vector<1x128xf32>
    %cst_91 = arith.constant 9.99999971E-10 : f32
    %163 = vector.broadcast %cst_91 : f32 to vector<1x128xf32>
    %164 = arith.addf %163, %162 : vector<1x128xf32>
    %165 = tpu.reciprocal %164 : vector<1x128xf32> -> vector<1x128xf32>
    %166 = vector.broadcast %161 : vector<1x128xf32> to vector<32x128xf32>
    %167 = arith.mulf %153, %166 : vector<32x128xf32>
    %cst_92 = arith.constant dense<0.000000e+00> : vector<32x128xf32>
    %168 = tpu.matmul %167, %159, %cst_92 {dimension_numbers = #tpu.dot_dimension_numbers<[1], [0], [0], [1], [0, 0, 1, 1], [], []>} : vector<32x128xf32>, vector<128x128xf32>, vector<32x128xf32> -> vector<32x128xf32>
    %169 = vector.broadcast %165 : vector<1x128xf32> to vector<32x128xf32>
    %170 = arith.mulf %168, %169 : vector<32x128xf32>
    %171 = arith.subf %141, %170 : vector<32x128xf32>
    %c9_93 = arith.constant 9 : index
    %c0_94 = arith.constant 0 : index
    %c0_95 = arith.constant 0 : index
    %172 = vector.load %arg2[%c9_93, %c0_94, %c0_95] : memref<12x32x32xf32, #tpu.memory_space<vmem>>, vector<1x32x32xf32>
    %173 = vector.shape_cast %172 : vector<1x32x32xf32> to vector<32x32xf32>
    %cst_96 = arith.constant dense<0.000000e+00> : vector<32x128xf32>
    %174 = tpu.matmul %173, %171, %cst_96 {dimension_numbers = #tpu.dot_dimension_numbers<[1], [0], [0], [1], [0, 0, 1, 1], [], []>} : vector<32x32xf32>, vector<32x128xf32>, vector<32x128xf32> -> vector<32x128xf32>
    %175 = vector.broadcast %146 : vector<32x1xf32> to vector<32x128xf32>
    %176 = arith.addf %174, %175 : vector<32x128xf32>
    %cst_97 = arith.constant 0.000000e+00 : f32
    %177 = vector.broadcast %cst_97 : f32 to vector<32x128xf32>
    %178 = arith.maximumf %176, %177 : vector<32x128xf32>
    %179 = vector.broadcast %147 : vector<32x1xf32> to vector<32x128xf32>
    %180 = arith.mulf %179, %178 : vector<32x128xf32>
    %181 = arith.addf %141, %180 : vector<32x128xf32>
    %182 = vector.broadcast %148 : vector<32x1xf32> to vector<32x128xf32>
    %183 = arith.addf %181, %182 : vector<32x128xf32>
    %c0_98 = arith.constant 0 : index
    %c96 = arith.constant 96 : index
    %c0_99 = arith.constant 0 : index
    %184 = vector.load %arg4[%c0_98, %c96, %c0_99] : memref<1x160x128xf32, #tpu.memory_space<vmem>>, vector<1x32x128xf32>
    %185 = vector.shape_cast %184 : vector<1x32x128xf32> to vector<32x128xf32>
    %186 = vector.shape_cast %183 : vector<32x128xf32> to vector<1x32x128xf32>
    tpu.vector_store %arg4[%c0_98, %c96, %c0_99], %186 {strides = array<i32>} : memref<1x160x128xf32, #tpu.memory_space<vmem>>, vector<1x32x128xf32>,
    %c0_100 = arith.constant 0 : index
    %c18 = arith.constant 18 : index
    %187 = vector.load %arg3[%c0_100, %c18] : memref<32x22xf32, #tpu.memory_space<vmem>>, vector<32x1xf32>
    %c0_101 = arith.constant 0 : index
    %c19 = arith.constant 19 : index
    %188 = vector.load %arg3[%c0_101, %c19] : memref<32x22xf32, #tpu.memory_space<vmem>>, vector<32x1xf32>
    %c0_102 = arith.constant 0 : index
    %c20 = arith.constant 20 : index
    %189 = vector.load %arg3[%c0_102, %c20] : memref<32x22xf32, #tpu.memory_space<vmem>>, vector<32x1xf32>
    %c0_103 = arith.constant 0 : index
    %c21 = arith.constant 21 : index
    %190 = vector.load %arg3[%c0_103, %c21] : memref<32x22xf32, #tpu.memory_space<vmem>>, vector<32x1xf32>
    %c10_104 = arith.constant 10 : index
    %c0_105 = arith.constant 0 : index
    %c0_106 = arith.constant 0 : index
    %191 = vector.load %arg2[%c10_104, %c0_105, %c0_106] : memref<12x32x32xf32, #tpu.memory_space<vmem>>, vector<1x32x32xf32>
    %192 = vector.shape_cast %191 : vector<1x32x32xf32> to vector<32x32xf32>
    %cst_107 = arith.constant dense<0.000000e+00> : vector<32x128xf32>
    %193 = tpu.matmul %192, %183, %cst_107 {dimension_numbers = #tpu.dot_dimension_numbers<[1], [0], [0], [1], [0, 0, 1, 1], [], []>} : vector<32x32xf32>, vector<32x128xf32>, vector<32x128xf32> -> vector<32x128xf32>
    %194 = vector.broadcast %187 : vector<32x1xf32> to vector<32x128xf32>
    %195 = arith.addf %193, %194 : vector<32x128xf32>
    %cst_108 = arith.constant dense<0.000000e+00> : vector<128x128xf32>
    %196 = tpu.matmul %183, %195, %cst_108 {dimension_numbers = #tpu.dot_dimension_numbers<[0], [0], [1], [1], [0, 1, 1, 1], [], []>} : vector<32x128xf32>, vector<32x128xf32>, vector<128x128xf32> -> vector<128x128xf32>
    %cst_109 = arith.constant dense<0xFF800000> : vector<128xf32>
    %197 = vector.multi_reduction <maximumf>, %196, %cst_109 [1] : vector<128x128xf32> to vector<128xf32>
    %198 = vector.shape_cast %197 : vector<128xf32> to vector<128x1xf32>
    %199 = vector.broadcast %198 : vector<128x1xf32> to vector<128x128xf32>
    %200 = arith.subf %196, %199 : vector<128x128xf32>
    %201 = math.exp %200 : vector<128x128xf32>
    %cst_110 = arith.constant dense<0.000000e+00> : vector<1x128xf32>
    %202 = tpu.matmul %18, %201, %cst_110 {dimension_numbers = #tpu.dot_dimension_numbers<[1], [1], [0], [0], [0, 0, 1, 0], [], []>} : vector<1x128xf32>, vector<128x128xf32>, vector<1x128xf32> -> vector<1x128xf32>
    %203 = tpu.reciprocal %202 : vector<1x128xf32> -> vector<1x128xf32>
    %cst_111 = arith.constant dense<0.000000e+00> : vector<1x128xf32>
    %204 = tpu.matmul %203, %201, %cst_111 {dimension_numbers = #tpu.dot_dimension_numbers<[1], [0], [0], [1], [0, 0, 1, 1], [], []>} : vector<1x128xf32>, vector<128x128xf32>, vector<1x128xf32> -> vector<1x128xf32>
    %cst_112 = arith.constant 9.99999971E-10 : f32
    %205 = vector.broadcast %cst_112 : f32 to vector<1x128xf32>
    %206 = arith.addf %205, %204 : vector<1x128xf32>
    %207 = tpu.reciprocal %206 : vector<1x128xf32> -> vector<1x128xf32>
    %208 = vector.broadcast %203 : vector<1x128xf32> to vector<32x128xf32>
    %209 = arith.mulf %195, %208 : vector<32x128xf32>
    %cst_113 = arith.constant dense<0.000000e+00> : vector<32x128xf32>
    %210 = tpu.matmul %209, %201, %cst_113 {dimension_numbers = #tpu.dot_dimension_numbers<[1], [0], [0], [1], [0, 0, 1, 1], [], []>} : vector<32x128xf32>, vector<128x128xf32>, vector<32x128xf32> -> vector<32x128xf32>
    %211 = vector.broadcast %207 : vector<1x128xf32> to vector<32x128xf32>
    %212 = arith.mulf %210, %211 : vector<32x128xf32>
    %213 = arith.subf %183, %212 : vector<32x128xf32>
    %c11_114 = arith.constant 11 : index
    %c0_115 = arith.constant 0 : index
    %c0_116 = arith.constant 0 : index
    %214 = vector.load %arg2[%c11_114, %c0_115, %c0_116] : memref<12x32x32xf32, #tpu.memory_space<vmem>>, vector<1x32x32xf32>
    %215 = vector.shape_cast %214 : vector<1x32x32xf32> to vector<32x32xf32>
    %cst_117 = arith.constant dense<0.000000e+00> : vector<32x128xf32>
    %216 = tpu.matmul %215, %213, %cst_117 {dimension_numbers = #tpu.dot_dimension_numbers<[1], [0], [0], [1], [0, 0, 1, 1], [], []>} : vector<32x32xf32>, vector<32x128xf32>, vector<32x128xf32> -> vector<32x128xf32>
    %217 = vector.broadcast %188 : vector<32x1xf32> to vector<32x128xf32>
    %218 = arith.addf %216, %217 : vector<32x128xf32>
    %cst_118 = arith.constant 0.000000e+00 : f32
    %219 = vector.broadcast %cst_118 : f32 to vector<32x128xf32>
    %220 = arith.maximumf %218, %219 : vector<32x128xf32>
    %221 = vector.broadcast %189 : vector<32x1xf32> to vector<32x128xf32>
    %222 = arith.mulf %221, %220 : vector<32x128xf32>
    %223 = arith.addf %183, %222 : vector<32x128xf32>
    %224 = vector.broadcast %190 : vector<32x1xf32> to vector<32x128xf32>
    %225 = arith.addf %223, %224 : vector<32x128xf32>
    %c0_119 = arith.constant 0 : index
    %c128 = arith.constant 128 : index
    %c0_120 = arith.constant 0 : index
    %226 = vector.load %arg4[%c0_119, %c128, %c0_120] : memref<1x160x128xf32, #tpu.memory_space<vmem>>, vector<1x32x128xf32>
    %227 = vector.shape_cast %226 : vector<1x32x128xf32> to vector<32x128xf32>
    %228 = vector.shape_cast %225 : vector<32x128xf32> to vector<1x32x128xf32>
    tpu.vector_store %arg4[%c0_119, %c128, %c0_120], %228 {strides = array<i32>} : memref<1x160x128xf32, #tpu.memory_space<vmem>>, vector<1x32x128xf32>,
    return
  }
  func.func @transform_0(%arg0: i32) -> (i32, i32, i32) {
    %c0_i32 = arith.constant 0 : i32
    %c0_i32_0 = arith.constant 0 : i32
    %c0_i32_1 = arith.constant 0 : i32
    return %arg0, %c0_i32, %c0_i32_0 : i32, i32, i32
  }
  func.func @transform_1(%arg0: i32) -> (i32, i32, i32) {
    %c0_i32 = arith.constant 0 : i32
    %c0_i32_0 = arith.constant 0 : i32
    %c0_i32_1 = arith.constant 0 : i32
    %c0_i32_2 = arith.constant 0 : i32
    return %c0_i32, %c0_i32_0, %c0_i32_1 : i32, i32, i32
  }
  func.func @transform_2(%arg0: i32) -> (i32, i32) {
    %c0_i32 = arith.constant 0 : i32
    %c0_i32_0 = arith.constant 0 : i32
    %c0_i32_1 = arith.constant 0 : i32
    return %c0_i32, %c0_i32_0 : i32, i32
  }
  func.func @transform_3(%arg0: i32) -> (i32, i32, i32) {
    %c0_i32 = arith.constant 0 : i32
    %c0_i32_0 = arith.constant 0 : i32
    %c0_i32_1 = arith.constant 0 : i32
    return %arg0, %c0_i32, %c0_i32_0 : i32, i32, i32
  }
}

</mosaic_0001>

<llo_original>
// kernel: tpu_custom_call.1
$region0: #{tpu_custom_call.1}
  #allocation0 [shape = 'u32[]', space=smem, size = 0x4, offset = 0x4, fixed_abs, tag = 'smem constant byte address 0x4 - core index']
  #allocation1 [shape = 'u32[144,128]{1,0:T(1,128)}', space=vmem, size = 0x12000, scoped, tag = 'internal scratch']
  %s0 = inlined_call_operand.hbm [shape: f32[2,32,128], index: 0, kind: input, shape index: {}]
  %s1 = inlined_call_operand.hbm [shape: f32[12,32,32], index: 1, kind: input, shape index: {}]
  %s2 = inlined_call_operand.vmem [shape: f32[32,22], index: 2, kind: input, shape index: {}]
  %s3 = inlined_call_operand.hbm [shape: f32[2,160,128], index: 3, kind: output, shape index: {}]
  %s4 = sld [smem:[#allocation0]]
  $region53: #{tpu_custom_call.1} parent=0
    _
  %s6 = ssub.s32 1, %s4
  %s7 = scalar_select 0, %s6, %s4
  $region1: #{tpu_custom_call.1} parent=0
    #allocation2 [shape = 'u8[32768]{0}', space=vmem, size = 0x8000, scoped, tag = 'input window, operand 0']
    #allocation3 [shape = 's32[2]{0}', space=sflag, size = 0x8, scoped, tag = 'scoped memory for tpu_custom_call.1']
    #allocation4 [shape = 's32[2]{0}', space=sflag, size = 0x8, scoped, tag = 'scoped memory for tpu_custom_call.1']
    #allocation5 [shape = 'u8[196608]{0}', space=vmem, size = 0x30000, scoped, tag = 'input window, operand 1, single buffered']
    #allocation6 [shape = 's32[1]{0}', space=sflag, size = 0x4, scoped, tag = 'scoped memory for tpu_custom_call.1']
    #allocation7 [shape = 'u8[163840]{0}', space=vmem, size = 0x28000, scoped, tag = 'output window, operand 0']
    %8 = vsyncpa [#allocation3], 0
    %s9 = scalar_lea.sflag [#allocation3], 1
    %10 = vsyncpa %s9, 0
    %11 = vsyncpa [#allocation6], 0
    %12 = vsyncpa [#allocation4], 0
    %s13 = scalar_lea.sflag [#allocation4], 1
    %14 = vsyncpa %s13, 0
    loop: start=0, step=1, limit=4
    $region2: #{tpu_custom_call.1} parent=1 // loop_pre_header
      _
    $region3: #{tpu_custom_call.1} parent=1 // loop_header
      %s16 = sphi 0, %s20
      %p17 = scmp.ge.s32.totalorder %s16, 4
      %s26 = sphi 0, %s28
      %s29 = sphi 0, %s26
      %s30 = sphi 0, %s29
      %s46 = sphi 0, %s30
      %s50 = sphi 0, %s50
      %s52 = sphi 0, %s50
      %s53 = sphi 0, %s52
      %s67 = sphi 0, %s53
      %s71 = sphi 0, %s71
      %s73 = sphi 0, %s71
      %s74 = sphi 0, %s73
      %s88 = sphi 0, %s74
      %s94 = sphi 0, %s96
      %s97 = sphi 0, %s94
      %s98 = sphi 0, %s97
      %s114 = sphi 0, %s98
    $region4: #{tpu_custom_call.1} parent=1 // loop_header_branch
      %19 = sbr.rel (%p17) target = $region8
    $region5: #{tpu_custom_call.1} parent=1 // loop_body
      %s21 = ssub.s32 %s16, 1
      %s22 = ssub.s32 %s16, 2
      %s23 = sadd.s32 %s16, 1
      %s24 = ssub.s32 %s16, %s23
      %p25 = scmp.eq.s32.totalorder %s24, 0
      %s27 = sadd.s32 %s26, 1
      %s28 = scalar_select %p25, %s26, %s27
      %p31 = pneg %p25
      %p32 = scmp.eq.s32.totalorder %s16, 1
      %p33 = por %p31, %p32
      %p34 = scmp.ne.s32.totalorder %s26, %s29
      %p35 = scmp.eq.s32.totalorder %s16, 0
      %p36 = por %p34, %p35
      %p37 = scmp.ne.s32.totalorder %s26, %s29
      %p38 = scmp.eq.s32.totalorder %s21, 1
      %p39 = por %p37, %p38
      %p40 = scmp.ne.s32.totalorder %s29, %s30
      %p41 = scmp.eq.s32.totalorder %s21, 0
      %p42 = por %p40, %p41
      %p43 = scmp.ne.s32.totalorder %s29, %s30
      %p44 = scmp.eq.s32.totalorder %s22, 1
      %p45 = por %p43, %p44
      %p47 = scmp.ne.s32.totalorder %s30, %s46
      %p48 = scmp.eq.s32.totalorder %s22, 0
      %p49 = por %p47, %p48
      %s51 = sadd.s32 %s50, 1
      %p54 = scmp.eq.s32.totalorder %s16, 1
      %p55 = scmp.ne.s32.totalorder %s50, %s52
      %p56 = scmp.eq.s32.totalorder %s16, 0
      %p57 = por %p55, %p56
      %p58 = scmp.ne.s32.totalorder %s50, %s52
      %p59 = scmp.eq.s32.totalorder %s21, 1
      %p60 = por %p58, %p59
      %p61 = scmp.ne.s32.totalorder %s52, %s53
      %p62 = scmp.eq.s32.totalorder %s21, 0
      %p63 = por %p61, %p62
      %p64 = scmp.ne.s32.totalorder %s52, %s53
      %p65 = scmp.eq.s32.totalorder %s22, 1
      %p66 = por %p64, %p65
      %p68 = scmp.ne.s32.totalorder %s53, %s67
      %p69 = scmp.eq.s32.totalorder %s22, 0
      %p70 = por %p68, %p69
      %s72 = sadd.s32 %s71, 1
      %p75 = scmp.eq.s32.totalorder %s16, 1
      %p76 = scmp.ne.s32.totalorder %s71, %s73
      %p77 = scmp.eq.s32.totalorder %s16, 0
      %p78 = por %p76, %p77
      %p79 = scmp.ne.s32.totalorder %s71, %s73
      %p80 = scmp.eq.s32.totalorder %s21, 1
      %p81 = por %p79, %p80
      %p82 = scmp.ne.s32.totalorder %s73, %s74
      %p83 = scmp.eq.s32.totalorder %s21, 0
      %p84 = por %p82, %p83
      %p85 = scmp.ne.s32.totalorder %s73, %s74
      %p86 = scmp.eq.s32.totalorder %s22, 1
      %p87 = por %p85, %p86
      %p89 = scmp.ne.s32.totalorder %s74, %s88
      %p90 = scmp.eq.s32.totalorder %s22, 0
      %p91 = por %p89, %p90
      %s92 = ssub.s32 %s16, %s23
      %p93 = scmp.eq.s32.totalorder %s92, 0
      %s95 = sadd.s32 %s94, 1
      %s96 = scalar_select %p93, %s94, %s95
      %p99 = pneg %p93
      %p100 = scmp.eq.s32.totalorder %s16, 1
      %p101 = por %p99, %p100
      %p102 = scmp.ne.s32.totalorder %s94, %s97
      %p103 = scmp.eq.s32.totalorder %s16, 0
      %p104 = por %p102, %p103
      %p105 = scmp.ne.s32.totalorder %s94, %s97
      %p106 = scmp.eq.s32.totalorder %s21, 1
      %p107 = por %p105, %p106
      %p108 = scmp.ne.s32.totalorder %s97, %s98
      %p109 = scmp.eq.s32.totalorder %s21, 0
      %p110 = por %p108, %p109
      %p111 = scmp.ne.s32.totalorder %s97, %s98
      %p112 = scmp.eq.s32.totalorder %s22, 1
      %p113 = por %p111, %p112
      %p115 = scmp.ne.s32.totalorder %s98, %s114
      %p116 = scmp.eq.s32.totalorder %s22, 0
      %p117 = por %p115, %p116
      %p118 = scmp.le.s32.totalorder 1, %s16
      %p119 = scmp.lt.s32.totalorder %s16, 3
      %p120 = pnand %p118, %p119
      %p121 = pneg %p120
      // Predicated region
      $region9: #{tpu_custom_call.1} parent=5 // pred_check
        _
      $region10: #{tpu_custom_call.1} parent=5 // pred_check_branch
        %123 = sbr.rel (%p120) target = $region12
      $region11: #{tpu_custom_call.1} parent=5 // pred_region
        %s124 = ssub.s32 %s16, 1
        // Predicated region
        $region13: #{tpu_custom_call.1} parent=11 // pred_check
          %p125 = pneg %p63
        $region14: #{tpu_custom_call.1} parent=11 // pred_check_branch
          %127 = sbr.rel (%p125) target = $region16
        $region15: #{tpu_custom_call.1} parent=11 // pred_region
          %s129 = ssub.s32 6144, 6144
          %130 = vsyncadd [#allocation6], %s129
          %s131 = sshll.u32 [#allocation5], 4
          %s132 = int_to_ptr.vmem [resolvable:$true] %s131
          %137 = dma.hbm_to_vmem [thread:$0]  %s1, 6144, %s132, [#allocation6], 128, 128, 8
        $region16: #{tpu_custom_call.1} parent=11 // pred_fallthru
          _
        // Predicated region
        $region17: #{tpu_custom_call.1} parent=11 // pred_check
          %p138 = pneg %p84
        $region18: #{tpu_custom_call.1} parent=11 // pred_check_branch
          %140 = sbr.rel (%p138) target = $region20
        $region19: #{tpu_custom_call.1} parent=11 // pred_region
          _
        $region20: #{tpu_custom_call.1} parent=11 // pred_fallthru
          _
      $region12: #{tpu_custom_call.1} parent=5 // pred_fallthru
        _
      %p141 = scmp.lt.s32.totalorder %s16, 2
      // Predicated region
      $region21: #{tpu_custom_call.1} parent=5 // pred_check
        %p142 = pneg %p141
      $region22: #{tpu_custom_call.1} parent=5 // pred_check_branch
        %144 = sbr.rel (%p142) target = $region24
      $region23: #{tpu_custom_call.1} parent=5 // pred_region
        // Predicated region
        $region25: #{tpu_custom_call.1} parent=23 // pred_check
          %p145 = pneg %p36
        $region26: #{tpu_custom_call.1} parent=23 // pred_check_branch
          %147 = sbr.rel (%p145) target = $region28
        $region27: #{tpu_custom_call.1} parent=23 // pred_region
          %s148 = sand.u32 %s26, 1
          %s149 = scalar_lea.sflag [#allocation3], %s148
          %s150 = sand.u32 %s26, 1
          %s151 = smul.addr %s150, 32
          %s152 = scalar_lea.vmem [#allocation2], %s151
          %s154 = ssub.s32 512, 512
          %155 = vsyncadd %s149, %s154
          %s156 = smul.addr %s16, 4
          %s157 = smul.addr %s156, 128
          %s158 = scalar_lea.hbm %s0, %s157
          %s159 = sshll.u32 %s152, 4
          %s160 = int_to_ptr.vmem [resolvable:$true] %s159
          %165 = dma.hbm_to_vmem [thread:$0]  %s158, 512, %s160, %s149, 128, 128, 8
        $region28: #{tpu_custom_call.1} parent=23 // pred_fallthru
          _
      $region24: #{tpu_custom_call.1} parent=5 // pred_fallthru
        _
      %p166 = scmp.le.s32.totalorder 1, %s16
      %p167 = scmp.lt.s32.totalorder %s16, 3
      %p168 = pnand %p166, %p167
      %p169 = pneg %p168
      // Predicated region
      $region29: #{tpu_custom_call.1} parent=5 // pred_check
        _
      $region30: #{tpu_custom_call.1} parent=5 // pred_check_branch
        %171 = sbr.rel (%p168) target = $region32
      $region31: #{tpu_custom_call.1} parent=5 // pred_region
        %s172 = ssub.s32 %s16, 1
        %s173 = sand.u32 %s29, 1
        %s174 = scalar_lea.sflag [#allocation3], %s173
        %s175 = sand.u32 %s29, 1
        %s176 = smul.addr %s175, 32
        %s177 = scalar_lea.vmem [#allocation2], %s176
        // Predicated region
        $region33: #{tpu_custom_call.1} parent=31 // pred_check
          %p178 = pneg %p42
        $region34: #{tpu_custom_call.1} parent=31 // pred_check_branch
          %180 = sbr.rel (%p178) target = $region36
        $region35: #{tpu_custom_call.1} parent=31 // pred_region
          %181 = dma.done %s174, 512
        $region36: #{tpu_custom_call.1} parent=31 // pred_fallthru
          _
        // Predicated region
        $region37: #{tpu_custom_call.1} parent=31 // pred_check
          %p182 = pneg %p63
        $region38: #{tpu_custom_call.1} parent=31 // pred_check_branch
          %184 = sbr.rel (%p182) target = $region40
        $region39: #{tpu_custom_call.1} parent=31 // pred_region
          %185 = dma.done [#allocation6], 6144
        $region40: #{tpu_custom_call.1} parent=31 // pred_fallthru
          _
        %s186 = sand.u32 %s29, 1
        %s187 = scalar_lea.sflag [#allocation3], %s186
        %s188 = sand.u32 %s29, 1
        %s189 = smul.addr %s188, 32
        %s190 = scalar_lea.vmem [#allocation2], %s189
        %p191 = pneg %p42
        %p192 = pneg %p39
        %p193 = pneg %p63
        %p194 = pneg %p60
        %p195 = pneg %p84
        %p196 = pneg %p81
        %p197 = pneg %p110
        %p198 = pneg %p107
        %s199 = sand.u32 %s97, 1
        %s200 = scalar_lea.sflag [#allocation4], %s199
        %s201 = sand.u32 %s97, 1
        %s202 = smul.addr %s201, 160
        %s203 = scalar_lea.vmem [#allocation7], %s202
        %v204 = vld [vmem:[%s177] sm:$0xff]
        %v205 = vld [vmem:[%s177 + $0x8] sm:$0xff]
        %v206 = vld [vmem:[%s177 + $0x10] sm:$0xff]
        %v207 = vld [vmem:[%s177 + $0x18] sm:$0xff]
        %v208 = vld [vmem:[#allocation5] sm:$0xff]
        %v209 = vld [vmem:[#allocation5 + $0x8] sm:$0xff]
        %v210 = vld [vmem:[#allocation5 + $0x10] sm:$0xff]
        %v211 = vld [vmem:[#allocation5 + $0x18] sm:$0xff]
        %v212 = vld [vmem:[%s2] sm:$0xff]
        %v213 = vld [vmem:[%s2 + $0x8] sm:$0xff]
        %v214 = vld [vmem:[%s2 + $0x10] sm:$0xff]
        %v215 = vld [vmem:[%s2 + $0x18] sm:$0xff]
        %217 = vset.pattern.permute.xlu0 0
        %218 = vperm.xlu0 %217, %v212
        %v219 = vpop.permute.xlu0 %218
        %222 = vset.pattern.permute.xlu0 0
        %223 = vperm.xlu0 %222, %v213
        %v224 = vpop.permute.xlu0 %223
        %227 = vset.pattern.permute.xlu0 0
        %228 = vperm.xlu0 %227, %v214
        %v229 = vpop.permute.xlu0 %228
        %232 = vset.pattern.permute.xlu0 0
        %233 = vperm.xlu0 %232, %v215
        %v234 = vpop.permute.xlu0 %233
        %vm236 = vcmask 261120
        %v238 = vsel %vm236, %v208, 0
        %v241 = vsel %vm236, %v209, 0
        %v244 = vsel %vm236, %v210, 0
        %v247 = vsel %vm236, %v211, 0
        %249 = vmatprep.subr.mxu0 0.0
        %250 = vmatpush1.msra.mxu0 %v204
        %251 = vmatprep.subr.mxu0 0.0
        %252 = vmatpush1.msra.mxu0 %v205
        %253 = vmatprep.subr.mxu0 0.0
        %254 = vmatpush1.msra.mxu0 %v206
        %255 = vmatprep.subr.mxu0 0.0
        %256 = vmatpush1.msra.mxu0 %v207
        %257 = vmatprep.subr.mxu0 0.0
        %258 = vmatpush1.msra.mxu0 0.0
        %259 = vmatprep.subr.mxu0 0.0
        %260 = vmatpush1.msra.mxu0 0.0
        %261 = vmatprep.subr.mxu0 0.0
        %262 = vmatpush1.msra.mxu0 0.0
        %263 = vmatprep.subr.mxu0 0.0
        %264 = vmatpush1.msra.mxu0 0.0
        %265 = vmatprep.subr.mxu0 0.0
        %266 = vmatpush1.msra.mxu0 0.0
        %267 = vmatprep.subr.mxu0 0.0
        %268 = vmatpush1.msra.mxu0 0.0
        %269 = vmatprep.subr.mxu0 0.0
        %270 = vmatpush1.msra.mxu0 0.0
        %271 = vmatprep.subr.mxu0 0.0
        %272 = vmatpush1.msra.mxu0 0.0
        %273 = vmatprep.subr.mxu0 0.0
        %274 = vmatpush1.msra.mxu0 0.0
        %275 = vmatprep.subr.mxu0 0.0
        %276 = vmatpush1.msra.mxu0 0.0
        %277 = vmatprep.subr.mxu0 0.0
        %278 = vmatpush1.msra.mxu0 0.0
        %279 = vmatprep.subr.mxu0 0.0
        %280 = vmatpush1.msra.mxu0 0.0
        %281 = vmatprep.subr.mxu0 0.0
        %282 = vmatpush1.msra.mxu0 0.0
        %283 = vmatprep.subr.mxu0 0.0
        %284 = vmatpush1.msra.mxu0 0.0
        %285 = vmatprep.subr.mxu0 0.0
        %286 = vmatpush1.msra.mxu0 0.0
        %287 = vmatprep.subr.mxu0 0.0
        %288 = vmatpush1.msra.mxu0 0.0
        %289 = vmatprep.subr.mxu0 0.0
        %290 = vmatpush1.msra.mxu0 0.0
        %291 = vmatprep.subr.mxu0 0.0
        %292 = vmatpush1.msra.mxu0 0.0
        %293 = vmatprep.subr.mxu0 0.0
        %294 = vmatpush1.msra.mxu0 0.0
        %295 = vmatprep.subr.mxu0 0.0
        %296 = vmatpush1.msra.mxu0 0.0
        %297 = vmatprep.subr.mxu0 0.0
        %298 = vmatpush1.msra.mxu0 0.0
        %299 = vmatprep.subr.mxu0 0.0
        %300 = vmatpush1.msra.mxu0 0.0
        %301 = vmatprep.subr.mxu0 0.0
        %302 = vmatpush1.msra.mxu0 0.0
        %303 = vmatprep.subr.mxu0 0.0
        %304 = vmatpush1.msra.mxu0 0.0
        %305 = vmatprep.subr.mxu0 0.0
        %306 = vmatpush1.msra.mxu0 0.0
        %307 = vmatprep.subr.mxu0 0.0
        %308 = vmatpush1.msra.mxu0 0.0
        %309 = vmatprep.subr.mxu0 0.0
        %310 = vmatpush1.msra.mxu0 0.0
        %311 = vmatprep.subr.mxu0 0.0
        %312 = vmatpush1.msra.mxu0 0.0
        %313 = vmatprep.mubr.f32.mxu0 0.0
        %314 = vmatmul.mubr.f32.gmra.mrb[0].mxu0 %v238
        %v315 = vpop.f32.mrb[0].mxu0
        %v316 = vadd.f32 %v219, %v315
        %v317 = vpop.f32.mrb[0].mxu0
        %318 = vmatprep.mubr.f32.mxu0 0.0
        %319 = vmatmul.mubr.f32.gmra.mrb[0].mxu0 %v241
        %v320 = vpop.f32.mrb[0].mxu0
        %v321 = vadd.f32 %v224, %v320
        %v322 = vpop.f32.mrb[0].mxu0
        %323 = vmatprep.mubr.f32.mxu0 0.0
        %324 = vmatmul.mubr.f32.gmra.mrb[0].mxu0 %v244
        %v325 = vpop.f32.mrb[0].mxu0
        %v326 = vadd.f32 %v229, %v325
        %v327 = vpop.f32.mrb[0].mxu0
        %328 = vmatprep.mubr.f32.mxu0 0.0
        %329 = vmatmul.mubr.f32.gmra.mrb[0].mxu0 %v247
        %v330 = vpop.f32.mrb[0].mxu0
        %v331 = vadd.f32 %v234, %v330
        %v332 = vpop.f32.mrb[0].mxu0
        %333 = vdwg.mxu0
        %v334 = vmax.f32 %v316, 0.0
        %v335 = vmax.f32 %v321, 0.0
        %v336 = vmax.f32 %v326, 0.0
        %v337 = vmax.f32 %v331, 0.0
        %s338 = scalar_lea.vmem [#allocation5], 32
        %v339 = vld [vmem:[%s338] sm:$0xff]
        %v340 = vld [vmem:[%s338 + $0x8] sm:$0xff]
        %v341 = vld [vmem:[%s338 + $0x10] sm:$0xff]
        %v342 = vld [vmem:[%s338 + $0x18] sm:$0xff]
        %343 = vset.pattern.permute.xlu0 1
        %344 = vperm.xlu0 %343, %v212
        %v345 = vpop.permute.xlu0 %344
        %347 = vset.pattern.permute.xlu0 1
        %348 = vperm.xlu0 %347, %v213
        %v349 = vpop.permute.xlu0 %348
        %351 = vset.pattern.permute.xlu0 1
        %352 = vperm.xlu0 %351, %v214
        %v353 = vpop.permute.xlu0 %352
        %355 = vset.pattern.permute.xlu0 1
        %356 = vperm.xlu0 %355, %v215
        %v357 = vpop.permute.xlu0 %356
        %v360 = vsel %vm236, %v339, 0
        %v363 = vsel %vm236, %v340, 0
        %v366 = vsel %vm236, %v341, 0
        %v369 = vsel %vm236, %v342, 0
        %371 = vmatprep.subr.mxu0 0.0
        %372 = vmatpush1.msra.mxu0 %v334
        %373 = vmatprep.subr.mxu0 0.0
        %374 = vmatpush1.msra.mxu0 %v335
        %375 = vmatprep.subr.mxu0 0.0
        %376 = vmatpush1.msra.mxu0 %v336
        %377 = vmatprep.subr.mxu0 0.0
        %378 = vmatpush1.msra.mxu0 %v337
        %379 = vmatprep.subr.mxu0 0.0
        %380 = vmatpush1.msra.mxu0 0.0
        %381 = vmatprep.subr.mxu0 0.0
        %382 = vmatpush1.msra.mxu0 0.0
        %383 = vmatprep.subr.mxu0 0.0
        %384 = vmatpush1.msra.mxu0 0.0
        %385 = vmatprep.subr.mxu0 0.0
        %386 = vmatpush1.msra.mxu0 0.0
        %387 = vmatprep.subr.mxu0 0.0
        %388 = vmatpush1.msra.mxu0 0.0
        %389 = vmatprep.subr.mxu0 0.0
        %390 = vmatpush1.msra.mxu0 0.0
        %391 = vmatprep.subr.mxu0 0.0
        %392 = vmatpush1.msra.mxu0 0.0
        %393 = vmatprep.subr.mxu0 0.0
        %394 = vmatpush1.msra.mxu0 0.0
        %395 = vmatprep.subr.mxu0 0.0
        %396 = vmatpush1.msra.mxu0 0.0
        %397 = vmatprep.subr.mxu0 0.0
        %398 = vmatpush1.msra.mxu0 0.0
        %399 = vmatprep.subr.mxu0 0.0
        %400 = vmatpush1.msra.mxu0 0.0
        %401 = vmatprep.subr.mxu0 0.0
        %402 = vmatpush1.msra.mxu0 0.0
        %403 = vmatprep.subr.mxu0 0.0
        %404 = vmatpush1.msra.mxu0 0.0
        %405 = vmatprep.subr.mxu0 0.0
        %406 = vmatpush1.msra.mxu0 0.0
        %407 = vmatprep.subr.mxu0 0.0
        %408 = vmatpush1.msra.mxu0 0.0
        %409 = vmatprep.subr.mxu0 0.0
        %410 = vmatpush1.msra.mxu0 0.0
        %411 = vmatprep.subr.mxu0 0.0
        %412 = vmatpush1.msra.mxu0 0.0
        %413 = vmatprep.subr.mxu0 0.0
        %414 = vmatpush1.msra.mxu0 0.0
        %415 = vmatprep.subr.mxu0 0.0
        %416 = vmatpush1.msra.mxu0 0.0
        %417 = vmatprep.subr.mxu0 0.0
        %418 = vmatpush1.msra.mxu0 0.0
        %419 = vmatprep.subr.mxu0 0.0
        %420 = vmatpush1.msra.mxu0 0.0
        %421 = vmatprep.subr.mxu0 0.0
        %422 = vmatpush1.msra.mxu0 0.0
        %423 = vmatprep.subr.mxu0 0.0
        %424 = vmatpush1.msra.mxu0 0.0
        %425 = vmatprep.subr.mxu0 0.0
        %426 = vmatpush1.msra.mxu0 0.0
        %427 = vmatprep.subr.mxu0 0.0
        %428 = vmatpush1.msra.mxu0 0.0
        %429 = vmatprep.subr.mxu0 0.0
        %430 = vmatpush1.msra.mxu0 0.0
        %431 = vmatprep.subr.mxu0 0.0
        %432 = vmatpush1.msra.mxu0 0.0
        %433 = vmatprep.subr.mxu0 0.0
        %434 = vmatpush1.msra.mxu0 0.0
        %435 = vmatprep.mubr.f32.mxu0 0.0
        %436 = vmatmul.mubr.f32.gmra.mrb[0].mxu0 %v360
        %v437 = vpop.f32.mrb[0].mxu0
        %v438 = vadd.f32 %v345, %v437
        %v439 = vpop.f32.mrb[0].mxu0
        %440 = vmatprep.mubr.f32.mxu0 0.0
        %441 = vmatmul.mubr.f32.gmra.mrb[0].mxu0 %v363
        %v442 = vpop.f32.mrb[0].mxu0
        %v443 = vadd.f32 %v349, %v442
        %v444 = vpop.f32.mrb[0].mxu0
        %445 = vmatprep.mubr.f32.mxu0 0.0
        %446 = vmatmul.mubr.f32.gmra.mrb[0].mxu0 %v366
        %v447 = vpop.f32.mrb[0].mxu0
        %v448 = vadd.f32 %v353, %v447
        %v449 = vpop.f32.mrb[0].mxu0
        %450 = vmatprep.mubr.f32.mxu0 0.0
        %451 = vmatmul.mubr.f32.gmra.mrb[0].mxu0 %v369
        %v452 = vpop.f32.mrb[0].mxu0
        %v453 = vadd.f32 %v357, %v452
        %v454 = vpop.f32.mrb[0].mxu0
        %455 = vdwg.mxu0
        %v456 = vmax.f32 %v438, 0.0
        %v457 = vmax.f32 %v443, 0.0
        %v458 = vmax.f32 %v448, 0.0
        %v459 = vmax.f32 %v453, 0.0
        %s460 = scalar_lea.vmem [#allocation5], 64
        %v461 = vld [vmem:[%s460] sm:$0xff]
        %v462 = vld [vmem:[%s460 + $0x8] sm:$0xff]
        %v463 = vld [vmem:[%s460 + $0x10] sm:$0xff]
        %v464 = vld [vmem:[%s460 + $0x18] sm:$0xff]
        %465 = vset.pattern.permute.xlu0 2
        %466 = vperm.xlu0 %465, %v212
        %v467 = vpop.permute.xlu0 %466
        %469 = vset.pattern.permute.xlu0 2
        %470 = vperm.xlu0 %469, %v213
        %v471 = vpop.permute.xlu0 %470
        %473 = vset.pattern.permute.xlu0 2
        %474 = vperm.xlu0 %473, %v214
        %v475 = vpop.permute.xlu0 %474
        %477 = vset.pattern.permute.xlu0 2
        %478 = vperm.xlu0 %477, %v215
        %v479 = vpop.permute.xlu0 %478
        %v482 = vsel %vm236, %v461, 0
        %v485 = vsel %vm236, %v462, 0
        %v488 = vsel %vm236, %v463, 0
        %v491 = vsel %vm236, %v464, 0
        %493 = vmatprep.subr.mxu0 0.0
        %494 = vmatpush1.msra.mxu0 %v456
        %495 = vmatprep.subr.mxu0 0.0
        %496 = vmatpush1.msra.mxu0 %v457
        %497 = vmatprep.subr.mxu0 0.0
        %498 = vmatpush1.msra.mxu0 %v458
        %499 = vmatprep.subr.mxu0 0.0
        %500 = vmatpush1.msra.mxu0 %v459
        %501 = vmatprep.subr.mxu0 0.0
        %502 = vmatpush1.msra.mxu0 0.0
        %503 = vmatprep.subr.mxu0 0.0
        %504 = vmatpush1.msra.mxu0 0.0
        %505 = vmatprep.subr.mxu0 0.0
        %506 = vmatpush1.msra.mxu0 0.0
        %507 = vmatprep.subr.mxu0 0.0
        %508 = vmatpush1.msra.mxu0 0.0
        %509 = vmatprep.subr.mxu0 0.0
        %510 = vmatpush1.msra.mxu0 0.0
        %511 = vmatprep.subr.mxu0 0.0
        %512 = vmatpush1.msra.mxu0 0.0
        %513 = vmatprep.subr.mxu0 0.0
        %514 = vmatpush1.msra.mxu0 0.0
        %515 = vmatprep.subr.mxu0 0.0
        %516 = vmatpush1.msra.mxu0 0.0
        %517 = vmatprep.subr.mxu0 0.0
        %518 = vmatpush1.msra.mxu0 0.0
        %519 = vmatprep.subr.mxu0 0.0
        %520 = vmatpush1.msra.mxu0 0.0
        %521 = vmatprep.subr.mxu0 0.0
        %522 = vmatpush1.msra.mxu0 0.0
        %523 = vmatprep.subr.mxu0 0.0
        %524 = vmatpush1.msra.mxu0 0.0
        %525 = vmatprep.subr.mxu0 0.0
        %526 = vmatpush1.msra.mxu0 0.0
        %527 = vmatprep.subr.mxu0 0.0
        %528 = vmatpush1.msra.mxu0 0.0
        %529 = vmatprep.subr.mxu0 0.0
        %530 = vmatpush1.msra.mxu0 0.0
        %531 = vmatprep.subr.mxu0 0.0
        %532 = vmatpush1.msra.mxu0 0.0
        %533 = vmatprep.subr.mxu0 0.0
        %534 = vmatpush1.msra.mxu0 0.0
        %535 = vmatprep.subr.mxu0 0.0
        %536 = vmatpush1.msra.mxu0 0.0
        %537 = vmatprep.subr.mxu0 0.0
        %538 = vmatpush1.msra.mxu0 0.0
        %539 = vmatprep.subr.mxu0 0.0
        %540 = vmatpush1.msra.mxu0 0.0
        %541 = vmatprep.subr.mxu0 0.0
        %542 = vmatpush1.msra.mxu0 0.0
        %543 = vmatprep.subr.mxu0 0.0
        %544 = vmatpush1.msra.mxu0 0.0
        %545 = vmatprep.subr.mxu0 0.0
        %546 = vmatpush1.msra.mxu0 0.0
        %547 = vmatprep.subr.mxu0 0.0
        %548 = vmatpush1.msra.mxu0 0.0
        %549 = vmatprep.subr.mxu0 0.0
        %550 = vmatpush1.msra.mxu0 0.0
        %551 = vmatprep.subr.mxu0 0.0
        %552 = vmatpush1.msra.mxu0 0.0
        %553 = vmatprep.subr.mxu0 0.0
        %554 = vmatpush1.msra.mxu0 0.0
        %555 = vmatprep.subr.mxu0 0.0
        %556 = vmatpush1.msra.mxu0 0.0
        %557 = vmatprep.mubr.f32.mxu0 0.0
        %558 = vmatmul.mubr.f32.gmra.mrb[0].mxu0 %v482
        %v559 = vpop.f32.mrb[0].mxu0
        %v560 = vadd.f32 %v467, %v559
        %v561 = vpop.f32.mrb[0].mxu0
        %562 = vmatprep.mubr.f32.mxu0 0.0
        %563 = vmatmul.mubr.f32.gmra.mrb[0].mxu0 %v485
        %v564 = vpop.f32.mrb[0].mxu0
        %v565 = vadd.f32 %v471, %v564
        %v566 = vpop.f32.mrb[0].mxu0
        %567 = vmatprep.mubr.f32.mxu0 0.0
        %568 = vmatmul.mubr.f32.gmra.mrb[0].mxu0 %v488
        %v569 = vpop.f32.mrb[0].mxu0
        %v570 = vadd.f32 %v475, %v569
        %v571 = vpop.f32.mrb[0].mxu0
        %572 = vmatprep.mubr.f32.mxu0 0.0
        %573 = vmatmul.mubr.f32.gmra.mrb[0].mxu0 %v491
        %v574 = vpop.f32.mrb[0].mxu0
        %v575 = vadd.f32 %v479, %v574
        %v576 = vpop.f32.mrb[0].mxu0
        %577 = vdwg.mxu0
        %578 = vxpose.xlu0.b32.start [1/16] %v456, 128
        %579 = vxpose.xlu0.b32.cont [2/16] %v457, 128
        %580 = vxpose.xlu0.b32.cont [3/16] %v458, 128
        %581 = vxpose.xlu0.b32.cont [4/16] %v459, 128
        %582 = vxpose.xlu0.b32.cont [5/16] 0.0, 128
        %583 = vxpose.xlu0.b32.cont [6/16] 0.0, 128
        %584 = vxpose.xlu0.b32.cont [7/16] 0.0, 128
        %585 = vxpose.xlu0.b32.cont [8/16] 0.0, 128
        %586 = vxpose.xlu0.b32.cont [9/16] 0.0, 128
        %587 = vxpose.xlu0.b32.cont [10/16] 0.0, 128
        %588 = vxpose.xlu0.b32.cont [11/16] 0.0, 128
        %589 = vxpose.xlu0.b32.cont [12/16] 0.0, 128
        %590 = vxpose.xlu0.b32.cont [13/16] 0.0, 128
        %591 = vxpose.xlu0.b32.cont [14/16] 0.0, 128
        %592 = vxpose.xlu0.b32.cont [15/16] 0.0, 128
        %593 = vxpose.xlu0.b32.end [16/16] 0.0, 128
        %v594 = vpop.trf.xlu0
        %v595 = vpop.trf.xlu0
        %v596 = vpop.trf.xlu0
        %v597 = vpop.trf.xlu0
        %v598 = vpop.trf.xlu0
        %v599 = vpop.trf.xlu0
        %v600 = vpop.trf.xlu0
        %v601 = vpop.trf.xlu0
        %v602 = vpop.trf.xlu0
        %v603 = vpop.trf.xlu0
        %v604 = vpop.trf.xlu0
        %v605 = vpop.trf.xlu0
        %v606 = vpop.trf.xlu0
        %v607 = vpop.trf.xlu0
        %v608 = vpop.trf.xlu0
        %v609 = vpop.trf.xlu0
        %v611 = vsel %vm236, %v594, 0
        %v614 = vsel %vm236, %v595, 0
        %v617 = vsel %vm236, %v596, 0
        %v620 = vsel %vm236, %v597, 0
        %v623 = vsel %vm236, %v598, 0
        %v626 = vsel %vm236, %v599, 0
        %v629 = vsel %vm236, %v600, 0
        %v632 = vsel %vm236, %v601, 0
        %v635 = vsel %vm236, %v602, 0
        %v638 = vsel %vm236, %v603, 0
        %v641 = vsel %vm236, %v604, 0
        %v644 = vsel %vm236, %v605, 0
        %v647 = vsel %vm236, %v606, 0
        %v650 = vsel %vm236, %v607, 0
        %v653 = vsel %vm236, %v608, 0
        %v656 = vsel %vm236, %v609, 0
        %658 = vmatprep.subr.mxu0 0.0
        %659 = vmatpush1.msra.mxu0 %v560
        %660 = vmatprep.subr.mxu0 0.0
        %661 = vmatpush1.msra.mxu0 %v565
        %662 = vmatprep.subr.mxu0 0.0
        %663 = vmatpush1.msra.mxu0 %v570
        %664 = vmatprep.subr.mxu0 0.0
        %665 = vmatpush1.msra.mxu0 %v575
        %666 = vmatprep.subr.mxu0 0.0
        %667 = vmatpush1.msra.mxu0 0.0
        %668 = vmatprep.subr.mxu0 0.0
        %669 = vmatpush1.msra.mxu0 0.0
        %670 = vmatprep.subr.mxu0 0.0
        %671 = vmatpush1.msra.mxu0 0.0
        %672 = vmatprep.subr.mxu0 0.0
        %673 = vmatpush1.msra.mxu0 0.0
        %674 = vmatprep.subr.mxu0 0.0
        %675 = vmatpush1.msra.mxu0 0.0
        %676 = vmatprep.subr.mxu0 0.0
        %677 = vmatpush1.msra.mxu0 0.0
        %678 = vmatprep.subr.mxu0 0.0
        %679 = vmatpush1.msra.mxu0 0.0
        %680 = vmatprep.subr.mxu0 0.0
        %681 = vmatpush1.msra.mxu0 0.0
        %682 = vmatprep.subr.mxu0 0.0
        %683 = vmatpush1.msra.mxu0 0.0
        %684 = vmatprep.subr.mxu0 0.0
        %685 = vmatpush1.msra.mxu0 0.0
        %686 = vmatprep.subr.mxu0 0.0
        %687 = vmatpush1.msra.mxu0 0.0
        %688 = vmatprep.subr.mxu0 0.0
        %689 = vmatpush1.msra.mxu0 0.0
        %690 = vmatprep.subr.mxu0 0.0
        %691 = vmatpush1.msra.mxu0 0.0
        %692 = vmatprep.subr.mxu0 0.0
        %693 = vmatpush1.msra.mxu0 0.0
        %694 = vmatprep.subr.mxu0 0.0
        %695 = vmatpush1.msra.mxu0 0.0
        %696 = vmatprep.subr.mxu0 0.0
        %697 = vmatpush1.msra.mxu0 0.0
        %698 = vmatprep.subr.mxu0 0.0
        %699 = vmatpush1.msra.mxu0 0.0
        %700 = vmatprep.subr.mxu0 0.0
        %701 = vmatpush1.msra.mxu0 0.0
        %702 = vmatprep.subr.mxu0 0.0
        %703 = vmatpush1.msra.mxu0 0.0
        %704 = vmatprep.subr.mxu0 0.0
        %705 = vmatpush1.msra.mxu0 0.0
        %706 = vmatprep.subr.mxu0 0.0
        %707 = vmatpush1.msra.mxu0 0.0
        %708 = vmatprep.subr.mxu0 0.0
        %709 = vmatpush1.msra.mxu0 0.0
        %710 = vmatprep.subr.mxu0 0.0
        %711 = vmatpush1.msra.mxu0 0.0
        %712 = vmatprep.subr.mxu0 0.0
        %713 = vmatpush1.msra.mxu0 0.0
        %714 = vmatprep.subr.mxu0 0.0
        %715 = vmatpush1.msra.mxu0 0.0
        %716 = vmatprep.subr.mxu0 0.0
        %717 = vmatpush1.msra.mxu0 0.0
        %718 = vmatprep.subr.mxu0 0.0
        %719 = vmatpush1.msra.mxu0 0.0
        %720 = vmatprep.subr.mxu0 0.0
        %721 = vmatpush1.msra.mxu0 0.0
        %722 = vmatprep.mubr.f32.mxu0 0.0
        %723 = vmatmul.mubr.f32.gmra.mrb[0].mxu0 %v611
        %v724 = vpop.f32.mrb[0].mxu0
        %v725 = vadd.f32 0.0, %v724
        %v726 = vpop.f32.mrb[0].mxu0
        %727 = vmatprep.mubr.f32.mxu0 0.0
        %728 = vmatmul.mubr.f32.gmra.mrb[0].mxu0 %v614
        %v729 = vpop.f32.mrb[0].mxu0
        %v730 = vadd.f32 0.0, %v729
        %v731 = vpop.f32.mrb[0].mxu0
        %732 = vmatprep.mubr.f32.mxu0 0.0
        %733 = vmatmul.mubr.f32.gmra.mrb[0].mxu0 %v617
        %v734 = vpop.f32.mrb[0].mxu0
        %v735 = vadd.f32 0.0, %v734
        %v736 = vpop.f32.mrb[0].mxu0
        %737 = vmatprep.mubr.f32.mxu0 0.0
        %738 = vmatmul.mubr.f32.gmra.mrb[0].mxu0 %v620
        %v739 = vpop.f32.mrb[0].mxu0
        %v740 = vadd.f32 0.0, %v739
        %v741 = vpop.f32.mrb[0].mxu0
        %742 = vmatprep.mubr.f32.mxu0 0.0
        %743 = vmatmul.mubr.f32.gmra.mrb[0].mxu0 %v623
        %v744 = vpop.f32.mrb[0].mxu0
        %v745 = vadd.f32 0.0, %v744
        %v746 = vpop.f32.mrb[0].mxu0
        %747 = vmatprep.mubr.f32.mxu0 0.0
        %748 = vmatmul.mubr.f32.gmra.mrb[0].mxu0 %v626
        %v749 = vpop.f32.mrb[0].mxu0
        %v750 = vadd.f32 0.0, %v749
        %v751 = vpop.f32.mrb[0].mxu0
        %752 = vmatprep.mubr.f32.mxu0 0.0
        %753 = vmatmul.mubr.f32.gmra.mrb[0].mxu0 %v629
        %v754 = vpop.f32.mrb[0].mxu0
        %v755 = vadd.f32 0.0, %v754
        %v756 = vpop.f32.mrb[0].mxu0
        %757 = vmatprep.mubr.f32.mxu0 0.0
        %758 = vmatmul.mubr.f32.gmra.mrb[0].mxu0 %v632
        %v759 = vpop.f32.mrb[0].mxu0
        %v760 = vadd.f32 0.0, %v759
        %v761 = vpop.f32.mrb[0].mxu0
        %762 = vmatprep.mubr.f32.mxu0 0.0
        %763 = vmatmul.mubr.f32.gmra.mrb[0].mxu0 %v635
        %v764 = vpop.f32.mrb[0].mxu0
        %v765 = vadd.f32 0.0, %v764
        %v766 = vpop.f32.mrb[0].mxu0
        %767 = vmatprep.mubr.f32.mxu0 0.0
        %768 = vmatmul.mubr.f32.gmra.mrb[0].mxu0 %v638
        %v769 = vpop.f32.mrb[0].mxu0
        %v770 = vadd.f32 0.0, %v769
        %v771 = vpop.f32.mrb[0].mxu0
        %772 = vmatprep.mubr.f32.mxu0 0.0
        %773 = vmatmul.mubr.f32.gmra.mrb[0].mxu0 %v641
        %v774 = vpop.f32.mrb[0].mxu0
        %v775 = vadd.f32 0.0, %v774
        %v776 = vpop.f32.mrb[0].mxu0
        %777 = vmatprep.mubr.f32.mxu0 0.0
        %778 = vmatmul.mubr.f32.gmra.mrb[0].mxu0 %v644
        %v779 = vpop.f32.mrb[0].mxu0
        %v780 = vadd.f32 0.0, %v779
        %v781 = vpop.f32.mrb[0].mxu0
        %782 = vmatprep.mubr.f32.mxu0 0.0
        %783 = vmatmul.mubr.f32.gmra.mrb[0].mxu0 %v647
        %v784 = vpop.f32.mrb[0].mxu0
        %v785 = vadd.f32 0.0, %v784
        %v786 = vpop.f32.mrb[0].mxu0
        %787 = vmatprep.mubr.f32.mxu0 0.0
        %788 = vmatmul.mubr.f32.gmra.mrb[0].mxu0 %v650
        %v789 = vpop.f32.mrb[0].mxu0
        %v790 = vadd.f32 0.0, %v789
        %v791 = vpop.f32.mrb[0].mxu0
        %792 = vmatprep.mubr.f32.mxu0 0.0
        %793 = vmatmul.mubr.f32.gmra.mrb[0].mxu0 %v653
        %v794 = vpop.f32.mrb[0].mxu0
        %v795 = vadd.f32 0.0, %v794
        %v796 = vpop.f32.mrb[0].mxu0
        %797 = vmatprep.mubr.f32.mxu0 0.0
        %798 = vmatmul.mubr.f32.gmra.mrb[0].mxu0 %v656
        %v799 = vpop.f32.mrb[0].mxu0
        %v800 = vadd.f32 0.0, %v799
        %v801 = vpop.f32.mrb[0].mxu0
        %802 = vdwg.mxu0
        %803 = vmax.xlane.f32.xlu0 %v725
        %v804 = vpop.xlane.xlu0 %803
        %805 = vmax.xlane.f32.xlu0 %v730
        %v806 = vpop.xlane.xlu0 %805
        %807 = vmax.xlane.f32.xlu0 %v735
        %v808 = vpop.xlane.xlu0 %807
        %809 = vmax.xlane.f32.xlu0 %v740
        %v810 = vpop.xlane.xlu0 %809
        %811 = vmax.xlane.f32.xlu0 %v745
        %v812 = vpop.xlane.xlu0 %811
        %813 = vmax.xlane.f32.xlu0 %v750
        %v814 = vpop.xlane.xlu0 %813
        %815 = vmax.xlane.f32.xlu0 %v755
        %v816 = vpop.xlane.xlu0 %815
        %817 = vmax.xlane.f32.xlu0 %v760
        %v818 = vpop.xlane.xlu0 %817
        %819 = vmax.xlane.f32.xlu0 %v765
        %v820 = vpop.xlane.xlu0 %819
        %821 = vmax.xlane.f32.xlu0 %v770
        %v822 = vpop.xlane.xlu0 %821
        %823 = vmax.xlane.f32.xlu0 %v775
        %v824 = vpop.xlane.xlu0 %823
        %825 = vmax.xlane.f32.xlu0 %v780
        %v826 = vpop.xlane.xlu0 %825
        %827 = vmax.xlane.f32.xlu0 %v785
        %v828 = vpop.xlane.xlu0 %827
        %829 = vmax.xlane.f32.xlu0 %v790
        %v830 = vpop.xlane.xlu0 %829
        %831 = vmax.xlane.f32.xlu0 %v795
        %v832 = vpop.xlane.xlu0 %831
        %833 = vmax.xlane.f32.xlu0 %v800
        %v834 = vpop.xlane.xlu0 %833
        %v835 = vsub.f32 %v725, %v804
        %v836 = vsub.f32 %v730, %v806
        %v837 = vsub.f32 %v735, %v808
        %v838 = vsub.f32 %v740, %v810
        %v839 = vsub.f32 %v745, %v812
        %v840 = vsub.f32 %v750, %v814
        %v841 = vsub.f32 %v755, %v816
        %v842 = vsub.f32 %v760, %v818
        %v843 = vsub.f32 %v765, %v820
        %v844 = vsub.f32 %v770, %v822
        %v845 = vsub.f32 %v775, %v824
        %v846 = vsub.f32 %v780, %v826
        %v847 = vsub.f32 %v785, %v828
        %v848 = vsub.f32 %v790, %v830
        %v849 = vsub.f32 %v795, %v832
        %v850 = vsub.f32 %v800, %v834
        %v851 = vmul.f32 %v835, 1.442695
        %v852 = vpow.pop %v851
        %v853 = vmul.f32 %v836, 1.442695
        %v854 = vpow.pop %v853
        %v855 = vmul.f32 %v837, 1.442695
        %v856 = vpow.pop %v855
        %v857 = vmul.f32 %v838, 1.442695
        %v858 = vpow.pop %v857
        %v859 = vmul.f32 %v839, 1.442695
        %v860 = vpow.pop %v859
        %v861 = vmul.f32 %v840, 1.442695
        %v862 = vpow.pop %v861
        %v863 = vmul.f32 %v841, 1.442695
        %v864 = vpow.pop %v863
        %v865 = vmul.f32 %v842, 1.442695
        %v866 = vpow.pop %v865
        %v867 = vmul.f32 %v843, 1.442695
        %v868 = vpow.pop %v867
        %v869 = vmul.f32 %v844, 1.442695
        %v870 = vpow.pop %v869
        %v871 = vmul.f32 %v845, 1.442695
        %v872 = vpow.pop %v871
        %v873 = vmul.f32 %v846, 1.442695
        %v874 = vpow.pop %v873
        %v875 = vmul.f32 %v847, 1.442695
        %v876 = vpow.pop %v875
        %v877 = vmul.f32 %v848, 1.442695
        %v878 = vpow.pop %v877
        %v879 = vmul.f32 %v849, 1.442695
        %v880 = vpow.pop %v879
        %v881 = vmul.f32 %v850, 1.442695
        %v882 = vpow.pop %v881
        %883 = vmatprep.subr.mxu0 0.0
        %884 = vmatpush1.xpose.msra.mxu0 %v852
        %885 = vmatprep.subr.mxu0 0.0
        %886 = vmatpush1.xpose.msra.mxu0 %v854
        %887 = vmatprep.subr.mxu0 0.0
        %888 = vmatpush1.xpose.msra.mxu0 %v856
        %889 = vmatprep.subr.mxu0 0.0
        %890 = vmatpush1.xpose.msra.mxu0 %v858
        %891 = vmatprep.subr.mxu0 0.0
        %892 = vmatpush1.xpose.msra.mxu0 %v860
        %893 = vmatprep.subr.mxu0 0.0
        %894 = vmatpush1.xpose.msra.mxu0 %v862
        %895 = vmatprep.subr.mxu0 0.0
        %896 = vmatpush1.xpose.msra.mxu0 %v864
        %897 = vmatprep.subr.mxu0 0.0
        %898 = vmatpush1.xpose.msra.mxu0 %v866
        %899 = vmatprep.subr.mxu0 0.0
        %900 = vmatpush1.xpose.msra.mxu0 %v868
        %901 = vmatprep.subr.mxu0 0.0
        %902 = vmatpush1.xpose.msra.mxu0 %v870
        %903 = vmatprep.subr.mxu0 0.0
        %904 = vmatpush1.xpose.msra.mxu0 %v872
        %905 = vmatprep.subr.mxu0 0.0
        %906 = vmatpush1.xpose.msra.mxu0 %v874
        %907 = vmatprep.subr.mxu0 0.0
        %908 = vmatpush1.xpose.msra.mxu0 %v876
        %909 = vmatprep.subr.mxu0 0.0
        %910 = vmatpush1.xpose.msra.mxu0 %v878
        %911 = vmatprep.subr.mxu0 0.0
        %912 = vmatpush1.xpose.msra.mxu0 %v880
        %913 = vmatprep.subr.mxu0 0.0
        %914 = vmatpush1.xpose.msra.mxu0 %v882
        %915 = vmatprep.subr.mxu0 0.0
        %916 = vmatpush1.xpose.msra.mxu0 0.0
        %917 = vmatprep.subr.mxu0 0.0
        %918 = vmatpush1.xpose.msra.mxu0 0.0
        %919 = vmatprep.subr.mxu0 0.0
        %920 = vmatpush1.xpose.msra.mxu0 0.0
        %921 = vmatprep.subr.mxu0 0.0
        %922 = vmatpush1.xpose.msra.mxu0 0.0
        %923 = vmatprep.subr.mxu0 0.0
        %924 = vmatpush1.xpose.msra.mxu0 0.0
        %925 = vmatprep.subr.mxu0 0.0
        %926 = vmatpush1.xpose.msra.mxu0 0.0
        %927 = vmatprep.subr.mxu0 0.0
        %928 = vmatpush1.xpose.msra.mxu0 0.0
        %929 = vmatprep.subr.mxu0 0.0
        %930 = vmatpush1.xpose.msra.mxu0 0.0
        %931 = vmatprep.subr.mxu0 0.0
        %932 = vmatpush1.xpose.msra.mxu0 0.0
        %933 = vmatprep.subr.mxu0 0.0
        %934 = vmatpush1.xpose.msra.mxu0 0.0
        %935 = vmatprep.subr.mxu0 0.0
        %936 = vmatpush1.xpose.msra.mxu0 0.0
        %937 = vmatprep.subr.mxu0 0.0
        %938 = vmatpush1.xpose.msra.mxu0 0.0
        %939 = vmatprep.subr.mxu0 0.0
        %940 = vmatpush1.xpose.msra.mxu0 0.0
        %941 = vmatprep.subr.mxu0 0.0
        %942 = vmatpush1.xpose.msra.mxu0 0.0
        %943 = vmatprep.subr.mxu0 0.0
        %944 = vmatpush1.xpose.msra.mxu0 0.0
        %945 = vmatprep.subr.mxu0 0.0
        %946 = vmatpush1.xpose.msra.mxu0 0.0
        %947 = vmatprep.mubr.f32.mxu0 0.0
        %948 = vmatmul.mubr.f32.gmra.mrb[0].mxu0 1.0
        %v949 = vpop.f32.mrb[0].mxu0
        %v950 = vadd.f32 0.0, %v949
        %v951 = vpop.f32.mrb[0].mxu0
        %952 = vdwg.mxu0
        %v953 = vrcp.pop %v950
        %954 = vmatprep.subr.mxu0 0.0
        %955 = vmatpush1.msra.mxu0 %v852
        %956 = vmatprep.subr.mxu0 0.0
        %957 = vmatpush1.msra.mxu0 %v854
        %958 = vmatprep.subr.mxu0 0.0
        %959 = vmatpush1.msra.mxu0 %v856
        %960 = vmatprep.subr.mxu0 0.0
        %961 = vmatpush1.msra.mxu0 %v858
        %962 = vmatprep.subr.mxu0 0.0
        %963 = vmatpush1.msra.mxu0 %v860
        %964 = vmatprep.subr.mxu0 0.0
        %965 = vmatpush1.msra.mxu0 %v862
        %966 = vmatprep.subr.mxu0 0.0
        %967 = vmatpush1.msra.mxu0 %v864
        %968 = vmatprep.subr.mxu0 0.0
        %969 = vmatpush1.msra.mxu0 %v866
        %970 = vmatprep.subr.mxu0 0.0
        %971 = vmatpush1.msra.mxu0 %v868
        %972 = vmatprep.subr.mxu0 0.0
        %973 = vmatpush1.msra.mxu0 %v870
        %974 = vmatprep.subr.mxu0 0.0
        %975 = vmatpush1.msra.mxu0 %v872
        %976 = vmatprep.subr.mxu0 0.0
        %977 = vmatpush1.msra.mxu0 %v874
        %978 = vmatprep.subr.mxu0 0.0
        %979 = vmatpush1.msra.mxu0 %v876
        %980 = vmatprep.subr.mxu0 0.0
        %981 = vmatpush1.msra.mxu0 %v878
        %982 = vmatprep.subr.mxu0 0.0
        %983 = vmatpush1.msra.mxu0 %v880
        %984 = vmatprep.subr.mxu0 0.0
        %985 = vmatpush1.msra.mxu0 %v882
        %986 = vmatprep.subr.mxu0 0.0
        %987 = vmatpush1.msra.mxu0 0.0
        %988 = vmatprep.subr.mxu0 0.0
        %989 = vmatpush1.msra.mxu0 0.0
        %990 = vmatprep.subr.mxu0 0.0
        %991 = vmatpush1.msra.mxu0 0.0
        %992 = vmatprep.subr.mxu0 0.0
        %993 = vmatpush1.msra.mxu0 0.0
        %994 = vmatprep.subr.mxu0 0.0
        %995 = vmatpush1.msra.mxu0 0.0
        %996 = vmatprep.subr.mxu0 0.0
        %997 = vmatpush1.msra.mxu0 0.0
        %998 = vmatprep.subr.mxu0 0.0
        %999 = vmatpush1.msra.mxu0 0.0
        %1000 = vmatprep.subr.mxu0 0.0
        %1001 = vmatpush1.msra.mxu0 0.0
        %1002 = vmatprep.subr.mxu0 0.0
        %1003 = vmatpush1.msra.mxu0 0.0
        %1004 = vmatprep.subr.mxu0 0.0
        %1005 = vmatpush1.msra.mxu0 0.0
        %1006 = vmatprep.subr.mxu0 0.0
        %1007 = vmatpush1.msra.mxu0 0.0
        %1008 = vmatprep.subr.mxu0 0.0
        %1009 = vmatpush1.msra.mxu0 0.0
        %1010 = vmatprep.subr.mxu0 0.0
        %1011 = vmatpush1.msra.mxu0 0.0
        %1012 = vmatprep.subr.mxu0 0.0
        %1013 = vmatpush1.msra.mxu0 0.0
        %1014 = vmatprep.subr.mxu0 0.0
        %1015 = vmatpush1.msra.mxu0 0.0
        %1016 = vmatprep.subr.mxu0 0.0
        %1017 = vmatpush1.msra.mxu0 0.0
        %1018 = vmatprep.mubr.f32.mxu0 0.0
        %1019 = vmatmul.mubr.f32.gmra.mrb[0].mxu0 %v953
        %v1020 = vpop.f32.mrb[0].mxu0
        %v1021 = vadd.f32 1e-09, %v1020
        %v1022 = vpop.f32.mrb[0].mxu0
        %1023 = vdwg.mxu0
        %v1024 = vrcp.pop %v1021
        %v1025 = vlaneseq
        %v1026 = vshrl.u32 %v1025, 7
        %v1027 = vsub.s32 0, %v1026
        %v1028 = vrot.slane %v953, %v1027
        %v1029 = vmul.f32 %v560, %v1028
        %v1030 = vmul.f32 %v565, %v1028
        %v1031 = vmul.f32 %v570, %v1028
        %v1032 = vmul.f32 %v575, %v1028
        %1033 = vmatprep.subr.mxu0 0.0
        %1034 = vmatpush1.msra.mxu0 %v852
        %1035 = vmatprep.subr.mxu0 0.0
        %1036 = vmatpush1.msra.mxu0 %v854
        %1037 = vmatprep.subr.mxu0 0.0
        %1038 = vmatpush1.msra.mxu0 %v856
        %1039 = vmatprep.subr.mxu0 0.0
        %1040 = vmatpush1.msra.mxu0 %v858
        %1041 = vmatprep.subr.mxu0 0.0
        %1042 = vmatpush1.msra.mxu0 %v860
        %1043 = vmatprep.subr.mxu0 0.0
        %1044 = vmatpush1.msra.mxu0 %v862
        %1045 = vmatprep.subr.mxu0 0.0
        %1046 = vmatpush1.msra.mxu0 %v864
        %1047 = vmatprep.subr.mxu0 0.0
        %1048 = vmatpush1.msra.mxu0 %v866
        %1049 = vmatprep.subr.mxu0 0.0
        %1050 = vmatpush1.msra.mxu0 %v868
        %1051 = vmatprep.subr.mxu0 0.0
        %1052 = vmatpush1.msra.mxu0 %v870
        %1053 = vmatprep.subr.mxu0 0.0
        %1054 = vmatpush1.msra.mxu0 %v872
        %1055 = vmatprep.subr.mxu0 0.0
        %1056 = vmatpush1.msra.mxu0 %v874
        %1057 = vmatprep.subr.mxu0 0.0
        %1058 = vmatpush1.msra.mxu0 %v876
        %1059 = vmatprep.subr.mxu0 0.0
        %1060 = vmatpush1.msra.mxu0 %v878
        %1061 = vmatprep.subr.mxu0 0.0
        %1062 = vmatpush1.msra.mxu0 %v880
        %1063 = vmatprep.subr.mxu0 0.0
        %1064 = vmatpush1.msra.mxu0 %v882
        %1065 = vmatprep.subr.mxu0 0.0
        %1066 = vmatpush1.msra.mxu0 0.0
        %1067 = vmatprep.subr.mxu0 0.0
        %1068 = vmatpush1.msra.mxu0 0.0
        %1069 = vmatprep.subr.mxu0 0.0
        %1070 = vmatpush1.msra.mxu0 0.0
        %1071 = vmatprep.subr.mxu0 0.0
        %1072 = vmatpush1.msra.mxu0 0.0
        %1073 = vmatprep.subr.mxu0 0.0
        %1074 = vmatpush1.msra.mxu0 0.0
        %1075 = vmatprep.subr.mxu0 0.0
        %1076 = vmatpush1.msra.mxu0 0.0
        %1077 = vmatprep.subr.mxu0 0.0
        %1078 = vmatpush1.msra.mxu0 0.0
        %1079 = vmatprep.subr.mxu0 0.0
        %1080 = vmatpush1.msra.mxu0 0.0
        %1081 = vmatprep.subr.mxu0 0.0
        %1082 = vmatpush1.msra.mxu0 0.0
        %1083 = vmatprep.subr.mxu0 0.0
        %1084 = vmatpush1.msra.mxu0 0.0
        %1085 = vmatprep.subr.mxu0 0.0
        %1086 = vmatpush1.msra.mxu0 0.0
        %1087 = vmatprep.subr.mxu0 0.0
        %1088 = vmatpush1.msra.mxu0 0.0
        %1089 = vmatprep.subr.mxu0 0.0
        %1090 = vmatpush1.msra.mxu0 0.0
        %1091 = vmatprep.subr.mxu0 0.0
        %1092 = vmatpush1.msra.mxu0 0.0
        %1093 = vmatprep.subr.mxu0 0.0
        %1094 = vmatpush1.msra.mxu0 0.0
        %1095 = vmatprep.subr.mxu0 0.0
        %1096 = vmatpush1.msra.mxu0 0.0
        %1097 = vmatprep.mubr.f32.mxu0 0.0
        %1098 = vmatmul.mubr.f32.gmra.mrb[0].mxu0 %v1029
        %v1099 = vpop.f32.mrb[0].mxu0
        %v1100 = vadd.f32 0.0, %v1099
        %v1101 = vpop.f32.mrb[0].mxu0
        %1102 = vmatprep.mubr.f32.mxu0 0.0
        %1103 = vmatmul.mubr.f32.gmra.mrb[0].mxu0 %v1030
        %v1104 = vpop.f32.mrb[0].mxu0
        %v1105 = vadd.f32 0.0, %v1104
        %v1106 = vpop.f32.mrb[0].mxu0
        %1107 = vmatprep.mubr.f32.mxu0 0.0
        %1108 = vmatmul.mubr.f32.gmra.mrb[0].mxu0 %v1031
        %v1109 = vpop.f32.mrb[0].mxu0
        %v1110 = vadd.f32 0.0, %v1109
        %v1111 = vpop.f32.mrb[0].mxu0
        %1112 = vmatprep.mubr.f32.mxu0 0.0
        %1113 = vmatmul.mubr.f32.gmra.mrb[0].mxu0 %v1032
        %v1114 = vpop.f32.mrb[0].mxu0
        %v1115 = vadd.f32 0.0, %v1114
        %v1116 = vpop.f32.mrb[0].mxu0
        %1117 = vdwg.mxu0
        %v1118 = vlaneseq
        %v1119 = vshrl.u32 %v1118, 7
        %v1120 = vsub.s32 0, %v1119
        %v1121 = vrot.slane %v1024, %v1120
        %v1122 = vmul.f32 %v1100, %v1121
        %v1123 = vmul.f32 %v1105, %v1121
        %v1124 = vmul.f32 %v1110, %v1121
        %v1125 = vmul.f32 %v1115, %v1121
        %v1126 = vsub.f32 %v456, %v1122
        %v1127 = vsub.f32 %v457, %v1123
        %v1128 = vsub.f32 %v458, %v1124
        %v1129 = vsub.f32 %v459, %v1125
        %s1130 = scalar_lea.vmem [#allocation5], 96
        %v1131 = vld [vmem:[%s1130] sm:$0xff]
        %v1132 = vld [vmem:[%s1130 + $0x8] sm:$0xff]
        %v1133 = vld [vmem:[%s1130 + $0x10] sm:$0xff]
        %v1134 = vld [vmem:[%s1130 + $0x18] sm:$0xff]
        %1135 = vset.pattern.permute.xlu0 3
        %1136 = vperm.xlu0 %1135, %v212
        %v1137 = vpop.permute.xlu0 %1136
        %1139 = vset.pattern.permute.xlu0 3
        %1140 = vperm.xlu0 %1139, %v213
        %v1141 = vpop.permute.xlu0 %1140
        %1143 = vset.pattern.permute.xlu0 3
        %1144 = vperm.xlu0 %1143, %v214
        %v1145 = vpop.permute.xlu0 %1144
        %1147 = vset.pattern.permute.xlu0 3
        %1148 = vperm.xlu0 %1147, %v215
        %v1149 = vpop.permute.xlu0 %1148
        %v1152 = vsel %vm236, %v1131, 0
        %v1155 = vsel %vm236, %v1132, 0
        %v1158 = vsel %vm236, %v1133, 0
        %v1161 = vsel %vm236, %v1134, 0
        %1163 = vmatprep.subr.mxu0 0.0
        %1164 = vmatpush1.msra.mxu0 %v1126
        %1165 = vmatprep.subr.mxu0 0.0
        %1166 = vmatpush1.msra.mxu0 %v1127
        %1167 = vmatprep.subr.mxu0 0.0
        %1168 = vmatpush1.msra.mxu0 %v1128
        %1169 = vmatprep.subr.mxu0 0.0
        %1170 = vmatpush1.msra.mxu0 %v1129
        %1171 = vmatprep.subr.mxu0 0.0
        %1172 = vmatpush1.msra.mxu0 0.0
        %1173 = vmatprep.subr.mxu0 0.0
        %1174 = vmatpush1.msra.mxu0 0.0
        %1175 = vmatprep.subr.mxu0 0.0
        %1176 = vmatpush1.msra.mxu0 0.0
        %1177 = vmatprep.subr.mxu0 0.0
        %1178 = vmatpush1.msra.mxu0 0.0
        %1179 = vmatprep.subr.mxu0 0.0
        %1180 = vmatpush1.msra.mxu0 0.0
        %1181 = vmatprep.subr.mxu0 0.0
        %1182 = vmatpush1.msra.mxu0 0.0
        %1183 = vmatprep.subr.mxu0 0.0
        %1184 = vmatpush1.msra.mxu0 0.0
        %1185 = vmatprep.subr.mxu0 0.0
        %1186 = vmatpush1.msra.mxu0 0.0
        %1187 = vmatprep.subr.mxu0 0.0
        %1188 = vmatpush1.msra.mxu0 0.0
        %1189 = vmatprep.subr.mxu0 0.0
        %1190 = vmatpush1.msra.mxu0 0.0
        %1191 = vmatprep.subr.mxu0 0.0
        %1192 = vmatpush1.msra.mxu0 0.0
        %1193 = vmatprep.subr.mxu0 0.0
        %1194 = vmatpush1.msra.mxu0 0.0
        %1195 = vmatprep.subr.mxu0 0.0
        %1196 = vmatpush1.msra.mxu0 0.0
        %1197 = vmatprep.subr.mxu0 0.0
        %1198 = vmatpush1.msra.mxu0 0.0
        %1199 = vmatprep.subr.mxu0 0.0
        %1200 = vmatpush1.msra.mxu0 0.0
        %1201 = vmatprep.subr.mxu0 0.0
        %1202 = vmatpush1.msra.mxu0 0.0
        %1203 = vmatprep.subr.mxu0 0.0
        %1204 = vmatpush1.msra.mxu0 0.0
        %1205 = vmatprep.subr.mxu0 0.0
        %1206 = vmatpush1.msra.mxu0 0.0
        %1207 = vmatprep.subr.mxu0 0.0
        %1208 = vmatpush1.msra.mxu0 0.0
        %1209 = vmatprep.subr.mxu0 0.0
        %1210 = vmatpush1.msra.mxu0 0.0
        %1211 = vmatprep.subr.mxu0 0.0
        %1212 = vmatpush1.msra.mxu0 0.0
        %1213 = vmatprep.subr.mxu0 0.0
        %1214 = vmatpush1.msra.mxu0 0.0
        %1215 = vmatprep.subr.mxu0 0.0
        %1216 = vmatpush1.msra.mxu0 0.0
        %1217 = vmatprep.subr.mxu0 0.0
        %1218 = vmatpush1.msra.mxu0 0.0
        %1219 = vmatprep.subr.mxu0 0.0
        %1220 = vmatpush1.msra.mxu0 0.0
        %1221 = vmatprep.subr.mxu0 0.0
        %1222 = vmatpush1.msra.mxu0 0.0
        %1223 = vmatprep.subr.mxu0 0.0
        %1224 = vmatpush1.msra.mxu0 0.0
        %1225 = vmatprep.subr.mxu0 0.0
        %1226 = vmatpush1.msra.mxu0 0.0
        %1227 = vmatprep.mubr.f32.mxu0 0.0
        %1228 = vmatmul.mubr.f32.gmra.mrb[0].mxu0 %v1152
        %v1229 = vpop.f32.mrb[0].mxu0
        %v1230 = vadd.f32 %v1137, %v1229
        %v1231 = vpop.f32.mrb[0].mxu0
        %1232 = vmatprep.mubr.f32.mxu0 0.0
        %1233 = vmatmul.mubr.f32.gmra.mrb[0].mxu0 %v1155
        %v1234 = vpop.f32.mrb[0].mxu0
        %v1235 = vadd.f32 %v1141, %v1234
        %v1236 = vpop.f32.mrb[0].mxu0
        %1237 = vmatprep.mubr.f32.mxu0 0.0
        %1238 = vmatmul.mubr.f32.gmra.mrb[0].mxu0 %v1158
        %v1239 = vpop.f32.mrb[0].mxu0
        %v1240 = vadd.f32 %v1145, %v1239
        %v1241 = vpop.f32.mrb[0].mxu0
        %1242 = vmatprep.mubr.f32.mxu0 0.0
        %1243 = vmatmul.mubr.f32.gmra.mrb[0].mxu0 %v1161
        %v1244 = vpop.f32.mrb[0].mxu0
        %v1245 = vadd.f32 %v1149, %v1244
        %v1246 = vpop.f32.mrb[0].mxu0
        %1247 = vdwg.mxu0
        %v1248 = vmax.f32 %v1230, 0.0
        %v1249 = vmax.f32 %v1235, 0.0
        %v1250 = vmax.f32 %v1240, 0.0
        %v1251 = vmax.f32 %v1245, 0.0
        %1252 = vset.pattern.permute.xlu0 4
        %1253 = vperm.xlu0 %1252, %v212
        %v1254 = vpop.permute.xlu0 %1253
        %1256 = vset.pattern.permute.xlu0 4
        %1257 = vperm.xlu0 %1256, %v213
        %v1258 = vpop.permute.xlu0 %1257
        %1260 = vset.pattern.permute.xlu0 4
        %1261 = vperm.xlu0 %1260, %v214
        %v1262 = vpop.permute.xlu0 %1261
        %1264 = vset.pattern.permute.xlu0 4
        %1265 = vperm.xlu0 %1264, %v215
        %v1266 = vpop.permute.xlu0 %1265
        %v1268 = vmul.f32 %v1254, %v1248
        %v1269 = vmul.f32 %v1258, %v1249
        %v1270 = vmul.f32 %v1262, %v1250
        %v1271 = vmul.f32 %v1266, %v1251
        %v1272 = vadd.f32 %v456, %v1268
        %v1273 = vadd.f32 %v457, %v1269
        %v1274 = vadd.f32 %v458, %v1270
        %v1275 = vadd.f32 %v459, %v1271
        %1276 = vset.pattern.permute.xlu0 5
        %1277 = vperm.xlu0 %1276, %v212
        %v1278 = vpop.permute.xlu0 %1277
        %1280 = vset.pattern.permute.xlu0 5
        %1281 = vperm.xlu0 %1280, %v213
        %v1282 = vpop.permute.xlu0 %1281
        %1284 = vset.pattern.permute.xlu0 5
        %1285 = vperm.xlu0 %1284, %v214
        %v1286 = vpop.permute.xlu0 %1285
        %1288 = vset.pattern.permute.xlu0 5
        %1289 = vperm.xlu0 %1288, %v215
        %v1290 = vpop.permute.xlu0 %1289
        %v1292 = vadd.f32 %v1272, %v1278
        %v1293 = vadd.f32 %v1273, %v1282
        %v1294 = vadd.f32 %v1274, %v1286
        %v1295 = vadd.f32 %v1275, %v1290
        %1296 = vst [vmem:[%s203] sm:$0xff] %v1292
        %1297 = vst [vmem:[%s203 + $0x8] sm:$0xff] %v1293
        %1298 = vst [vmem:[%s203 + $0x10] sm:$0xff] %v1294
        %1299 = vst [vmem:[%s203 + $0x18] sm:$0xff] %v1295
        %v1300 = vld [vmem:[%s2] sm:$0xff]
        %v1301 = vld [vmem:[%s2 + $0x8] sm:$0xff]
        %v1302 = vld [vmem:[%s2 + $0x10] sm:$0xff]
        %v1303 = vld [vmem:[%s2 + $0x18] sm:$0xff]
        %s1304 = scalar_lea.vmem [#allocation5], 128
        %v1305 = vld [vmem:[%s1304] sm:$0xff]
        %v1306 = vld [vmem:[%s1304 + $0x8] sm:$0xff]
        %v1307 = vld [vmem:[%s1304 + $0x10] sm:$0xff]
        %v1308 = vld [vmem:[%s1304 + $0x18] sm:$0xff]
        %1310 = vset.pattern.permute.xlu0 6
        %1311 = vperm.xlu0 %1310, %v1300
        %v1312 = vpop.permute.xlu0 %1311
        %1315 = vset.pattern.permute.xlu0 6
        %1316 = vperm.xlu0 %1315, %v1301
        %v1317 = vpop.permute.xlu0 %1316
        %1320 = vset.pattern.permute.xlu0 6
        %1321 = vperm.xlu0 %1320, %v1302
        %v1322 = vpop.permute.xlu0 %1321
        %1325 = vset.pattern.permute.xlu0 6
        %1326 = vperm.xlu0 %1325, %v1303
        %v1327 = vpop.permute.xlu0 %1326
        %v1330 = vsel %vm236, %v1305, 0
        %v1333 = vsel %vm236, %v1306, 0
        %v1336 = vsel %vm236, %v1307, 0
        %v1339 = vsel %vm236, %v1308, 0
        %1341 = vmatprep.subr.mxu0 0.0
        %1342 = vmatpush1.msra.mxu0 %v1292
        %1343 = vmatprep.subr.mxu0 0.0
        %1344 = vmatpush1.msra.mxu0 %v1293
        %1345 = vmatprep.subr.mxu0 0.0
        %1346 = vmatpush1.msra.mxu0 %v1294
        %1347 = vmatprep.subr.mxu0 0.0
        %1348 = vmatpush1.msra.mxu0 %v1295
        %1349 = vmatprep.subr.mxu0 0.0
        %1350 = vmatpush1.msra.mxu0 0.0
        %1351 = vmatprep.subr.mxu0 0.0
        %1352 = vmatpush1.msra.mxu0 0.0
        %1353 = vmatprep.subr.mxu0 0.0
        %1354 = vmatpush1.msra.mxu0 0.0
        %1355 = vmatprep.subr.mxu0 0.0
        %1356 = vmatpush1.msra.mxu0 0.0
        %1357 = vmatprep.subr.mxu0 0.0
        %1358 = vmatpush1.msra.mxu0 0.0
        %1359 = vmatprep.subr.mxu0 0.0
        %1360 = vmatpush1.msra.mxu0 0.0
        %1361 = vmatprep.subr.mxu0 0.0
        %1362 = vmatpush1.msra.mxu0 0.0
        %1363 = vmatprep.subr.mxu0 0.0
        %1364 = vmatpush1.msra.mxu0 0.0
        %1365 = vmatprep.subr.mxu0 0.0
        %1366 = vmatpush1.msra.mxu0 0.0
        %1367 = vmatprep.subr.mxu0 0.0
        %1368 = vmatpush1.msra.mxu0 0.0
        %1369 = vmatprep.subr.mxu0 0.0
        %1370 = vmatpush1.msra.mxu0 0.0
        %1371 = vmatprep.subr.mxu0 0.0
        %1372 = vmatpush1.msra.mxu0 0.0
        %1373 = vmatprep.subr.mxu0 0.0
        %1374 = vmatpush1.msra.mxu0 0.0
        %1375 = vmatprep.subr.mxu0 0.0
        %1376 = vmatpush1.msra.mxu0 0.0
        %1377 = vmatprep.subr.mxu0 0.0
        %1378 = vmatpush1.msra.mxu0 0.0
        %1379 = vmatprep.subr.mxu0 0.0
        %1380 = vmatpush1.msra.mxu0 0.0
        %1381 = vmatprep.subr.mxu0 0.0
        %1382 = vmatpush1.msra.mxu0 0.0
        %1383 = vmatprep.subr.mxu0 0.0
        %1384 = vmatpush1.msra.mxu0 0.0
        %1385 = vmatprep.subr.mxu0 0.0
        %1386 = vmatpush1.msra.mxu0 0.0
        %1387 = vmatprep.subr.mxu0 0.0
        %1388 = vmatpush1.msra.mxu0 0.0
        %1389 = vmatprep.subr.mxu0 0.0
        %1390 = vmatpush1.msra.mxu0 0.0
        %1391 = vmatprep.subr.mxu0 0.0
        %1392 = vmatpush1.msra.mxu0 0.0
        %1393 = vmatprep.subr.mxu0 0.0
        %1394 = vmatpush1.msra.mxu0 0.0
        %1395 = vmatprep.subr.mxu0 0.0
        %1396 = vmatpush1.msra.mxu0 0.0
        %1397 = vmatprep.subr.mxu0 0.0
        %1398 = vmatpush1.msra.mxu0 0.0
        %1399 = vmatprep.subr.mxu0 0.0
        %1400 = vmatpush1.msra.mxu0 0.0
        %1401 = vmatprep.subr.mxu0 0.0
        %1402 = vmatpush1.msra.mxu0 0.0
        %1403 = vmatprep.subr.mxu0 0.0
        %1404 = vmatpush1.msra.mxu0 0.0
        %1405 = vmatprep.mubr.f32.mxu0 0.0
        %1406 = vmatmul.mubr.f32.gmra.mrb[0].mxu0 %v1330
        %v1407 = vpop.f32.mrb[0].mxu0
        %v1408 = vadd.f32 %v1312, %v1407
        %v1409 = vpop.f32.mrb[0].mxu0
        %1410 = vmatprep.mubr.f32.mxu0 0.0
        %1411 = vmatmul.mubr.f32.gmra.mrb[0].mxu0 %v1333
        %v1412 = vpop.f32.mrb[0].mxu0
        %v1413 = vadd.f32 %v1317, %v1412
        %v1414 = vpop.f32.mrb[0].mxu0
        %1415 = vmatprep.mubr.f32.mxu0 0.0
        %1416 = vmatmul.mubr.f32.gmra.mrb[0].mxu0 %v1336
        %v1417 = vpop.f32.mrb[0].mxu0
        %v1418 = vadd.f32 %v1322, %v1417
        %v1419 = vpop.f32.mrb[0].mxu0
        %1420 = vmatprep.mubr.f32.mxu0 0.0
        %1421 = vmatmul.mubr.f32.gmra.mrb[0].mxu0 %v1339
        %v1422 = vpop.f32.mrb[0].mxu0
        %v1423 = vadd.f32 %v1327, %v1422
        %v1424 = vpop.f32.mrb[0].mxu0
        %1425 = vdwg.mxu0
        %1426 = vxpose.xlu0.b32.start [1/16] %v1292, 128
        %1427 = vxpose.xlu0.b32.cont [2/16] %v1293, 128
        %1428 = vxpose.xlu0.b32.cont [3/16] %v1294, 128
        %1429 = vxpose.xlu0.b32.cont [4/16] %v1295, 128
        %1430 = vxpose.xlu0.b32.cont [5/16] 0.0, 128
        %1431 = vxpose.xlu0.b32.cont [6/16] 0.0, 128
        %1432 = vxpose.xlu0.b32.cont [7/16] 0.0, 128
        %1433 = vxpose.xlu0.b32.cont [8/16] 0.0, 128
        %1434 = vxpose.xlu0.b32.cont [9/16] 0.0, 128
        %1435 = vxpose.xlu0.b32.cont [10/16] 0.0, 128
        %1436 = vxpose.xlu0.b32.cont [11/16] 0.0, 128
        %1437 = vxpose.xlu0.b32.cont [12/16] 0.0, 128
        %1438 = vxpose.xlu0.b32.cont [13/16] 0.0, 128
        %1439 = vxpose.xlu0.b32.cont [14/16] 0.0, 128
        %1440 = vxpose.xlu0.b32.cont [15/16] 0.0, 128
        %1441 = vxpose.xlu0.b32.end [16/16] 0.0, 128
        %v1442 = vpop.trf.xlu0
        %v1443 = vpop.trf.xlu0
        %v1444 = vpop.trf.xlu0
        %v1445 = vpop.trf.xlu0
        %v1446 = vpop.trf.xlu0
        %v1447 = vpop.trf.xlu0
        %v1448 = vpop.trf.xlu0
        %v1449 = vpop.trf.xlu0
        %v1450 = vpop.trf.xlu0
        %v1451 = vpop.trf.xlu0
        %v1452 = vpop.trf.xlu0
        %v1453 = vpop.trf.xlu0
        %v1454 = vpop.trf.xlu0
        %v1455 = vpop.trf.xlu0
        %v1456 = vpop.trf.xlu0
        %v1457 = vpop.trf.xlu0
        %v1459 = vsel %vm236, %v1442, 0
        %v1462 = vsel %vm236, %v1443, 0
        %v1465 = vsel %vm236, %v1444, 0
        %v1468 = vsel %vm236, %v1445, 0
        %v1471 = vsel %vm236, %v1446, 0
        %v1474 = vsel %vm236, %v1447, 0
        %v1477 = vsel %vm236, %v1448, 0
        %v1480 = vsel %vm236, %v1449, 0
        %v1483 = vsel %vm236, %v1450, 0
        %v1486 = vsel %vm236, %v1451, 0
        %v1489 = vsel %vm236, %v1452, 0
        %v1492 = vsel %vm236, %v1453, 0
        %v1495 = vsel %vm236, %v1454, 0
        %v1498 = vsel %vm236, %v1455, 0
        %v1501 = vsel %vm236, %v1456, 0
        %v1504 = vsel %vm236, %v1457, 0
        %1506 = vmatprep.subr.mxu0 0.0
        %1507 = vmatpush1.msra.mxu0 %v1408
        %1508 = vmatprep.subr.mxu0 0.0
        %1509 = vmatpush1.msra.mxu0 %v1413
        %1510 = vmatprep.subr.mxu0 0.0
        %1511 = vmatpush1.msra.mxu0 %v1418
        %1512 = vmatprep.subr.mxu0 0.0
        %1513 = vmatpush1.msra.mxu0 %v1423
        %1514 = vmatprep.subr.mxu0 0.0
        %1515 = vmatpush1.msra.mxu0 0.0
        %1516 = vmatprep.subr.mxu0 0.0
        %1517 = vmatpush1.msra.mxu0 0.0
        %1518 = vmatprep.subr.mxu0 0.0
        %1519 = vmatpush1.msra.mxu0 0.0
        %1520 = vmatprep.subr.mxu0 0.0
        %1521 = vmatpush1.msra.mxu0 0.0
        %1522 = vmatprep.subr.mxu0 0.0
        %1523 = vmatpush1.msra.mxu0 0.0
        %1524 = vmatprep.subr.mxu0 0.0
        %1525 = vmatpush1.msra.mxu0 0.0
        %1526 = vmatprep.subr.mxu0 0.0
        %1527 = vmatpush1.msra.mxu0 0.0
        %1528 = vmatprep.subr.mxu0 0.0
        %1529 = vmatpush1.msra.mxu0 0.0
        %1530 = vmatprep.subr.mxu0 0.0
        %1531 = vmatpush1.msra.mxu0 0.0
        %1532 = vmatprep.subr.mxu0 0.0
        %1533 = vmatpush1.msra.mxu0 0.0
        %1534 = vmatprep.subr.mxu0 0.0
        %1535 = vmatpush1.msra.mxu0 0.0
        %1536 = vmatprep.subr.mxu0 0.0
        %1537 = vmatpush1.msra.mxu0 0.0
        %1538 = vmatprep.subr.mxu0 0.0
        %1539 = vmatpush1.msra.mxu0 0.0
        %1540 = vmatprep.subr.mxu0 0.0
        %1541 = vmatpush1.msra.mxu0 0.0
        %1542 = vmatprep.subr.mxu0 0.0
        %1543 = vmatpush1.msra.mxu0 0.0
        %1544 = vmatprep.subr.mxu0 0.0
        %1545 = vmatpush1.msra.mxu0 0.0
        %1546 = vmatprep.subr.mxu0 0.0
        %1547 = vmatpush1.msra.mxu0 0.0
        %1548 = vmatprep.subr.mxu0 0.0
        %1549 = vmatpush1.msra.mxu0 0.0
        %1550 = vmatprep.subr.mxu0 0.0
        %1551 = vmatpush1.msra.mxu0 0.0
        %1552 = vmatprep.subr.mxu0 0.0
        %1553 = vmatpush1.msra.mxu0 0.0
        %1554 = vmatprep.subr.mxu0 0.0
        %1555 = vmatpush1.msra.mxu0 0.0
        %1556 = vmatprep.subr.mxu0 0.0
        %1557 = vmatpush1.msra.mxu0 0.0
        %1558 = vmatprep.subr.mxu0 0.0
        %1559 = vmatpush1.msra.mxu0 0.0
        %1560 = vmatprep.subr.mxu0 0.0
        %1561 = vmatpush1.msra.mxu0 0.0
        %1562 = vmatprep.subr.mxu0 0.0
        %1563 = vmatpush1.msra.mxu0 0.0
        %1564 = vmatprep.subr.mxu0 0.0
        %1565 = vmatpush1.msra.mxu0 0.0
        %1566 = vmatprep.subr.mxu0 0.0
        %1567 = vmatpush1.msra.mxu0 0.0
        %1568 = vmatprep.subr.mxu0 0.0
        %1569 = vmatpush1.msra.mxu0 0.0
        %1570 = vmatprep.mubr.f32.mxu0 0.0
        %1571 = vmatmul.mubr.f32.gmra.mrb[0].mxu0 %v1459
        %v1572 = vpop.f32.mrb[0].mxu0
        %v1573 = vadd.f32 0.0, %v1572
        %v1574 = vpop.f32.mrb[0].mxu0
        %1575 = vmatprep.mubr.f32.mxu0 0.0
        %1576 = vmatmul.mubr.f32.gmra.mrb[0].mxu0 %v1462
        %v1577 = vpop.f32.mrb[0].mxu0
        %v1578 = vadd.f32 0.0, %v1577
        %v1579 = vpop.f32.mrb[0].mxu0
        %1580 = vmatprep.mubr.f32.mxu0 0.0
        %1581 = vmatmul.mubr.f32.gmra.mrb[0].mxu0 %v1465
        %v1582 = vpop.f32.mrb[0].mxu0
        %v1583 = vadd.f32 0.0, %v1582
        %v1584 = vpop.f32.mrb[0].mxu0
        %1585 = vmatprep.mubr.f32.mxu0 0.0
        %1586 = vmatmul.mubr.f32.gmra.mrb[0].mxu0 %v1468
        %v1587 = vpop.f32.mrb[0].mxu0
        %v1588 = vadd.f32 0.0, %v1587
        %v1589 = vpop.f32.mrb[0].mxu0
        %1590 = vmatprep.mubr.f32.mxu0 0.0
        %1591 = vmatmul.mubr.f32.gmra.mrb[0].mxu0 %v1471
        %v1592 = vpop.f32.mrb[0].mxu0
        %v1593 = vadd.f32 0.0, %v1592
        %v1594 = vpop.f32.mrb[0].mxu0
        %1595 = vmatprep.mubr.f32.mxu0 0.0
        %1596 = vmatmul.mubr.f32.gmra.mrb[0].mxu0 %v1474
        %v1597 = vpop.f32.mrb[0].mxu0
        %v1598 = vadd.f32 0.0, %v1597
        %v1599 = vpop.f32.mrb[0].mxu0
        %1600 = vmatprep.mubr.f32.mxu0 0.0
        %1601 = vmatmul.mubr.f32.gmra.mrb[0].mxu0 %v1477
        %v1602 = vpop.f32.mrb[0].mxu0
        %v1603 = vadd.f32 0.0, %v1602
        %v1604 = vpop.f32.mrb[0].mxu0
        %1605 = vmatprep.mubr.f32.mxu0 0.0
        %1606 = vmatmul.mubr.f32.gmra.mrb[0].mxu0 %v1480
        %v1607 = vpop.f32.mrb[0].mxu0
        %v1608 = vadd.f32 0.0, %v1607
        %v1609 = vpop.f32.mrb[0].mxu0
        %1610 = vmatprep.mubr.f32.mxu0 0.0
        %1611 = vmatmul.mubr.f32.gmra.mrb[0].mxu0 %v1483
        %v1612 = vpop.f32.mrb[0].mxu0
        %v1613 = vadd.f32 0.0, %v1612
        %v1614 = vpop.f32.mrb[0].mxu0
        %1615 = vmatprep.mubr.f32.mxu0 0.0
        %1616 = vmatmul.mubr.f32.gmra.mrb[0].mxu0 %v1486
        %v1617 = vpop.f32.mrb[0].mxu0
        %v1618 = vadd.f32 0.0, %v1617
        %v1619 = vpop.f32.mrb[0].mxu0
        %1620 = vmatprep.mubr.f32.mxu0 0.0
        %1621 = vmatmul.mubr.f32.gmra.mrb[0].mxu0 %v1489
        %v1622 = vpop.f32.mrb[0].mxu0
        %v1623 = vadd.f32 0.0, %v1622
        %v1624 = vpop.f32.mrb[0].mxu0
        %1625 = vmatprep.mubr.f32.mxu0 0.0
        %1626 = vmatmul.mubr.f32.gmra.mrb[0].mxu0 %v1492
        %v1627 = vpop.f32.mrb[0].mxu0
        %v1628 = vadd.f32 0.0, %v1627
        %v1629 = vpop.f32.mrb[0].mxu0
        %1630 = vmatprep.mubr.f32.mxu0 0.0
        %1631 = vmatmul.mubr.f32.gmra.mrb[0].mxu0 %v1495
        %v1632 = vpop.f32.mrb[0].mxu0
        %v1633 = vadd.f32 0.0, %v1632
        %v1634 = vpop.f32.mrb[0].mxu0
        %1635 = vmatprep.mubr.f32.mxu0 0.0
        %1636 = vmatmul.mubr.f32.gmra.mrb[0].mxu0 %v1498
        %v1637 = vpop.f32.mrb[0].mxu0
        %v1638 = vadd.f32 0.0, %v1637
        %v1639 = vpop.f32.mrb[0].mxu0
        %1640 = vmatprep.mubr.f32.mxu0 0.0
        %1641 = vmatmul.mubr.f32.gmra.mrb[0].mxu0 %v1501
        %v1642 = vpop.f32.mrb[0].mxu0
        %v1643 = vadd.f32 0.0, %v1642
        %v1644 = vpop.f32.mrb[0].mxu0
        %1645 = vmatprep.mubr.f32.mxu0 0.0
        %1646 = vmatmul.mubr.f32.gmra.mrb[0].mxu0 %v1504
        %v1647 = vpop.f32.mrb[0].mxu0
        %v1648 = vadd.f32 0.0, %v1647
        %v1649 = vpop.f32.mrb[0].mxu0
        %1650 = vdwg.mxu0
        %1651 = vmax.xlane.f32.xlu0 %v1573
        %v1652 = vpop.xlane.xlu0 %1651
        %1653 = vmax.xlane.f32.xlu0 %v1578
        %v1654 = vpop.xlane.xlu0 %1653
        %1655 = vmax.xlane.f32.xlu0 %v1583
        %v1656 = vpop.xlane.xlu0 %1655
        %1657 = vmax.xlane.f32.xlu0 %v1588
        %v1658 = vpop.xlane.xlu0 %1657
        %1659 = vmax.xlane.f32.xlu0 %v1593
        %v1660 = vpop.xlane.xlu0 %1659
        %1661 = vmax.xlane.f32.xlu0 %v1598
        %v1662 = vpop.xlane.xlu0 %1661
        %1663 = vmax.xlane.f32.xlu0 %v1603
        %v1664 = vpop.xlane.xlu0 %1663
        %1665 = vmax.xlane.f32.xlu0 %v1608
        %v1666 = vpop.xlane.xlu0 %1665
        %1667 = vmax.xlane.f32.xlu0 %v1613
        %v1668 = vpop.xlane.xlu0 %1667
        %1669 = vmax.xlane.f32.xlu0 %v1618
        %v1670 = vpop.xlane.xlu0 %1669
        %1671 = vmax.xlane.f32.xlu0 %v1623
        %v1672 = vpop.xlane.xlu0 %1671
        %1673 = vmax.xlane.f32.xlu0 %v1628
        %v1674 = vpop.xlane.xlu0 %1673
        %1675 = vmax.xlane.f32.xlu0 %v1633
        %v1676 = vpop.xlane.xlu0 %1675
        %1677 = vmax.xlane.f32.xlu0 %v1638
        %v1678 = vpop.xlane.xlu0 %1677
        %1679 = vmax.xlane.f32.xlu0 %v1643
        %v1680 = vpop.xlane.xlu0 %1679
        %1681 = vmax.xlane.f32.xlu0 %v1648
        %v1682 = vpop.xlane.xlu0 %1681
        %v1683 = vsub.f32 %v1573, %v1652
        %v1684 = vsub.f32 %v1578, %v1654
        %v1685 = vsub.f32 %v1583, %v1656
        %v1686 = vsub.f32 %v1588, %v1658
        %v1687 = vsub.f32 %v1593, %v1660
        %v1688 = vsub.f32 %v1598, %v1662
        %v1689 = vsub.f32 %v1603, %v1664
        %v1690 = vsub.f32 %v1608, %v1666
        %v1691 = vsub.f32 %v1613, %v1668
        %v1692 = vsub.f32 %v1618, %v1670
        %v1693 = vsub.f32 %v1623, %v1672
        %v1694 = vsub.f32 %v1628, %v1674
        %v1695 = vsub.f32 %v1633, %v1676
        %v1696 = vsub.f32 %v1638, %v1678
        %v1697 = vsub.f32 %v1643, %v1680
        %v1698 = vsub.f32 %v1648, %v1682
        %v1699 = vmul.f32 %v1683, 1.442695
        %v1700 = vpow.pop %v1699
        %v1701 = vmul.f32 %v1684, 1.442695
        %v1702 = vpow.pop %v1701
        %v1703 = vmul.f32 %v1685, 1.442695
        %v1704 = vpow.pop %v1703
        %v1705 = vmul.f32 %v1686, 1.442695
        %v1706 = vpow.pop %v1705
        %v1707 = vmul.f32 %v1687, 1.442695
        %v1708 = vpow.pop %v1707
        %v1709 = vmul.f32 %v1688, 1.442695
        %v1710 = vpow.pop %v1709
        %v1711 = vmul.f32 %v1689, 1.442695
        %v1712 = vpow.pop %v1711
        %v1713 = vmul.f32 %v1690, 1.442695
        %v1714 = vpow.pop %v1713
        %v1715 = vmul.f32 %v1691, 1.442695
        %v1716 = vpow.pop %v1715
        %v1717 = vmul.f32 %v1692, 1.442695
        %v1718 = vpow.pop %v1717
        %v1719 = vmul.f32 %v1693, 1.442695
        %v1720 = vpow.pop %v1719
        %v1721 = vmul.f32 %v1694, 1.442695
        %v1722 = vpow.pop %v1721
        %v1723 = vmul.f32 %v1695, 1.442695
        %v1724 = vpow.pop %v1723
        %v1725 = vmul.f32 %v1696, 1.442695
        %v1726 = vpow.pop %v1725
        %v1727 = vmul.f32 %v1697, 1.442695
        %v1728 = vpow.pop %v1727
        %v1729 = vmul.f32 %v1698, 1.442695
        %v1730 = vpow.pop %v1729
        %1731 = vmatprep.subr.mxu0 0.0
        %1732 = vmatpush1.xpose.msra.mxu0 %v1700
        %1733 = vmatprep.subr.mxu0 0.0
        %1734 = vmatpush1.xpose.msra.mxu0 %v1702
        %1735 = vmatprep.subr.mxu0 0.0
        %1736 = vmatpush1.xpose.msra.mxu0 %v1704
        %1737 = vmatprep.subr.mxu0 0.0
        %1738 = vmatpush1.xpose.msra.mxu0 %v1706
        %1739 = vmatprep.subr.mxu0 0.0
        %1740 = vmatpush1.xpose.msra.mxu0 %v1708
        %1741 = vmatprep.subr.mxu0 0.0
        %1742 = vmatpush1.xpose.msra.mxu0 %v1710
        %1743 = vmatprep.subr.mxu0 0.0
        %1744 = vmatpush1.xpose.msra.mxu0 %v1712
        %1745 = vmatprep.subr.mxu0 0.0
        %1746 = vmatpush1.xpose.msra.mxu0 %v1714
        %1747 = vmatprep.subr.mxu0 0.0
        %1748 = vmatpush1.xpose.msra.mxu0 %v1716
        %1749 = vmatprep.subr.mxu0 0.0
        %1750 = vmatpush1.xpose.msra.mxu0 %v1718
        %1751 = vmatprep.subr.mxu0 0.0
        %1752 = vmatpush1.xpose.msra.mxu0 %v1720
        %1753 = vmatprep.subr.mxu0 0.0
        %1754 = vmatpush1.xpose.msra.mxu0 %v1722
        %1755 = vmatprep.subr.mxu0 0.0
        %1756 = vmatpush1.xpose.msra.mxu0 %v1724
        %1757 = vmatprep.subr.mxu0 0.0
        %1758 = vmatpush1.xpose.msra.mxu0 %v1726
        %1759 = vmatprep.subr.mxu0 0.0
        %1760 = vmatpush1.xpose.msra.mxu0 %v1728
        %1761 = vmatprep.subr.mxu0 0.0
        %1762 = vmatpush1.xpose.msra.mxu0 %v1730
        %1763 = vmatprep.subr.mxu0 0.0
        %1764 = vmatpush1.xpose.msra.mxu0 0.0
        %1765 = vmatprep.subr.mxu0 0.0
        %1766 = vmatpush1.xpose.msra.mxu0 0.0
        %1767 = vmatprep.subr.mxu0 0.0
        %1768 = vmatpush1.xpose.msra.mxu0 0.0
        %1769 = vmatprep.subr.mxu0 0.0
        %1770 = vmatpush1.xpose.msra.mxu0 0.0
        %1771 = vmatprep.subr.mxu0 0.0
        %1772 = vmatpush1.xpose.msra.mxu0 0.0
        %1773 = vmatprep.subr.mxu0 0.0
        %1774 = vmatpush1.xpose.msra.mxu0 0.0
        %1775 = vmatprep.subr.mxu0 0.0
        %1776 = vmatpush1.xpose.msra.mxu0 0.0
        %1777 = vmatprep.subr.mxu0 0.0
        %1778 = vmatpush1.xpose.msra.mxu0 0.0
        %1779 = vmatprep.subr.mxu0 0.0
        %1780 = vmatpush1.xpose.msra.mxu0 0.0
        %1781 = vmatprep.subr.mxu0 0.0
        %1782 = vmatpush1.xpose.msra.mxu0 0.0
        %1783 = vmatprep.subr.mxu0 0.0
        %1784 = vmatpush1.xpose.msra.mxu0 0.0
        %1785 = vmatprep.subr.mxu0 0.0
        %1786 = vmatpush1.xpose.msra.mxu0 0.0
        %1787 = vmatprep.subr.mxu0 0.0
        %1788 = vmatpush1.xpose.msra.mxu0 0.0
        %1789 = vmatprep.subr.mxu0 0.0
        %1790 = vmatpush1.xpose.msra.mxu0 0.0
        %1791 = vmatprep.subr.mxu0 0.0
        %1792 = vmatpush1.xpose.msra.mxu0 0.0
        %1793 = vmatprep.subr.mxu0 0.0
        %1794 = vmatpush1.xpose.msra.mxu0 0.0
        %1795 = vmatprep.mubr.f32.mxu0 0.0
        %1796 = vmatmul.mubr.f32.gmra.mrb[0].mxu0 1.0
        %v1797 = vpop.f32.mrb[0].mxu0
        %v1798 = vadd.f32 0.0, %v1797
        %v1799 = vpop.f32.mrb[0].mxu0
        %1800 = vdwg.mxu0
        %v1801 = vrcp.pop %v1798
        %1802 = vmatprep.subr.mxu0 0.0
        %1803 = vmatpush1.msra.mxu0 %v1700
        %1804 = vmatprep.subr.mxu0 0.0
        %1805 = vmatpush1.msra.mxu0 %v1702
        %1806 = vmatprep.subr.mxu0 0.0
        %1807 = vmatpush1.msra.mxu0 %v1704
        %1808 = vmatprep.subr.mxu0 0.0
        %1809 = vmatpush1.msra.mxu0 %v1706
        %1810 = vmatprep.subr.mxu0 0.0
        %1811 = vmatpush1.msra.mxu0 %v1708
        %1812 = vmatprep.subr.mxu0 0.0
        %1813 = vmatpush1.msra.mxu0 %v1710
        %1814 = vmatprep.subr.mxu0 0.0
        %1815 = vmatpush1.msra.mxu0 %v1712
        %1816 = vmatprep.subr.mxu0 0.0
        %1817 = vmatpush1.msra.mxu0 %v1714
        %1818 = vmatprep.subr.mxu0 0.0
        %1819 = vmatpush1.msra.mxu0 %v1716
        %1820 = vmatprep.subr.mxu0 0.0
        %1821 = vmatpush1.msra.mxu0 %v1718
        %1822 = vmatprep.subr.mxu0 0.0
        %1823 = vmatpush1.msra.mxu0 %v1720
        %1824 = vmatprep.subr.mxu0 0.0
        %1825 = vmatpush1.msra.mxu0 %v1722
        %1826 = vmatprep.subr.mxu0 0.0
        %1827 = vmatpush1.msra.mxu0 %v1724
        %1828 = vmatprep.subr.mxu0 0.0
        %1829 = vmatpush1.msra.mxu0 %v1726
        %1830 = vmatprep.subr.mxu0 0.0
        %1831 = vmatpush1.msra.mxu0 %v1728
        %1832 = vmatprep.subr.mxu0 0.0
        %1833 = vmatpush1.msra.mxu0 %v1730
        %1834 = vmatprep.subr.mxu0 0.0
        %1835 = vmatpush1.msra.mxu0 0.0
        %1836 = vmatprep.subr.mxu0 0.0
        %1837 = vmatpush1.msra.mxu0 0.0
        %1838 = vmatprep.subr.mxu0 0.0
        %1839 = vmatpush1.msra.mxu0 0.0
        %1840 = vmatprep.subr.mxu0 0.0
        %1841 = vmatpush1.msra.mxu0 0.0
        %1842 = vmatprep.subr.mxu0 0.0
        %1843 = vmatpush1.msra.mxu0 0.0
        %1844 = vmatprep.subr.mxu0 0.0
        %1845 = vmatpush1.msra.mxu0 0.0
        %1846 = vmatprep.subr.mxu0 0.0
        %1847 = vmatpush1.msra.mxu0 0.0
        %1848 = vmatprep.subr.mxu0 0.0
        %1849 = vmatpush1.msra.mxu0 0.0
        %1850 = vmatprep.subr.mxu0 0.0
        %1851 = vmatpush1.msra.mxu0 0.0
        %1852 = vmatprep.subr.mxu0 0.0
        %1853 = vmatpush1.msra.mxu0 0.0
        %1854 = vmatprep.subr.mxu0 0.0
        %1855 = vmatpush1.msra.mxu0 0.0
        %1856 = vmatprep.subr.mxu0 0.0
        %1857 = vmatpush1.msra.mxu0 0.0
        %1858 = vmatprep.subr.mxu0 0.0
        %1859 = vmatpush1.msra.mxu0 0.0
        %1860 = vmatprep.subr.mxu0 0.0
        %1861 = vmatpush1.msra.mxu0 0.0
        %1862 = vmatprep.subr.mxu0 0.0
        %1863 = vmatpush1.msra.mxu0 0.0
        %1864 = vmatprep.subr.mxu0 0.0
        %1865 = vmatpush1.msra.mxu0 0.0
        %1866 = vmatprep.mubr.f32.mxu0 0.0
        %1867 = vmatmul.mubr.f32.gmra.mrb[0].mxu0 %v1801
        %v1868 = vpop.f32.mrb[0].mxu0
        %v1869 = vadd.f32 1e-09, %v1868
        %v1870 = vpop.f32.mrb[0].mxu0
        %1871 = vdwg.mxu0
        %v1872 = vrcp.pop %v1869
        %v1873 = vlaneseq
        %v1874 = vshrl.u32 %v1873, 7
        %v1875 = vsub.s32 0, %v1874
        %v1876 = vrot.slane %v1801, %v1875
        %v1877 = vmul.f32 %v1408, %v1876
        %v1878 = vmul.f32 %v1413, %v1876
        %v1879 = vmul.f32 %v1418, %v1876
        %v1880 = vmul.f32 %v1423, %v1876
        %1881 = vmatprep.subr.mxu0 0.0
        %1882 = vmatpush1.msra.mxu0 %v1700
        %1883 = vmatprep.subr.mxu0 0.0
        %1884 = vmatpush1.msra.mxu0 %v1702
        %1885 = vmatprep.subr.mxu0 0.0
        %1886 = vmatpush1.msra.mxu0 %v1704
        %1887 = vmatprep.subr.mxu0 0.0
        %1888 = vmatpush1.msra.mxu0 %v1706
        %1889 = vmatprep.subr.mxu0 0.0
        %1890 = vmatpush1.msra.mxu0 %v1708
        %1891 = vmatprep.subr.mxu0 0.0
        %1892 = vmatpush1.msra.mxu0 %v1710
        %1893 = vmatprep.subr.mxu0 0.0
        %1894 = vmatpush1.msra.mxu0 %v1712
        %1895 = vmatprep.subr.mxu0 0.0
        %1896 = vmatpush1.msra.mxu0 %v1714
        %1897 = vmatprep.subr.mxu0 0.0
        %1898 = vmatpush1.msra.mxu0 %v1716
        %1899 = vmatprep.subr.mxu0 0.0
        %1900 = vmatpush1.msra.mxu0 %v1718
        %1901 = vmatprep.subr.mxu0 0.0
        %1902 = vmatpush1.msra.mxu0 %v1720
        %1903 = vmatprep.subr.mxu0 0.0
        %1904 = vmatpush1.msra.mxu0 %v1722
        %1905 = vmatprep.subr.mxu0 0.0
        %1906 = vmatpush1.msra.mxu0 %v1724
        %1907 = vmatprep.subr.mxu0 0.0
        %1908 = vmatpush1.msra.mxu0 %v1726
        %1909 = vmatprep.subr.mxu0 0.0
        %1910 = vmatpush1.msra.mxu0 %v1728
        %1911 = vmatprep.subr.mxu0 0.0
        %1912 = vmatpush1.msra.mxu0 %v1730
        %1913 = vmatprep.subr.mxu0 0.0
        %1914 = vmatpush1.msra.mxu0 0.0
        %1915 = vmatprep.subr.mxu0 0.0
        %1916 = vmatpush1.msra.mxu0 0.0
        %1917 = vmatprep.subr.mxu0 0.0
        %1918 = vmatpush1.msra.mxu0 0.0
        %1919 = vmatprep.subr.mxu0 0.0
        %1920 = vmatpush1.msra.mxu0 0.0
        %1921 = vmatprep.subr.mxu0 0.0
        %1922 = vmatpush1.msra.mxu0 0.0
        %1923 = vmatprep.subr.mxu0 0.0
        %1924 = vmatpush1.msra.mxu0 0.0
        %1925 = vmatprep.subr.mxu0 0.0
        %1926 = vmatpush1.msra.mxu0 0.0
        %1927 = vmatprep.subr.mxu0 0.0
        %1928 = vmatpush1.msra.mxu0 0.0
        %1929 = vmatprep.subr.mxu0 0.0
        %1930 = vmatpush1.msra.mxu0 0.0
        %1931 = vmatprep.subr.mxu0 0.0
        %1932 = vmatpush1.msra.mxu0 0.0
        %1933 = vmatprep.subr.mxu0 0.0
        %1934 = vmatpush1.msra.mxu0 0.0
        %1935 = vmatprep.subr.mxu0 0.0
        %1936 = vmatpush1.msra.mxu0 0.0
        %1937 = vmatprep.subr.mxu0 0.0
        %1938 = vmatpush1.msra.mxu0 0.0
        %1939 = vmatprep.subr.mxu0 0.0
        %1940 = vmatpush1.msra.mxu0 0.0
        %1941 = vmatprep.subr.mxu0 0.0
        %1942 = vmatpush1.msra.mxu0 0.0
        %1943 = vmatprep.subr.mxu0 0.0
        %1944 = vmatpush1.msra.mxu0 0.0
        %1945 = vmatprep.mubr.f32.mxu0 0.0
        %1946 = vmatmul.mubr.f32.gmra.mrb[0].mxu0 %v1877
        %v1947 = vpop.f32.mrb[0].mxu0
        %v1948 = vadd.f32 0.0, %v1947
        %v1949 = vpop.f32.mrb[0].mxu0
        %1950 = vmatprep.mubr.f32.mxu0 0.0
        %1951 = vmatmul.mubr.f32.gmra.mrb[0].mxu0 %v1878
        %v1952 = vpop.f32.mrb[0].mxu0
        %v1953 = vadd.f32 0.0, %v1952
        %v1954 = vpop.f32.mrb[0].mxu0
        %1955 = vmatprep.mubr.f32.mxu0 0.0
        %1956 = vmatmul.mubr.f32.gmra.mrb[0].mxu0 %v1879
        %v1957 = vpop.f32.mrb[0].mxu0
        %v1958 = vadd.f32 0.0, %v1957
        %v1959 = vpop.f32.mrb[0].mxu0
        %1960 = vmatprep.mubr.f32.mxu0 0.0
        %1961 = vmatmul.mubr.f32.gmra.mrb[0].mxu0 %v1880
        %v1962 = vpop.f32.mrb[0].mxu0
        %v1963 = vadd.f32 0.0, %v1962
        %v1964 = vpop.f32.mrb[0].mxu0
        %1965 = vdwg.mxu0
        %v1966 = vlaneseq
        %v1967 = vshrl.u32 %v1966, 7
        %v1968 = vsub.s32 0, %v1967
        %v1969 = vrot.slane %v1872, %v1968
        %v1970 = vmul.f32 %v1948, %v1969
        %v1971 = vmul.f32 %v1953, %v1969
        %v1972 = vmul.f32 %v1958, %v1969
        %v1973 = vmul.f32 %v1963, %v1969
        %v1974 = vsub.f32 %v1292, %v1970
        %v1975 = vsub.f32 %v1293, %v1971
        %v1976 = vsub.f32 %v1294, %v1972
        %v1977 = vsub.f32 %v1295, %v1973
        %s1978 = scalar_lea.vmem [#allocation5], 160
        %v1979 = vld [vmem:[%s1978] sm:$0xff]
        %v1980 = vld [vmem:[%s1978 + $0x8] sm:$0xff]
        %v1981 = vld [vmem:[%s1978 + $0x10] sm:$0xff]
        %v1982 = vld [vmem:[%s1978 + $0x18] sm:$0xff]
        %1983 = vset.pattern.permute.xlu0 7
        %1984 = vperm.xlu0 %1983, %v1300
        %v1985 = vpop.permute.xlu0 %1984
        %1987 = vset.pattern.permute.xlu0 7
        %1988 = vperm.xlu0 %1987, %v1301
        %v1989 = vpop.permute.xlu0 %1988
        %1991 = vset.pattern.permute.xlu0 7
        %1992 = vperm.xlu0 %1991, %v1302
        %v1993 = vpop.permute.xlu0 %1992
        %1995 = vset.pattern.permute.xlu0 7
        %1996 = vperm.xlu0 %1995, %v1303
        %v1997 = vpop.permute.xlu0 %1996
        %v2000 = vsel %vm236, %v1979, 0
        %v2003 = vsel %vm236, %v1980, 0
        %v2006 = vsel %vm236, %v1981, 0
        %v2009 = vsel %vm236, %v1982, 0
        %2011 = vmatprep.subr.mxu0 0.0
        %2012 = vmatpush1.msra.mxu0 %v1974
        %2013 = vmatprep.subr.mxu0 0.0
        %2014 = vmatpush1.msra.mxu0 %v1975
        %2015 = vmatprep.subr.mxu0 0.0
        %2016 = vmatpush1.msra.mxu0 %v1976
        %2017 = vmatprep.subr.mxu0 0.0
        %2018 = vmatpush1.msra.mxu0 %v1977
        %2019 = vmatprep.subr.mxu0 0.0
        %2020 = vmatpush1.msra.mxu0 0.0
        %2021 = vmatprep.subr.mxu0 0.0
        %2022 = vmatpush1.msra.mxu0 0.0
        %2023 = vmatprep.subr.mxu0 0.0
        %2024 = vmatpush1.msra.mxu0 0.0
        %2025 = vmatprep.subr.mxu0 0.0
        %2026 = vmatpush1.msra.mxu0 0.0
        %2027 = vmatprep.subr.mxu0 0.0
        %2028 = vmatpush1.msra.mxu0 0.0
        %2029 = vmatprep.subr.mxu0 0.0
        %2030 = vmatpush1.msra.mxu0 0.0
        %2031 = vmatprep.subr.mxu0 0.0
        %2032 = vmatpush1.msra.mxu0 0.0
        %2033 = vmatprep.subr.mxu0 0.0
        %2034 = vmatpush1.msra.mxu0 0.0
        %2035 = vmatprep.subr.mxu0 0.0
        %2036 = vmatpush1.msra.mxu0 0.0
        %2037 = vmatprep.subr.mxu0 0.0
        %2038 = vmatpush1.msra.mxu0 0.0
        %2039 = vmatprep.subr.mxu0 0.0
        %2040 = vmatpush1.msra.mxu0 0.0
        %2041 = vmatprep.subr.mxu0 0.0
        %2042 = vmatpush1.msra.mxu0 0.0
        %2043 = vmatprep.subr.mxu0 0.0
        %2044 = vmatpush1.msra.mxu0 0.0
        %2045 = vmatprep.subr.mxu0 0.0
        %2046 = vmatpush1.msra.mxu0 0.0
        %2047 = vmatprep.subr.mxu0 0.0
        %2048 = vmatpush1.msra.mxu0 0.0
        %2049 = vmatprep.subr.mxu0 0.0
        %2050 = vmatpush1.msra.mxu0 0.0
        %2051 = vmatprep.subr.mxu0 0.0
        %2052 = vmatpush1.msra.mxu0 0.0
        %2053 = vmatprep.subr.mxu0 0.0
        %2054 = vmatpush1.msra.mxu0 0.0
        %2055 = vmatprep.subr.mxu0 0.0
        %2056 = vmatpush1.msra.mxu0 0.0
        %2057 = vmatprep.subr.mxu0 0.0
        %2058 = vmatpush1.msra.mxu0 0.0
        %2059 = vmatprep.subr.mxu0 0.0
        %2060 = vmatpush1.msra.mxu0 0.0
        %2061 = vmatprep.subr.mxu0 0.0
        %2062 = vmatpush1.msra.mxu0 0.0
        %2063 = vmatprep.subr.mxu0 0.0
        %2064 = vmatpush1.msra.mxu0 0.0
        %2065 = vmatprep.subr.mxu0 0.0
        %2066 = vmatpush1.msra.mxu0 0.0
        %2067 = vmatprep.subr.mxu0 0.0
        %2068 = vmatpush1.msra.mxu0 0.0
        %2069 = vmatprep.subr.mxu0 0.0
        %2070 = vmatpush1.msra.mxu0 0.0
        %2071 = vmatprep.subr.mxu0 0.0
        %2072 = vmatpush1.msra.mxu0 0.0
        %2073 = vmatprep.subr.mxu0 0.0
        %2074 = vmatpush1.msra.mxu0 0.0
        %2075 = vmatprep.mubr.f32.mxu0 0.0
        %2076 = vmatmul.mubr.f32.gmra.mrb[0].mxu0 %v2000
        %v2077 = vpop.f32.mrb[0].mxu0
        %v2078 = vadd.f32 %v1985, %v2077
        %v2079 = vpop.f32.mrb[0].mxu0
        %2080 = vmatprep.mubr.f32.mxu0 0.0
        %2081 = vmatmul.mubr.f32.gmra.mrb[0].mxu0 %v2003
        %v2082 = vpop.f32.mrb[0].mxu0
        %v2083 = vadd.f32 %v1989, %v2082
        %v2084 = vpop.f32.mrb[0].mxu0
        %2085 = vmatprep.mubr.f32.mxu0 0.0
        %2086 = vmatmul.mubr.f32.gmra.mrb[0].mxu0 %v2006
        %v2087 = vpop.f32.mrb[0].mxu0
        %v2088 = vadd.f32 %v1993, %v2087
        %v2089 = vpop.f32.mrb[0].mxu0
        %2090 = vmatprep.mubr.f32.mxu0 0.0
        %2091 = vmatmul.mubr.f32.gmra.mrb[0].mxu0 %v2009
        %v2092 = vpop.f32.mrb[0].mxu0
        %v2093 = vadd.f32 %v1997, %v2092
        %v2094 = vpop.f32.mrb[0].mxu0
        %2095 = vdwg.mxu0
        %v2096 = vmax.f32 %v2078, 0.0
        %v2097 = vmax.f32 %v2083, 0.0
        %v2098 = vmax.f32 %v2088, 0.0
        %v2099 = vmax.f32 %v2093, 0.0
        %2100 = vset.pattern.permute.xlu0 8
        %2101 = vperm.xlu0 %2100, %v1300
        %v2102 = vpop.permute.xlu0 %2101
        %2104 = vset.pattern.permute.xlu0 8
        %2105 = vperm.xlu0 %2104, %v1301
        %v2106 = vpop.permute.xlu0 %2105
        %2108 = vset.pattern.permute.xlu0 8
        %2109 = vperm.xlu0 %2108, %v1302
        %v2110 = vpop.permute.xlu0 %2109
        %2112 = vset.pattern.permute.xlu0 8
        %2113 = vperm.xlu0 %2112, %v1303
        %v2114 = vpop.permute.xlu0 %2113
        %v2116 = vmul.f32 %v2102, %v2096
        %v2117 = vmul.f32 %v2106, %v2097
        %v2118 = vmul.f32 %v2110, %v2098
        %v2119 = vmul.f32 %v2114, %v2099
        %v2120 = vadd.f32 %v1292, %v2116
        %v2121 = vadd.f32 %v1293, %v2117
        %v2122 = vadd.f32 %v1294, %v2118
        %v2123 = vadd.f32 %v1295, %v2119
        %2124 = vset.pattern.permute.xlu0 9
        %2125 = vperm.xlu0 %2124, %v1300
        %v2126 = vpop.permute.xlu0 %2125
        %2128 = vset.pattern.permute.xlu0 9
        %2129 = vperm.xlu0 %2128, %v1301
        %v2130 = vpop.permute.xlu0 %2129
        %2132 = vset.pattern.permute.xlu0 9
        %2133 = vperm.xlu0 %2132, %v1302
        %v2134 = vpop.permute.xlu0 %2133
        %2136 = vset.pattern.permute.xlu0 9
        %2137 = vperm.xlu0 %2136, %v1303
        %v2138 = vpop.permute.xlu0 %2137
        %v2140 = vadd.f32 %v2120, %v2126
        %v2141 = vadd.f32 %v2121, %v2130
        %v2142 = vadd.f32 %v2122, %v2134
        %v2143 = vadd.f32 %v2123, %v2138
        %2144 = vst [vmem:[%s203 + $0x20] sm:$0xff] %v2140
        %2145 = vst [vmem:[%s203 + $0x28] sm:$0xff] %v2141
        %2146 = vst [vmem:[%s203 + $0x30] sm:$0xff] %v2142
        %2147 = vst [vmem:[%s203 + $0x38] sm:$0xff] %v2143
        %v2148 = vld [vmem:[%s2] sm:$0xff]
        %v2149 = vld [vmem:[%s2 + $0x8] sm:$0xff]
        %v2150 = vld [vmem:[%s2 + $0x10] sm:$0xff]
        %v2151 = vld [vmem:[%s2 + $0x18] sm:$0xff]
        %s2152 = scalar_lea.vmem [#allocation5], 192
        %v2153 = vld [vmem:[%s2152] sm:$0xff]
        %v2154 = vld [vmem:[%s2152 + $0x8] sm:$0xff]
        %v2155 = vld [vmem:[%s2152 + $0x10] sm:$0xff]
        %v2156 = vld [vmem:[%s2152 + $0x18] sm:$0xff]
        %2158 = vset.pattern.permute.xlu0 10
        %2159 = vperm.xlu0 %2158, %v2148
        %v2160 = vpop.permute.xlu0 %2159
        %2163 = vset.pattern.permute.xlu0 10
        %2164 = vperm.xlu0 %2163, %v2149
        %v2165 = vpop.permute.xlu0 %2164
        %2168 = vset.pattern.permute.xlu0 10
        %2169 = vperm.xlu0 %2168, %v2150
        %v2170 = vpop.permute.xlu0 %2169
        %2173 = vset.pattern.permute.xlu0 10
        %2174 = vperm.xlu0 %2173, %v2151
        %v2175 = vpop.permute.xlu0 %2174
        %v2178 = vsel %vm236, %v2153, 0
        %v2181 = vsel %vm236, %v2154, 0
        %v2184 = vsel %vm236, %v2155, 0
        %v2187 = vsel %vm236, %v2156, 0
        %2189 = vmatprep.subr.mxu0 0.0
        %2190 = vmatpush1.msra.mxu0 %v2140
        %2191 = vmatprep.subr.mxu0 0.0
        %2192 = vmatpush1.msra.mxu0 %v2141
        %2193 = vmatprep.subr.mxu0 0.0
        %2194 = vmatpush1.msra.mxu0 %v2142
        %2195 = vmatprep.subr.mxu0 0.0
        %2196 = vmatpush1.msra.mxu0 %v2143
        %2197 = vmatprep.subr.mxu0 0.0
        %2198 = vmatpush1.msra.mxu0 0.0
        %2199 = vmatprep.subr.mxu0 0.0
        %2200 = vmatpush1.msra.mxu0 0.0
        %2201 = vmatprep.subr.mxu0 0.0
        %2202 = vmatpush1.msra.mxu0 0.0
        %2203 = vmatprep.subr.mxu0 0.0
        %2204 = vmatpush1.msra.mxu0 0.0
        %2205 = vmatprep.subr.mxu0 0.0
        %2206 = vmatpush1.msra.mxu0 0.0
        %2207 = vmatprep.subr.mxu0 0.0
        %2208 = vmatpush1.msra.mxu0 0.0
        %2209 = vmatprep.subr.mxu0 0.0
        %2210 = vmatpush1.msra.mxu0 0.0
        %2211 = vmatprep.subr.mxu0 0.0
        %2212 = vmatpush1.msra.mxu0 0.0
        %2213 = vmatprep.subr.mxu0 0.0
        %2214 = vmatpush1.msra.mxu0 0.0
        %2215 = vmatprep.subr.mxu0 0.0
        %2216 = vmatpush1.msra.mxu0 0.0
        %2217 = vmatprep.subr.mxu0 0.0
        %2218 = vmatpush1.msra.mxu0 0.0
        %2219 = vmatprep.subr.mxu0 0.0
        %2220 = vmatpush1.msra.mxu0 0.0
        %2221 = vmatprep.subr.mxu0 0.0
        %2222 = vmatpush1.msra.mxu0 0.0
        %2223 = vmatprep.subr.mxu0 0.0
        %2224 = vmatpush1.msra.mxu0 0.0
        %2225 = vmatprep.subr.mxu0 0.0
        %2226 = vmatpush1.msra.mxu0 0.0
        %2227 = vmatprep.subr.mxu0 0.0
        %2228 = vmatpush1.msra.mxu0 0.0
        %2229 = vmatprep.subr.mxu0 0.0
        %2230 = vmatpush1.msra.mxu0 0.0
        %2231 = vmatprep.subr.mxu0 0.0
        %2232 = vmatpush1.msra.mxu0 0.0
        %2233 = vmatprep.subr.mxu0 0.0
        %2234 = vmatpush1.msra.mxu0 0.0
        %2235 = vmatprep.subr.mxu0 0.0
        %2236 = vmatpush1.msra.mxu0 0.0
        %2237 = vmatprep.subr.mxu0 0.0
        %2238 = vmatpush1.msra.mxu0 0.0
        %2239 = vmatprep.subr.mxu0 0.0
        %2240 = vmatpush1.msra.mxu0 0.0
        %2241 = vmatprep.subr.mxu0 0.0
        %2242 = vmatpush1.msra.mxu0 0.0
        %2243 = vmatprep.subr.mxu0 0.0
        %2244 = vmatpush1.msra.mxu0 0.0
        %2245 = vmatprep.subr.mxu0 0.0
        %2246 = vmatpush1.msra.mxu0 0.0
        %2247 = vmatprep.subr.mxu0 0.0
        %2248 = vmatpush1.msra.mxu0 0.0
        %2249 = vmatprep.subr.mxu0 0.0
        %2250 = vmatpush1.msra.mxu0 0.0
        %2251 = vmatprep.subr.mxu0 0.0
        %2252 = vmatpush1.msra.mxu0 0.0
        %2253 = vmatprep.mubr.f32.mxu0 0.0
        %2254 = vmatmul.mubr.f32.gmra.mrb[0].mxu0 %v2178
        %v2255 = vpop.f32.mrb[0].mxu0
        %v2256 = vadd.f32 %v2160, %v2255
        %v2257 = vpop.f32.mrb[0].mxu0
        %2258 = vmatprep.mubr.f32.mxu0 0.0
        %2259 = vmatmul.mubr.f32.gmra.mrb[0].mxu0 %v2181
        %v2260 = vpop.f32.mrb[0].mxu0
        %v2261 = vadd.f32 %v2165, %v2260
        %v2262 = vpop.f32.mrb[0].mxu0
        %2263 = vmatprep.mubr.f32.mxu0 0.0
        %2264 = vmatmul.mubr.f32.gmra.mrb[0].mxu0 %v2184
        %v2265 = vpop.f32.mrb[0].mxu0
        %v2266 = vadd.f32 %v2170, %v2265
        %v2267 = vpop.f32.mrb[0].mxu0
        %2268 = vmatprep.mubr.f32.mxu0 0.0
        %2269 = vmatmul.mubr.f32.gmra.mrb[0].mxu0 %v2187
        %v2270 = vpop.f32.mrb[0].mxu0
        %v2271 = vadd.f32 %v2175, %v2270
        %v2272 = vpop.f32.mrb[0].mxu0
        %2273 = vdwg.mxu0
        %2274 = vxpose.xlu0.b32.start [1/16] %v2140, 128
        %2275 = vxpose.xlu0.b32.cont [2/16] %v2141, 128
        %2276 = vxpose.xlu0.b32.cont [3/16] %v2142, 128
        %2277 = vxpose.xlu0.b32.cont [4/16] %v2143, 128
        %2278 = vxpose.xlu0.b32.cont [5/16] 0.0, 128
        %2279 = vxpose.xlu0.b32.cont [6/16] 0.0, 128
        %2280 = vxpose.xlu0.b32.cont [7/16] 0.0, 128
        %2281 = vxpose.xlu0.b32.cont [8/16] 0.0, 128
        %2282 = vxpose.xlu0.b32.cont [9/16] 0.0, 128
        %2283 = vxpose.xlu0.b32.cont [10/16] 0.0, 128
        %2284 = vxpose.xlu0.b32.cont [11/16] 0.0, 128
        %2285 = vxpose.xlu0.b32.cont [12/16] 0.0, 128
        %2286 = vxpose.xlu0.b32.cont [13/16] 0.0, 128
        %2287 = vxpose.xlu0.b32.cont [14/16] 0.0, 128
        %2288 = vxpose.xlu0.b32.cont [15/16] 0.0, 128
        %2289 = vxpose.xlu0.b32.end [16/16] 0.0, 128
        %v2290 = vpop.trf.xlu0
        %v2291 = vpop.trf.xlu0
        %v2292 = vpop.trf.xlu0
        %v2293 = vpop.trf.xlu0
        %v2294 = vpop.trf.xlu0
        %v2295 = vpop.trf.xlu0
        %v2296 = vpop.trf.xlu0
        %v2297 = vpop.trf.xlu0
        %v2298 = vpop.trf.xlu0
        %v2299 = vpop.trf.xlu0
        %v2300 = vpop.trf.xlu0
        %v2301 = vpop.trf.xlu0
        %v2302 = vpop.trf.xlu0
        %v2303 = vpop.trf.xlu0
        %v2304 = vpop.trf.xlu0
        %v2305 = vpop.trf.xlu0
        %v2307 = vsel %vm236, %v2290, 0
        %v2310 = vsel %vm236, %v2291, 0
        %v2313 = vsel %vm236, %v2292, 0
        %v2316 = vsel %vm236, %v2293, 0
        %v2319 = vsel %vm236, %v2294, 0
        %v2322 = vsel %vm236, %v2295, 0
        %v2325 = vsel %vm236, %v2296, 0
        %v2328 = vsel %vm236, %v2297, 0
        %v2331 = vsel %vm236, %v2298, 0
        %v2334 = vsel %vm236, %v2299, 0
        %v2337 = vsel %vm236, %v2300, 0
        %v2340 = vsel %vm236, %v2301, 0
        %v2343 = vsel %vm236, %v2302, 0
        %v2346 = vsel %vm236, %v2303, 0
        %v2349 = vsel %vm236, %v2304, 0
        %v2352 = vsel %vm236, %v2305, 0
        %2354 = vmatprep.subr.mxu0 0.0
        %2355 = vmatpush1.msra.mxu0 %v2256
        %2356 = vmatprep.subr.mxu0 0.0
        %2357 = vmatpush1.msra.mxu0 %v2261
        %2358 = vmatprep.subr.mxu0 0.0
        %2359 = vmatpush1.msra.mxu0 %v2266
        %2360 = vmatprep.subr.mxu0 0.0
        %2361 = vmatpush1.msra.mxu0 %v2271
        %2362 = vmatprep.subr.mxu0 0.0
        %2363 = vmatpush1.msra.mxu0 0.0
        %2364 = vmatprep.subr.mxu0 0.0
        %2365 = vmatpush1.msra.mxu0 0.0
        %2366 = vmatprep.subr.mxu0 0.0
        %2367 = vmatpush1.msra.mxu0 0.0
        %2368 = vmatprep.subr.mxu0 0.0
        %2369 = vmatpush1.msra.mxu0 0.0
        %2370 = vmatprep.subr.mxu0 0.0
        %2371 = vmatpush1.msra.mxu0 0.0
        %2372 = vmatprep.subr.mxu0 0.0
        %2373 = vmatpush1.msra.mxu0 0.0
        %2374 = vmatprep.subr.mxu0 0.0
        %2375 = vmatpush1.msra.mxu0 0.0
        %2376 = vmatprep.subr.mxu0 0.0
        %2377 = vmatpush1.msra.mxu0 0.0
        %2378 = vmatprep.subr.mxu0 0.0
        %2379 = vmatpush1.msra.mxu0 0.0
        %2380 = vmatprep.subr.mxu0 0.0
        %2381 = vmatpush1.msra.mxu0 0.0
        %2382 = vmatprep.subr.mxu0 0.0
        %2383 = vmatpush1.msra.mxu0 0.0
        %2384 = vmatprep.subr.mxu0 0.0
        %2385 = vmatpush1.msra.mxu0 0.0
        %2386 = vmatprep.subr.mxu0 0.0
        %2387 = vmatpush1.msra.mxu0 0.0
        %2388 = vmatprep.subr.mxu0 0.0
        %2389 = vmatpush1.msra.mxu0 0.0
        %2390 = vmatprep.subr.mxu0 0.0
        %2391 = vmatpush1.msra.mxu0 0.0
        %2392 = vmatprep.subr.mxu0 0.0
        %2393 = vmatpush1.msra.mxu0 0.0
        %2394 = vmatprep.subr.mxu0 0.0
        %2395 = vmatpush1.msra.mxu0 0.0
        %2396 = vmatprep.subr.mxu0 0.0
        %2397 = vmatpush1.msra.mxu0 0.0
        %2398 = vmatprep.subr.mxu0 0.0
        %2399 = vmatpush1.msra.mxu0 0.0
        %2400 = vmatprep.subr.mxu0 0.0
        %2401 = vmatpush1.msra.mxu0 0.0
        %2402 = vmatprep.subr.mxu0 0.0
        %2403 = vmatpush1.msra.mxu0 0.0
        %2404 = vmatprep.subr.mxu0 0.0
        %2405 = vmatpush1.msra.mxu0 0.0
        %2406 = vmatprep.subr.mxu0 0.0
        %2407 = vmatpush1.msra.mxu0 0.0
        %2408 = vmatprep.subr.mxu0 0.0
        %2409 = vmatpush1.msra.mxu0 0.0
        %2410 = vmatprep.subr.mxu0 0.0
        %2411 = vmatpush1.msra.mxu0 0.0
        %2412 = vmatprep.subr.mxu0 0.0
        %2413 = vmatpush1.msra.mxu0 0.0
        %2414 = vmatprep.subr.mxu0 0.0
        %2415 = vmatpush1.msra.mxu0 0.0
        %2416 = vmatprep.subr.mxu0 0.0
        %2417 = vmatpush1.msra.mxu0 0.0
        %2418 = vmatprep.mubr.f32.mxu0 0.0
        %2419 = vmatmul.mubr.f32.gmra.mrb[0].mxu0 %v2307
        %v2420 = vpop.f32.mrb[0].mxu0
        %v2421 = vadd.f32 0.0, %v2420
        %v2422 = vpop.f32.mrb[0].mxu0
        %2423 = vmatprep.mubr.f32.mxu0 0.0
        %2424 = vmatmul.mubr.f32.gmra.mrb[0].mxu0 %v2310
        %v2425 = vpop.f32.mrb[0].mxu0
        %v2426 = vadd.f32 0.0, %v2425
        %v2427 = vpop.f32.mrb[0].mxu0
        %2428 = vmatprep.mubr.f32.mxu0 0.0
        %2429 = vmatmul.mubr.f32.gmra.mrb[0].mxu0 %v2313
        %v2430 = vpop.f32.mrb[0].mxu0
        %v2431 = vadd.f32 0.0, %v2430
        %v2432 = vpop.f32.mrb[0].mxu0
        %2433 = vmatprep.mubr.f32.mxu0 0.0
        %2434 = vmatmul.mubr.f32.gmra.mrb[0].mxu0 %v2316
        %v2435 = vpop.f32.mrb[0].mxu0
        %v2436 = vadd.f32 0.0, %v2435
        %v2437 = vpop.f32.mrb[0].mxu0
        %2438 = vmatprep.mubr.f32.mxu0 0.0
        %2439 = vmatmul.mubr.f32.gmra.mrb[0].mxu0 %v2319
        %v2440 = vpop.f32.mrb[0].mxu0
        %v2441 = vadd.f32 0.0, %v2440
        %v2442 = vpop.f32.mrb[0].mxu0
        %2443 = vmatprep.mubr.f32.mxu0 0.0
        %2444 = vmatmul.mubr.f32.gmra.mrb[0].mxu0 %v2322
        %v2445 = vpop.f32.mrb[0].mxu0
        %v2446 = vadd.f32 0.0, %v2445
        %v2447 = vpop.f32.mrb[0].mxu0
        %2448 = vmatprep.mubr.f32.mxu0 0.0
        %2449 = vmatmul.mubr.f32.gmra.mrb[0].mxu0 %v2325
        %v2450 = vpop.f32.mrb[0].mxu0
        %v2451 = vadd.f32 0.0, %v2450
        %v2452 = vpop.f32.mrb[0].mxu0
        %2453 = vmatprep.mubr.f32.mxu0 0.0
        %2454 = vmatmul.mubr.f32.gmra.mrb[0].mxu0 %v2328
        %v2455 = vpop.f32.mrb[0].mxu0
        %v2456 = vadd.f32 0.0, %v2455
        %v2457 = vpop.f32.mrb[0].mxu0
        %2458 = vmatprep.mubr.f32.mxu0 0.0
        %2459 = vmatmul.mubr.f32.gmra.mrb[0].mxu0 %v2331
        %v2460 = vpop.f32.mrb[0].mxu0
        %v2461 = vadd.f32 0.0, %v2460
        %v2462 = vpop.f32.mrb[0].mxu0
        %2463 = vmatprep.mubr.f32.mxu0 0.0
        %2464 = vmatmul.mubr.f32.gmra.mrb[0].mxu0 %v2334
        %v2465 = vpop.f32.mrb[0].mxu0
        %v2466 = vadd.f32 0.0, %v2465
        %v2467 = vpop.f32.mrb[0].mxu0
        %2468 = vmatprep.mubr.f32.mxu0 0.0
        %2469 = vmatmul.mubr.f32.gmra.mrb[0].mxu0 %v2337
        %v2470 = vpop.f32.mrb[0].mxu0
        %v2471 = vadd.f32 0.0, %v2470
        %v2472 = vpop.f32.mrb[0].mxu0
        %2473 = vmatprep.mubr.f32.mxu0 0.0
        %2474 = vmatmul.mubr.f32.gmra.mrb[0].mxu0 %v2340
        %v2475 = vpop.f32.mrb[0].mxu0
        %v2476 = vadd.f32 0.0, %v2475
        %v2477 = vpop.f32.mrb[0].mxu0
        %2478 = vmatprep.mubr.f32.mxu0 0.0
        %2479 = vmatmul.mubr.f32.gmra.mrb[0].mxu0 %v2343
        %v2480 = vpop.f32.mrb[0].mxu0
        %v2481 = vadd.f32 0.0, %v2480
        %v2482 = vpop.f32.mrb[0].mxu0
        %2483 = vmatprep.mubr.f32.mxu0 0.0
        %2484 = vmatmul.mubr.f32.gmra.mrb[0].mxu0 %v2346
        %v2485 = vpop.f32.mrb[0].mxu0
        %v2486 = vadd.f32 0.0, %v2485
        %v2487 = vpop.f32.mrb[0].mxu0
        %2488 = vmatprep.mubr.f32.mxu0 0.0
        %2489 = vmatmul.mubr.f32.gmra.mrb[0].mxu0 %v2349
        %v2490 = vpop.f32.mrb[0].mxu0
        %v2491 = vadd.f32 0.0, %v2490
        %v2492 = vpop.f32.mrb[0].mxu0
        %2493 = vmatprep.mubr.f32.mxu0 0.0
        %2494 = vmatmul.mubr.f32.gmra.mrb[0].mxu0 %v2352
        %v2495 = vpop.f32.mrb[0].mxu0
        %v2496 = vadd.f32 0.0, %v2495
        %v2497 = vpop.f32.mrb[0].mxu0
        %2498 = vdwg.mxu0
        %2499 = vmax.xlane.f32.xlu0 %v2421
        %v2500 = vpop.xlane.xlu0 %2499
        %2501 = vmax.xlane.f32.xlu0 %v2426
        %v2502 = vpop.xlane.xlu0 %2501
        %2503 = vmax.xlane.f32.xlu0 %v2431
        %v2504 = vpop.xlane.xlu0 %2503
        %2505 = vmax.xlane.f32.xlu0 %v2436
        %v2506 = vpop.xlane.xlu0 %2505
        %2507 = vmax.xlane.f32.xlu0 %v2441
        %v2508 = vpop.xlane.xlu0 %2507
        %2509 = vmax.xlane.f32.xlu0 %v2446
        %v2510 = vpop.xlane.xlu0 %2509
        %2511 = vmax.xlane.f32.xlu0 %v2451
        %v2512 = vpop.xlane.xlu0 %2511
        %2513 = vmax.xlane.f32.xlu0 %v2456
        %v2514 = vpop.xlane.xlu0 %2513
        %2515 = vmax.xlane.f32.xlu0 %v2461
        %v2516 = vpop.xlane.xlu0 %2515
        %2517 = vmax.xlane.f32.xlu0 %v2466
        %v2518 = vpop.xlane.xlu0 %2517
        %2519 = vmax.xlane.f32.xlu0 %v2471
        %v2520 = vpop.xlane.xlu0 %2519
        %2521 = vmax.xlane.f32.xlu0 %v2476
        %v2522 = vpop.xlane.xlu0 %2521
        %2523 = vmax.xlane.f32.xlu0 %v2481
        %v2524 = vpop.xlane.xlu0 %2523
        %2525 = vmax.xlane.f32.xlu0 %v2486
        %v2526 = vpop.xlane.xlu0 %2525
        %2527 = vmax.xlane.f32.xlu0 %v2491
        %v2528 = vpop.xlane.xlu0 %2527
        %2529 = vmax.xlane.f32.xlu0 %v2496
        %v2530 = vpop.xlane.xlu0 %2529
        %v2531 = vsub.f32 %v2421, %v2500
        %v2532 = vsub.f32 %v2426, %v2502
        %v2533 = vsub.f32 %v2431, %v2504
        %v2534 = vsub.f32 %v2436, %v2506
        %v2535 = vsub.f32 %v2441, %v2508
        %v2536 = vsub.f32 %v2446, %v2510
        %v2537 = vsub.f32 %v2451, %v2512
        %v2538 = vsub.f32 %v2456, %v2514
        %v2539 = vsub.f32 %v2461, %v2516
        %v2540 = vsub.f32 %v2466, %v2518
        %v2541 = vsub.f32 %v2471, %v2520
        %v2542 = vsub.f32 %v2476, %v2522
        %v2543 = vsub.f32 %v2481, %v2524
        %v2544 = vsub.f32 %v2486, %v2526
        %v2545 = vsub.f32 %v2491, %v2528
        %v2546 = vsub.f32 %v2496, %v2530
        %v2547 = vmul.f32 %v2531, 1.442695
        %v2548 = vpow.pop %v2547
        %v2549 = vmul.f32 %v2532, 1.442695
        %v2550 = vpow.pop %v2549
        %v2551 = vmul.f32 %v2533, 1.442695
        %v2552 = vpow.pop %v2551
        %v2553 = vmul.f32 %v2534, 1.442695
        %v2554 = vpow.pop %v2553
        %v2555 = vmul.f32 %v2535, 1.442695
        %v2556 = vpow.pop %v2555
        %v2557 = vmul.f32 %v2536, 1.442695
        %v2558 = vpow.pop %v2557
        %v2559 = vmul.f32 %v2537, 1.442695
        %v2560 = vpow.pop %v2559
        %v2561 = vmul.f32 %v2538, 1.442695
        %v2562 = vpow.pop %v2561
        %v2563 = vmul.f32 %v2539, 1.442695
        %v2564 = vpow.pop %v2563
        %v2565 = vmul.f32 %v2540, 1.442695
        %v2566 = vpow.pop %v2565
        %v2567 = vmul.f32 %v2541, 1.442695
        %v2568 = vpow.pop %v2567
        %v2569 = vmul.f32 %v2542, 1.442695
        %v2570 = vpow.pop %v2569
        %v2571 = vmul.f32 %v2543, 1.442695
        %v2572 = vpow.pop %v2571
        %v2573 = vmul.f32 %v2544, 1.442695
        %v2574 = vpow.pop %v2573
        %v2575 = vmul.f32 %v2545, 1.442695
        %v2576 = vpow.pop %v2575
        %v2577 = vmul.f32 %v2546, 1.442695
        %v2578 = vpow.pop %v2577
        %2579 = vmatprep.subr.mxu0 0.0
        %2580 = vmatpush1.xpose.msra.mxu0 %v2548
        %2581 = vmatprep.subr.mxu0 0.0
        %2582 = vmatpush1.xpose.msra.mxu0 %v2550
        %2583 = vmatprep.subr.mxu0 0.0
        %2584 = vmatpush1.xpose.msra.mxu0 %v2552
        %2585 = vmatprep.subr.mxu0 0.0
        %2586 = vmatpush1.xpose.msra.mxu0 %v2554
        %2587 = vmatprep.subr.mxu0 0.0
        %2588 = vmatpush1.xpose.msra.mxu0 %v2556
        %2589 = vmatprep.subr.mxu0 0.0
        %2590 = vmatpush1.xpose.msra.mxu0 %v2558
        %2591 = vmatprep.subr.mxu0 0.0
        %2592 = vmatpush1.xpose.msra.mxu0 %v2560
        %2593 = vmatprep.subr.mxu0 0.0
        %2594 = vmatpush1.xpose.msra.mxu0 %v2562
        %2595 = vmatprep.subr.mxu0 0.0
        %2596 = vmatpush1.xpose.msra.mxu0 %v2564
        %2597 = vmatprep.subr.mxu0 0.0
        %2598 = vmatpush1.xpose.msra.mxu0 %v2566
        %2599 = vmatprep.subr.mxu0 0.0
        %2600 = vmatpush1.xpose.msra.mxu0 %v2568
        %2601 = vmatprep.subr.mxu0 0.0
        %2602 = vmatpush1.xpose.msra.mxu0 %v2570
        %2603 = vmatprep.subr.mxu0 0.0
        %2604 = vmatpush1.xpose.msra.mxu0 %v2572
        %2605 = vmatprep.subr.mxu0 0.0
        %2606 = vmatpush1.xpose.msra.mxu0 %v2574
        %2607 = vmatprep.subr.mxu0 0.0
        %2608 = vmatpush1.xpose.msra.mxu0 %v2576
        %2609 = vmatprep.subr.mxu0 0.0
        %2610 = vmatpush1.xpose.msra.mxu0 %v2578
        %2611 = vmatprep.subr.mxu0 0.0
        %2612 = vmatpush1.xpose.msra.mxu0 0.0
        %2613 = vmatprep.subr.mxu0 0.0
        %2614 = vmatpush1.xpose.msra.mxu0 0.0
        %2615 = vmatprep.subr.mxu0 0.0
        %2616 = vmatpush1.xpose.msra.mxu0 0.0
        %2617 = vmatprep.subr.mxu0 0.0
        %2618 = vmatpush1.xpose.msra.mxu0 0.0
        %2619 = vmatprep.subr.mxu0 0.0
        %2620 = vmatpush1.xpose.msra.mxu0 0.0
        %2621 = vmatprep.subr.mxu0 0.0
        %2622 = vmatpush1.xpose.msra.mxu0 0.0
        %2623 = vmatprep.subr.mxu0 0.0
        %2624 = vmatpush1.xpose.msra.mxu0 0.0
        %2625 = vmatprep.subr.mxu0 0.0
        %2626 = vmatpush1.xpose.msra.mxu0 0.0
        %2627 = vmatprep.subr.mxu0 0.0
        %2628 = vmatpush1.xpose.msra.mxu0 0.0
        %2629 = vmatprep.subr.mxu0 0.0
        %2630 = vmatpush1.xpose.msra.mxu0 0.0
        %2631 = vmatprep.subr.mxu0 0.0
        %2632 = vmatpush1.xpose.msra.mxu0 0.0
        %2633 = vmatprep.subr.mxu0 0.0
        %2634 = vmatpush1.xpose.msra.mxu0 0.0
        %2635 = vmatprep.subr.mxu0 0.0
        %2636 = vmatpush1.xpose.msra.mxu0 0.0
        %2637 = vmatprep.subr.mxu0 0.0
        %2638 = vmatpush1.xpose.msra.mxu0 0.0
        %2639 = vmatprep.subr.mxu0 0.0
        %2640 = vmatpush1.xpose.msra.mxu0 0.0
        %2641 = vmatprep.subr.mxu0 0.0
        %2642 = vmatpush1.xpose.msra.mxu0 0.0
        %2643 = vmatprep.mubr.f32.mxu0 0.0
        %2644 = vmatmul.mubr.f32.gmra.mrb[0].mxu0 1.0
        %v2645 = vpop.f32.mrb[0].mxu0
        %v2646 = vadd.f32 0.0, %v2645
        %v2647 = vpop.f32.mrb[0].mxu0
        %2648 = vdwg.mxu0
        %v2649 = vrcp.pop %v2646
        %2650 = vmatprep.subr.mxu0 0.0
        %2651 = vmatpush1.msra.mxu0 %v2548
        %2652 = vmatprep.subr.mxu0 0.0
        %2653 = vmatpush1.msra.mxu0 %v2550
        %2654 = vmatprep.subr.mxu0 0.0
        %2655 = vmatpush1.msra.mxu0 %v2552
        %2656 = vmatprep.subr.mxu0 0.0
        %2657 = vmatpush1.msra.mxu0 %v2554
        %2658 = vmatprep.subr.mxu0 0.0
        %2659 = vmatpush1.msra.mxu0 %v2556
        %2660 = vmatprep.subr.mxu0 0.0
        %2661 = vmatpush1.msra.mxu0 %v2558
        %2662 = vmatprep.subr.mxu0 0.0
        %2663 = vmatpush1.msra.mxu0 %v2560
        %2664 = vmatprep.subr.mxu0 0.0
        %2665 = vmatpush1.msra.mxu0 %v2562
        %2666 = vmatprep.subr.mxu0 0.0
        %2667 = vmatpush1.msra.mxu0 %v2564
        %2668 = vmatprep.subr.mxu0 0.0
        %2669 = vmatpush1.msra.mxu0 %v2566
        %2670 = vmatprep.subr.mxu0 0.0
        %2671 = vmatpush1.msra.mxu0 %v2568
        %2672 = vmatprep.subr.mxu0 0.0
        %2673 = vmatpush1.msra.mxu0 %v2570
        %2674 = vmatprep.subr.mxu0 0.0
        %2675 = vmatpush1.msra.mxu0 %v2572
        %2676 = vmatprep.subr.mxu0 0.0
        %2677 = vmatpush1.msra.mxu0 %v2574
        %2678 = vmatprep.subr.mxu0 0.0
        %2679 = vmatpush1.msra.mxu0 %v2576
        %2680 = vmatprep.subr.mxu0 0.0
        %2681 = vmatpush1.msra.mxu0 %v2578
        %2682 = vmatprep.subr.mxu0 0.0
        %2683 = vmatpush1.msra.mxu0 0.0
        %2684 = vmatprep.subr.mxu0 0.0
        %2685 = vmatpush1.msra.mxu0 0.0
        %2686 = vmatprep.subr.mxu0 0.0
        %2687 = vmatpush1.msra.mxu0 0.0
        %2688 = vmatprep.subr.mxu0 0.0
        %2689 = vmatpush1.msra.mxu0 0.0
        %2690 = vmatprep.subr.mxu0 0.0
        %2691 = vmatpush1.msra.mxu0 0.0
        %2692 = vmatprep.subr.mxu0 0.0
        %2693 = vmatpush1.msra.mxu0 0.0
        %2694 = vmatprep.subr.mxu0 0.0
        %2695 = vmatpush1.msra.mxu0 0.0
        %2696 = vmatprep.subr.mxu0 0.0
        %2697 = vmatpush1.msra.mxu0 0.0
        %2698 = vmatprep.subr.mxu0 0.0
        %2699 = vmatpush1.msra.mxu0 0.0
        %2700 = vmatprep.subr.mxu0 0.0
        %2701 = vmatpush1.msra.mxu0 0.0
        %2702 = vmatprep.subr.mxu0 0.0
        %2703 = vmatpush1.msra.mxu0 0.0
        %2704 = vmatprep.subr.mxu0 0.0
        %2705 = vmatpush1.msra.mxu0 0.0
        %2706 = vmatprep.subr.mxu0 0.0
        %2707 = vmatpush1.msra.mxu0 0.0
        %2708 = vmatprep.subr.mxu0 0.0
        %2709 = vmatpush1.msra.mxu0 0.0
        %2710 = vmatprep.subr.mxu0 0.0
        %2711 = vmatpush1.msra.mxu0 0.0
        %2712 = vmatprep.subr.mxu0 0.0
        %2713 = vmatpush1.msra.mxu0 0.0
        %2714 = vmatprep.mubr.f32.mxu0 0.0
        %2715 = vmatmul.mubr.f32.gmra.mrb[0].mxu0 %v2649
        %v2716 = vpop.f32.mrb[0].mxu0
        %v2717 = vadd.f32 1e-09, %v2716
        %v2718 = vpop.f32.mrb[0].mxu0
        %2719 = vdwg.mxu0
        %v2720 = vrcp.pop %v2717
        %v2721 = vlaneseq
        %v2722 = vshrl.u32 %v2721, 7
        %v2723 = vsub.s32 0, %v2722
        %v2724 = vrot.slane %v2649, %v2723
        %v2725 = vmul.f32 %v2256, %v2724
        %v2726 = vmul.f32 %v2261, %v2724
        %v2727 = vmul.f32 %v2266, %v2724
        %v2728 = vmul.f32 %v2271, %v2724
        %2729 = vmatprep.subr.mxu0 0.0
        %2730 = vmatpush1.msra.mxu0 %v2548
        %2731 = vmatprep.subr.mxu0 0.0
        %2732 = vmatpush1.msra.mxu0 %v2550
        %2733 = vmatprep.subr.mxu0 0.0
        %2734 = vmatpush1.msra.mxu0 %v2552
        %2735 = vmatprep.subr.mxu0 0.0
        %2736 = vmatpush1.msra.mxu0 %v2554
        %2737 = vmatprep.subr.mxu0 0.0
        %2738 = vmatpush1.msra.mxu0 %v2556
        %2739 = vmatprep.subr.mxu0 0.0
        %2740 = vmatpush1.msra.mxu0 %v2558
        %2741 = vmatprep.subr.mxu0 0.0
        %2742 = vmatpush1.msra.mxu0 %v2560
        %2743 = vmatprep.subr.mxu0 0.0
        %2744 = vmatpush1.msra.mxu0 %v2562
        %2745 = vmatprep.subr.mxu0 0.0
        %2746 = vmatpush1.msra.mxu0 %v2564
        %2747 = vmatprep.subr.mxu0 0.0
        %2748 = vmatpush1.msra.mxu0 %v2566
        %2749 = vmatprep.subr.mxu0 0.0
        %2750 = vmatpush1.msra.mxu0 %v2568
        %2751 = vmatprep.subr.mxu0 0.0
        %2752 = vmatpush1.msra.mxu0 %v2570
        %2753 = vmatprep.subr.mxu0 0.0
        %2754 = vmatpush1.msra.mxu0 %v2572
        %2755 = vmatprep.subr.mxu0 0.0
        %2756 = vmatpush1.msra.mxu0 %v2574
        %2757 = vmatprep.subr.mxu0 0.0
        %2758 = vmatpush1.msra.mxu0 %v2576
        %2759 = vmatprep.subr.mxu0 0.0
        %2760 = vmatpush1.msra.mxu0 %v2578
        %2761 = vmatprep.subr.mxu0 0.0
        %2762 = vmatpush1.msra.mxu0 0.0
        %2763 = vmatprep.subr.mxu0 0.0
        %2764 = vmatpush1.msra.mxu0 0.0
        %2765 = vmatprep.subr.mxu0 0.0
        %2766 = vmatpush1.msra.mxu0 0.0
        %2767 = vmatprep.subr.mxu0 0.0
        %2768 = vmatpush1.msra.mxu0 0.0
        %2769 = vmatprep.subr.mxu0 0.0
        %2770 = vmatpush1.msra.mxu0 0.0
        %2771 = vmatprep.subr.mxu0 0.0
        %2772 = vmatpush1.msra.mxu0 0.0
        %2773 = vmatprep.subr.mxu0 0.0
        %2774 = vmatpush1.msra.mxu0 0.0
        %2775 = vmatprep.subr.mxu0 0.0
        %2776 = vmatpush1.msra.mxu0 0.0
        %2777 = vmatprep.subr.mxu0 0.0
        %2778 = vmatpush1.msra.mxu0 0.0
        %2779 = vmatprep.subr.mxu0 0.0
        %2780 = vmatpush1.msra.mxu0 0.0
        %2781 = vmatprep.subr.mxu0 0.0
        %2782 = vmatpush1.msra.mxu0 0.0
        %2783 = vmatprep.subr.mxu0 0.0
        %2784 = vmatpush1.msra.mxu0 0.0
        %2785 = vmatprep.subr.mxu0 0.0
        %2786 = vmatpush1.msra.mxu0 0.0
        %2787 = vmatprep.subr.mxu0 0.0
        %2788 = vmatpush1.msra.mxu0 0.0
        %2789 = vmatprep.subr.mxu0 0.0
        %2790 = vmatpush1.msra.mxu0 0.0
        %2791 = vmatprep.subr.mxu0 0.0
        %2792 = vmatpush1.msra.mxu0 0.0
        %2793 = vmatprep.mubr.f32.mxu0 0.0
        %2794 = vmatmul.mubr.f32.gmra.mrb[0].mxu0 %v2725
        %v2795 = vpop.f32.mrb[0].mxu0
        %v2796 = vadd.f32 0.0, %v2795
        %v2797 = vpop.f32.mrb[0].mxu0
        %2798 = vmatprep.mubr.f32.mxu0 0.0
        %2799 = vmatmul.mubr.f32.gmra.mrb[0].mxu0 %v2726
        %v2800 = vpop.f32.mrb[0].mxu0
        %v2801 = vadd.f32 0.0, %v2800
        %v2802 = vpop.f32.mrb[0].mxu0
        %2803 = vmatprep.mubr.f32.mxu0 0.0
        %2804 = vmatmul.mubr.f32.gmra.mrb[0].mxu0 %v2727
        %v2805 = vpop.f32.mrb[0].mxu0
        %v2806 = vadd.f32 0.0, %v2805
        %v2807 = vpop.f32.mrb[0].mxu0
        %2808 = vmatprep.mubr.f32.mxu0 0.0
        %2809 = vmatmul.mubr.f32.gmra.mrb[0].mxu0 %v2728
        %v2810 = vpop.f32.mrb[0].mxu0
        %v2811 = vadd.f32 0.0, %v2810
        %v2812 = vpop.f32.mrb[0].mxu0
        %2813 = vdwg.mxu0
        %v2814 = vlaneseq
        %v2815 = vshrl.u32 %v2814, 7
        %v2816 = vsub.s32 0, %v2815
        %v2817 = vrot.slane %v2720, %v2816
        %v2818 = vmul.f32 %v2796, %v2817
        %v2819 = vmul.f32 %v2801, %v2817
        %v2820 = vmul.f32 %v2806, %v2817
        %v2821 = vmul.f32 %v2811, %v2817
        %v2822 = vsub.f32 %v2140, %v2818
        %v2823 = vsub.f32 %v2141, %v2819
        %v2824 = vsub.f32 %v2142, %v2820
        %v2825 = vsub.f32 %v2143, %v2821
        %s2826 = scalar_lea.vmem [#allocation5], 224
        %v2827 = vld [vmem:[%s2826] sm:$0xff]
        %v2828 = vld [vmem:[%s2826 + $0x8] sm:$0xff]
        %v2829 = vld [vmem:[%s2826 + $0x10] sm:$0xff]
        %v2830 = vld [vmem:[%s2826 + $0x18] sm:$0xff]
        %2831 = vset.pattern.permute.xlu0 11
        %2832 = vperm.xlu0 %2831, %v2148
        %v2833 = vpop.permute.xlu0 %2832
        %2835 = vset.pattern.permute.xlu0 11
        %2836 = vperm.xlu0 %2835, %v2149
        %v2837 = vpop.permute.xlu0 %2836
        %2839 = vset.pattern.permute.xlu0 11
        %2840 = vperm.xlu0 %2839, %v2150
        %v2841 = vpop.permute.xlu0 %2840
        %2843 = vset.pattern.permute.xlu0 11
        %2844 = vperm.xlu0 %2843, %v2151
        %v2845 = vpop.permute.xlu0 %2844
        %v2848 = vsel %vm236, %v2827, 0
        %v2851 = vsel %vm236, %v2828, 0
        %v2854 = vsel %vm236, %v2829, 0
        %v2857 = vsel %vm236, %v2830, 0
        %2859 = vmatprep.subr.mxu0 0.0
        %2860 = vmatpush1.msra.mxu0 %v2822
        %2861 = vmatprep.subr.mxu0 0.0
        %2862 = vmatpush1.msra.mxu0 %v2823
        %2863 = vmatprep.subr.mxu0 0.0
        %2864 = vmatpush1.msra.mxu0 %v2824
        %2865 = vmatprep.subr.mxu0 0.0
        %2866 = vmatpush1.msra.mxu0 %v2825
        %2867 = vmatprep.subr.mxu0 0.0
        %2868 = vmatpush1.msra.mxu0 0.0
        %2869 = vmatprep.subr.mxu0 0.0
        %2870 = vmatpush1.msra.mxu0 0.0
        %2871 = vmatprep.subr.mxu0 0.0
        %2872 = vmatpush1.msra.mxu0 0.0
        %2873 = vmatprep.subr.mxu0 0.0
        %2874 = vmatpush1.msra.mxu0 0.0
        %2875 = vmatprep.subr.mxu0 0.0
        %2876 = vmatpush1.msra.mxu0 0.0
        %2877 = vmatprep.subr.mxu0 0.0
        %2878 = vmatpush1.msra.mxu0 0.0
        %2879 = vmatprep.subr.mxu0 0.0
        %2880 = vmatpush1.msra.mxu0 0.0
        %2881 = vmatprep.subr.mxu0 0.0
        %2882 = vmatpush1.msra.mxu0 0.0
        %2883 = vmatprep.subr.mxu0 0.0
        %2884 = vmatpush1.msra.mxu0 0.0
        %2885 = vmatprep.subr.mxu0 0.0
        %2886 = vmatpush1.msra.mxu0 0.0
        %2887 = vmatprep.subr.mxu0 0.0
        %2888 = vmatpush1.msra.mxu0 0.0
        %2889 = vmatprep.subr.mxu0 0.0
        %2890 = vmatpush1.msra.mxu0 0.0
        %2891 = vmatprep.subr.mxu0 0.0
        %2892 = vmatpush1.msra.mxu0 0.0
        %2893 = vmatprep.subr.mxu0 0.0
        %2894 = vmatpush1.msra.mxu0 0.0
        %2895 = vmatprep.subr.mxu0 0.0
        %2896 = vmatpush1.msra.mxu0 0.0
        %2897 = vmatprep.subr.mxu0 0.0
        %2898 = vmatpush1.msra.mxu0 0.0
        %2899 = vmatprep.subr.mxu0 0.0
        %2900 = vmatpush1.msra.mxu0 0.0
        %2901 = vmatprep.subr.mxu0 0.0
        %2902 = vmatpush1.msra.mxu0 0.0
        %2903 = vmatprep.subr.mxu0 0.0
        %2904 = vmatpush1.msra.mxu0 0.0
        %2905 = vmatprep.subr.mxu0 0.0
        %2906 = vmatpush1.msra.mxu0 0.0
        %2907 = vmatprep.subr.mxu0 0.0
        %2908 = vmatpush1.msra.mxu0 0.0
        %2909 = vmatprep.subr.mxu0 0.0
        %2910 = vmatpush1.msra.mxu0 0.0
        %2911 = vmatprep.subr.mxu0 0.0
        %2912 = vmatpush1.msra.mxu0 0.0
        %2913 = vmatprep.subr.mxu0 0.0
        %2914 = vmatpush1.msra.mxu0 0.0
        %2915 = vmatprep.subr.mxu0 0.0
        %2916 = vmatpush1.msra.mxu0 0.0
        %2917 = vmatprep.subr.mxu0 0.0
        %2918 = vmatpush1.msra.mxu0 0.0
        %2919 = vmatprep.subr.mxu0 0.0
        %2920 = vmatpush1.msra.mxu0 0.0
        %2921 = vmatprep.subr.mxu0 0.0
        %2922 = vmatpush1.msra.mxu0 0.0
        %2923 = vmatprep.mubr.f32.mxu0 0.0
        %2924 = vmatmul.mubr.f32.gmra.mrb[0].mxu0 %v2848
        %v2925 = vpop.f32.mrb[0].mxu0
        %v2926 = vadd.f32 %v2833, %v2925
        %v2927 = vpop.f32.mrb[0].mxu0
        %2928 = vmatprep.mubr.f32.mxu0 0.0
        %2929 = vmatmul.mubr.f32.gmra.mrb[0].mxu0 %v2851
        %v2930 = vpop.f32.mrb[0].mxu0
        %v2931 = vadd.f32 %v2837, %v2930
        %v2932 = vpop.f32.mrb[0].mxu0
        %2933 = vmatprep.mubr.f32.mxu0 0.0
        %2934 = vmatmul.mubr.f32.gmra.mrb[0].mxu0 %v2854
        %v2935 = vpop.f32.mrb[0].mxu0
        %v2936 = vadd.f32 %v2841, %v2935
        %v2937 = vpop.f32.mrb[0].mxu0
        %2938 = vmatprep.mubr.f32.mxu0 0.0
        %2939 = vmatmul.mubr.f32.gmra.mrb[0].mxu0 %v2857
        %v2940 = vpop.f32.mrb[0].mxu0
        %v2941 = vadd.f32 %v2845, %v2940
        %v2942 = vpop.f32.mrb[0].mxu0
        %2943 = vdwg.mxu0
        %v2944 = vmax.f32 %v2926, 0.0
        %v2945 = vmax.f32 %v2931, 0.0
        %v2946 = vmax.f32 %v2936, 0.0
        %v2947 = vmax.f32 %v2941, 0.0
        %2948 = vset.pattern.permute.xlu0 12
        %2949 = vperm.xlu0 %2948, %v2148
        %v2950 = vpop.permute.xlu0 %2949
        %2952 = vset.pattern.permute.xlu0 12
        %2953 = vperm.xlu0 %2952, %v2149
        %v2954 = vpop.permute.xlu0 %2953
        %2956 = vset.pattern.permute.xlu0 12
        %2957 = vperm.xlu0 %2956, %v2150
        %v2958 = vpop.permute.xlu0 %2957
        %2960 = vset.pattern.permute.xlu0 12
        %2961 = vperm.xlu0 %2960, %v2151
        %v2962 = vpop.permute.xlu0 %2961
        %v2964 = vmul.f32 %v2950, %v2944
        %v2965 = vmul.f32 %v2954, %v2945
        %v2966 = vmul.f32 %v2958, %v2946
        %v2967 = vmul.f32 %v2962, %v2947
        %v2968 = vadd.f32 %v2140, %v2964
        %v2969 = vadd.f32 %v2141, %v2965
        %v2970 = vadd.f32 %v2142, %v2966
        %v2971 = vadd.f32 %v2143, %v2967
        %2972 = vset.pattern.permute.xlu0 13
        %2973 = vperm.xlu0 %2972, %v2148
        %v2974 = vpop.permute.xlu0 %2973
        %2976 = vset.pattern.permute.xlu0 13
        %2977 = vperm.xlu0 %2976, %v2149
        %v2978 = vpop.permute.xlu0 %2977
        %2980 = vset.pattern.permute.xlu0 13
        %2981 = vperm.xlu0 %2980, %v2150
        %v2982 = vpop.permute.xlu0 %2981
        %2984 = vset.pattern.permute.xlu0 13
        %2985 = vperm.xlu0 %2984, %v2151
        %v2986 = vpop.permute.xlu0 %2985
        %v2988 = vadd.f32 %v2968, %v2974
        %v2989 = vadd.f32 %v2969, %v2978
        %v2990 = vadd.f32 %v2970, %v2982
        %v2991 = vadd.f32 %v2971, %v2986
        %2992 = vst [vmem:[%s203 + $0x40] sm:$0xff] %v2988
        %2993 = vst [vmem:[%s203 + $0x48] sm:$0xff] %v2989
        %2994 = vst [vmem:[%s203 + $0x50] sm:$0xff] %v2990
        %2995 = vst [vmem:[%s203 + $0x58] sm:$0xff] %v2991
        %v2996 = vld [vmem:[%s2] sm:$0xff]
        %v2997 = vld [vmem:[%s2 + $0x8] sm:$0xff]
        %v2998 = vld [vmem:[%s2 + $0x10] sm:$0xff]
        %v2999 = vld [vmem:[%s2 + $0x18] sm:$0xff]
        %s3000 = scalar_lea.vmem [#allocation5], 256
        %v3001 = vld [vmem:[%s3000] sm:$0xff]
        %v3002 = vld [vmem:[%s3000 + $0x8] sm:$0xff]
        %v3003 = vld [vmem:[%s3000 + $0x10] sm:$0xff]
        %v3004 = vld [vmem:[%s3000 + $0x18] sm:$0xff]
        %3006 = vset.pattern.permute.xlu0 14
        %3007 = vperm.xlu0 %3006, %v2996
        %v3008 = vpop.permute.xlu0 %3007
        %3011 = vset.pattern.permute.xlu0 14
        %3012 = vperm.xlu0 %3011, %v2997
        %v3013 = vpop.permute.xlu0 %3012
        %3016 = vset.pattern.permute.xlu0 14
        %3017 = vperm.xlu0 %3016, %v2998
        %v3018 = vpop.permute.xlu0 %3017
        %3021 = vset.pattern.permute.xlu0 14
        %3022 = vperm.xlu0 %3021, %v2999
        %v3023 = vpop.permute.xlu0 %3022
        %v3026 = vsel %vm236, %v3001, 0
        %v3029 = vsel %vm236, %v3002, 0
        %v3032 = vsel %vm236, %v3003, 0
        %v3035 = vsel %vm236, %v3004, 0
        %3037 = vmatprep.subr.mxu0 0.0
        %3038 = vmatpush1.msra.mxu0 %v2988
        %3039 = vmatprep.subr.mxu0 0.0
        %3040 = vmatpush1.msra.mxu0 %v2989
        %3041 = vmatprep.subr.mxu0 0.0
        %3042 = vmatpush1.msra.mxu0 %v2990
        %3043 = vmatprep.subr.mxu0 0.0
        %3044 = vmatpush1.msra.mxu0 %v2991
        %3045 = vmatprep.subr.mxu0 0.0
        %3046 = vmatpush1.msra.mxu0 0.0
        %3047 = vmatprep.subr.mxu0 0.0
        %3048 = vmatpush1.msra.mxu0 0.0
        %3049 = vmatprep.subr.mxu0 0.0
        %3050 = vmatpush1.msra.mxu0 0.0
        %3051 = vmatprep.subr.mxu0 0.0
        %3052 = vmatpush1.msra.mxu0 0.0
        %3053 = vmatprep.subr.mxu0 0.0
        %3054 = vmatpush1.msra.mxu0 0.0
        %3055 = vmatprep.subr.mxu0 0.0
        %3056 = vmatpush1.msra.mxu0 0.0
        %3057 = vmatprep.subr.mxu0 0.0
        %3058 = vmatpush1.msra.mxu0 0.0
        %3059 = vmatprep.subr.mxu0 0.0
        %3060 = vmatpush1.msra.mxu0 0.0
        %3061 = vmatprep.subr.mxu0 0.0
        %3062 = vmatpush1.msra.mxu0 0.0
        %3063 = vmatprep.subr.mxu0 0.0
        %3064 = vmatpush1.msra.mxu0 0.0
        %3065 = vmatprep.subr.mxu0 0.0
        %3066 = vmatpush1.msra.mxu0 0.0
        %3067 = vmatprep.subr.mxu0 0.0
        %3068 = vmatpush1.msra.mxu0 0.0
        %3069 = vmatprep.subr.mxu0 0.0
        %3070 = vmatpush1.msra.mxu0 0.0
        %3071 = vmatprep.subr.mxu0 0.0
        %3072 = vmatpush1.msra.mxu0 0.0
        %3073 = vmatprep.subr.mxu0 0.0
        %3074 = vmatpush1.msra.mxu0 0.0
        %3075 = vmatprep.subr.mxu0 0.0
        %3076 = vmatpush1.msra.mxu0 0.0
        %3077 = vmatprep.subr.mxu0 0.0
        %3078 = vmatpush1.msra.mxu0 0.0
        %3079 = vmatprep.subr.mxu0 0.0
        %3080 = vmatpush1.msra.mxu0 0.0
        %3081 = vmatprep.subr.mxu0 0.0
        %3082 = vmatpush1.msra.mxu0 0.0
        %3083 = vmatprep.subr.mxu0 0.0
        %3084 = vmatpush1.msra.mxu0 0.0
        %3085 = vmatprep.subr.mxu0 0.0
        %3086 = vmatpush1.msra.mxu0 0.0
        %3087 = vmatprep.subr.mxu0 0.0
        %3088 = vmatpush1.msra.mxu0 0.0
        %3089 = vmatprep.subr.mxu0 0.0
        %3090 = vmatpush1.msra.mxu0 0.0
        %3091 = vmatprep.subr.mxu0 0.0
        %3092 = vmatpush1.msra.mxu0 0.0
        %3093 = vmatprep.subr.mxu0 0.0
        %3094 = vmatpush1.msra.mxu0 0.0
        %3095 = vmatprep.subr.mxu0 0.0
        %3096 = vmatpush1.msra.mxu0 0.0
        %3097 = vmatprep.subr.mxu0 0.0
        %3098 = vmatpush1.msra.mxu0 0.0
        %3099 = vmatprep.subr.mxu0 0.0
        %3100 = vmatpush1.msra.mxu0 0.0
        %3101 = vmatprep.mubr.f32.mxu0 0.0
        %3102 = vmatmul.mubr.f32.gmra.mrb[0].mxu0 %v3026
        %v3103 = vpop.f32.mrb[0].mxu0
        %v3104 = vadd.f32 %v3008, %v3103
        %v3105 = vpop.f32.mrb[0].mxu0
        %3106 = vmatprep.mubr.f32.mxu0 0.0
        %3107 = vmatmul.mubr.f32.gmra.mrb[0].mxu0 %v3029
        %v3108 = vpop.f32.mrb[0].mxu0
        %v3109 = vadd.f32 %v3013, %v3108
        %v3110 = vpop.f32.mrb[0].mxu0
        %3111 = vmatprep.mubr.f32.mxu0 0.0
        %3112 = vmatmul.mubr.f32.gmra.mrb[0].mxu0 %v3032
        %v3113 = vpop.f32.mrb[0].mxu0
        %v3114 = vadd.f32 %v3018, %v3113
        %v3115 = vpop.f32.mrb[0].mxu0
        %3116 = vmatprep.mubr.f32.mxu0 0.0
        %3117 = vmatmul.mubr.f32.gmra.mrb[0].mxu0 %v3035
        %v3118 = vpop.f32.mrb[0].mxu0
        %v3119 = vadd.f32 %v3023, %v3118
        %v3120 = vpop.f32.mrb[0].mxu0
        %3121 = vdwg.mxu0
        %3122 = vxpose.xlu0.b32.start [1/16] %v2988, 128
        %3123 = vxpose.xlu0.b32.cont [2/16] %v2989, 128
        %3124 = vxpose.xlu0.b32.cont [3/16] %v2990, 128
        %3125 = vxpose.xlu0.b32.cont [4/16] %v2991, 128
        %3126 = vxpose.xlu0.b32.cont [5/16] 0.0, 128
        %3127 = vxpose.xlu0.b32.cont [6/16] 0.0, 128
        %3128 = vxpose.xlu0.b32.cont [7/16] 0.0, 128
        %3129 = vxpose.xlu0.b32.cont [8/16] 0.0, 128
        %3130 = vxpose.xlu0.b32.cont [9/16] 0.0, 128
        %3131 = vxpose.xlu0.b32.cont [10/16] 0.0, 128
        %3132 = vxpose.xlu0.b32.cont [11/16] 0.0, 128
        %3133 = vxpose.xlu0.b32.cont [12/16] 0.0, 128
        %3134 = vxpose.xlu0.b32.cont [13/16] 0.0, 128
        %3135 = vxpose.xlu0.b32.cont [14/16] 0.0, 128
        %3136 = vxpose.xlu0.b32.cont [15/16] 0.0, 128
        %3137 = vxpose.xlu0.b32.end [16/16] 0.0, 128
        %v3138 = vpop.trf.xlu0
        %v3139 = vpop.trf.xlu0
        %v3140 = vpop.trf.xlu0
        %v3141 = vpop.trf.xlu0
        %v3142 = vpop.trf.xlu0
        %v3143 = vpop.trf.xlu0
        %v3144 = vpop.trf.xlu0
        %v3145 = vpop.trf.xlu0
        %v3146 = vpop.trf.xlu0
        %v3147 = vpop.trf.xlu0
        %v3148 = vpop.trf.xlu0
        %v3149 = vpop.trf.xlu0
        %v3150 = vpop.trf.xlu0
        %v3151 = vpop.trf.xlu0
        %v3152 = vpop.trf.xlu0
        %v3153 = vpop.trf.xlu0
        %v3155 = vsel %vm236, %v3138, 0
        %v3158 = vsel %vm236, %v3139, 0
        %v3161 = vsel %vm236, %v3140, 0
        %v3164 = vsel %vm236, %v3141, 0
        %v3167 = vsel %vm236, %v3142, 0
        %v3170 = vsel %vm236, %v3143, 0
        %v3173 = vsel %vm236, %v3144, 0
        %v3176 = vsel %vm236, %v3145, 0
        %v3179 = vsel %vm236, %v3146, 0
        %v3182 = vsel %vm236, %v3147, 0
        %v3185 = vsel %vm236, %v3148, 0
        %v3188 = vsel %vm236, %v3149, 0
        %v3191 = vsel %vm236, %v3150, 0
        %v3194 = vsel %vm236, %v3151, 0
        %v3197 = vsel %vm236, %v3152, 0
        %v3200 = vsel %vm236, %v3153, 0
        %3202 = vmatprep.subr.mxu0 0.0
        %3203 = vmatpush1.msra.mxu0 %v3104
        %3204 = vmatprep.subr.mxu0 0.0
        %3205 = vmatpush1.msra.mxu0 %v3109
        %3206 = vmatprep.subr.mxu0 0.0
        %3207 = vmatpush1.msra.mxu0 %v3114
        %3208 = vmatprep.subr.mxu0 0.0
        %3209 = vmatpush1.msra.mxu0 %v3119
        %3210 = vmatprep.subr.mxu0 0.0
        %3211 = vmatpush1.msra.mxu0 0.0
        %3212 = vmatprep.subr.mxu0 0.0
        %3213 = vmatpush1.msra.mxu0 0.0
        %3214 = vmatprep.subr.mxu0 0.0
        %3215 = vmatpush1.msra.mxu0 0.0
        %3216 = vmatprep.subr.mxu0 0.0
        %3217 = vmatpush1.msra.mxu0 0.0
        %3218 = vmatprep.subr.mxu0 0.0
        %3219 = vmatpush1.msra.mxu0 0.0
        %3220 = vmatprep.subr.mxu0 0.0
        %3221 = vmatpush1.msra.mxu0 0.0
        %3222 = vmatprep.subr.mxu0 0.0
        %3223 = vmatpush1.msra.mxu0 0.0
        %3224 = vmatprep.subr.mxu0 0.0
        %3225 = vmatpush1.msra.mxu0 0.0
        %3226 = vmatprep.subr.mxu0 0.0
        %3227 = vmatpush1.msra.mxu0 0.0
        %3228 = vmatprep.subr.mxu0 0.0
        %3229 = vmatpush1.msra.mxu0 0.0
        %3230 = vmatprep.subr.mxu0 0.0
        %3231 = vmatpush1.msra.mxu0 0.0
        %3232 = vmatprep.subr.mxu0 0.0
        %3233 = vmatpush1.msra.mxu0 0.0
        %3234 = vmatprep.subr.mxu0 0.0
        %3235 = vmatpush1.msra.mxu0 0.0
        %3236 = vmatprep.subr.mxu0 0.0
        %3237 = vmatpush1.msra.mxu0 0.0
        %3238 = vmatprep.subr.mxu0 0.0
        %3239 = vmatpush1.msra.mxu0 0.0
        %3240 = vmatprep.subr.mxu0 0.0
        %3241 = vmatpush1.msra.mxu0 0.0
        %3242 = vmatprep.subr.mxu0 0.0
        %3243 = vmatpush1.msra.mxu0 0.0
        %3244 = vmatprep.subr.mxu0 0.0
        %3245 = vmatpush1.msra.mxu0 0.0
        %3246 = vmatprep.subr.mxu0 0.0
        %3247 = vmatpush1.msra.mxu0 0.0
        %3248 = vmatprep.subr.mxu0 0.0
        %3249 = vmatpush1.msra.mxu0 0.0
        %3250 = vmatprep.subr.mxu0 0.0
        %3251 = vmatpush1.msra.mxu0 0.0
        %3252 = vmatprep.subr.mxu0 0.0
        %3253 = vmatpush1.msra.mxu0 0.0
        %3254 = vmatprep.subr.mxu0 0.0
        %3255 = vmatpush1.msra.mxu0 0.0
        %3256 = vmatprep.subr.mxu0 0.0
        %3257 = vmatpush1.msra.mxu0 0.0
        %3258 = vmatprep.subr.mxu0 0.0
        %3259 = vmatpush1.msra.mxu0 0.0
        %3260 = vmatprep.subr.mxu0 0.0
        %3261 = vmatpush1.msra.mxu0 0.0
        %3262 = vmatprep.subr.mxu0 0.0
        %3263 = vmatpush1.msra.mxu0 0.0
        %3264 = vmatprep.subr.mxu0 0.0
        %3265 = vmatpush1.msra.mxu0 0.0
        %3266 = vmatprep.mubr.f32.mxu0 0.0
        %3267 = vmatmul.mubr.f32.gmra.mrb[0].mxu0 %v3155
        %v3268 = vpop.f32.mrb[0].mxu0
        %v3269 = vadd.f32 0.0, %v3268
        %v3270 = vpop.f32.mrb[0].mxu0
        %3271 = vmatprep.mubr.f32.mxu0 0.0
        %3272 = vmatmul.mubr.f32.gmra.mrb[0].mxu0 %v3158
        %v3273 = vpop.f32.mrb[0].mxu0
        %v3274 = vadd.f32 0.0, %v3273
        %v3275 = vpop.f32.mrb[0].mxu0
        %3276 = vmatprep.mubr.f32.mxu0 0.0
        %3277 = vmatmul.mubr.f32.gmra.mrb[0].mxu0 %v3161
        %v3278 = vpop.f32.mrb[0].mxu0
        %v3279 = vadd.f32 0.0, %v3278
        %v3280 = vpop.f32.mrb[0].mxu0
        %3281 = vmatprep.mubr.f32.mxu0 0.0
        %3282 = vmatmul.mubr.f32.gmra.mrb[0].mxu0 %v3164
        %v3283 = vpop.f32.mrb[0].mxu0
        %v3284 = vadd.f32 0.0, %v3283
        %v3285 = vpop.f32.mrb[0].mxu0
        %3286 = vmatprep.mubr.f32.mxu0 0.0
        %3287 = vmatmul.mubr.f32.gmra.mrb[0].mxu0 %v3167
        %v3288 = vpop.f32.mrb[0].mxu0
        %v3289 = vadd.f32 0.0, %v3288
        %v3290 = vpop.f32.mrb[0].mxu0
        %3291 = vmatprep.mubr.f32.mxu0 0.0
        %3292 = vmatmul.mubr.f32.gmra.mrb[0].mxu0 %v3170
        %v3293 = vpop.f32.mrb[0].mxu0
        %v3294 = vadd.f32 0.0, %v3293
        %v3295 = vpop.f32.mrb[0].mxu0
        %3296 = vmatprep.mubr.f32.mxu0 0.0
        %3297 = vmatmul.mubr.f32.gmra.mrb[0].mxu0 %v3173
        %v3298 = vpop.f32.mrb[0].mxu0
        %v3299 = vadd.f32 0.0, %v3298
        %v3300 = vpop.f32.mrb[0].mxu0
        %3301 = vmatprep.mubr.f32.mxu0 0.0
        %3302 = vmatmul.mubr.f32.gmra.mrb[0].mxu0 %v3176
        %v3303 = vpop.f32.mrb[0].mxu0
        %v3304 = vadd.f32 0.0, %v3303
        %v3305 = vpop.f32.mrb[0].mxu0
        %3306 = vmatprep.mubr.f32.mxu0 0.0
        %3307 = vmatmul.mubr.f32.gmra.mrb[0].mxu0 %v3179
        %v3308 = vpop.f32.mrb[0].mxu0
        %v3309 = vadd.f32 0.0, %v3308
        %v3310 = vpop.f32.mrb[0].mxu0
        %3311 = vmatprep.mubr.f32.mxu0 0.0
        %3312 = vmatmul.mubr.f32.gmra.mrb[0].mxu0 %v3182
        %v3313 = vpop.f32.mrb[0].mxu0
        %v3314 = vadd.f32 0.0, %v3313
        %v3315 = vpop.f32.mrb[0].mxu0
        %3316 = vmatprep.mubr.f32.mxu0 0.0
        %3317 = vmatmul.mubr.f32.gmra.mrb[0].mxu0 %v3185
        %v3318 = vpop.f32.mrb[0].mxu0
        %v3319 = vadd.f32 0.0, %v3318
        %v3320 = vpop.f32.mrb[0].mxu0
        %3321 = vmatprep.mubr.f32.mxu0 0.0
        %3322 = vmatmul.mubr.f32.gmra.mrb[0].mxu0 %v3188
        %v3323 = vpop.f32.mrb[0].mxu0
        %v3324 = vadd.f32 0.0, %v3323
        %v3325 = vpop.f32.mrb[0].mxu0
        %3326 = vmatprep.mubr.f32.mxu0 0.0
        %3327 = vmatmul.mubr.f32.gmra.mrb[0].mxu0 %v3191
        %v3328 = vpop.f32.mrb[0].mxu0
        %v3329 = vadd.f32 0.0, %v3328
        %v3330 = vpop.f32.mrb[0].mxu0
        %3331 = vmatprep.mubr.f32.mxu0 0.0
        %3332 = vmatmul.mubr.f32.gmra.mrb[0].mxu0 %v3194
        %v3333 = vpop.f32.mrb[0].mxu0
        %v3334 = vadd.f32 0.0, %v3333
        %v3335 = vpop.f32.mrb[0].mxu0
        %3336 = vmatprep.mubr.f32.mxu0 0.0
        %3337 = vmatmul.mubr.f32.gmra.mrb[0].mxu0 %v3197
        %v3338 = vpop.f32.mrb[0].mxu0
        %v3339 = vadd.f32 0.0, %v3338
        %v3340 = vpop.f32.mrb[0].mxu0
        %3341 = vmatprep.mubr.f32.mxu0 0.0
        %3342 = vmatmul.mubr.f32.gmra.mrb[0].mxu0 %v3200
        %v3343 = vpop.f32.mrb[0].mxu0
        %v3344 = vadd.f32 0.0, %v3343
        %v3345 = vpop.f32.mrb[0].mxu0
        %3346 = vdwg.mxu0
        %3347 = vmax.xlane.f32.xlu0 %v3269
        %v3348 = vpop.xlane.xlu0 %3347
        %3349 = vmax.xlane.f32.xlu0 %v3274
        %v3350 = vpop.xlane.xlu0 %3349
        %3351 = vmax.xlane.f32.xlu0 %v3279
        %v3352 = vpop.xlane.xlu0 %3351
        %3353 = vmax.xlane.f32.xlu0 %v3284
        %v3354 = vpop.xlane.xlu0 %3353
        %3355 = vmax.xlane.f32.xlu0 %v3289
        %v3356 = vpop.xlane.xlu0 %3355
        %3357 = vmax.xlane.f32.xlu0 %v3294
        %v3358 = vpop.xlane.xlu0 %3357
        %3359 = vmax.xlane.f32.xlu0 %v3299
        %v3360 = vpop.xlane.xlu0 %3359
        %3361 = vmax.xlane.f32.xlu0 %v3304
        %v3362 = vpop.xlane.xlu0 %3361
        %3363 = vmax.xlane.f32.xlu0 %v3309
        %v3364 = vpop.xlane.xlu0 %3363
        %3365 = vmax.xlane.f32.xlu0 %v3314
        %v3366 = vpop.xlane.xlu0 %3365
        %3367 = vmax.xlane.f32.xlu0 %v3319
        %v3368 = vpop.xlane.xlu0 %3367
        %3369 = vmax.xlane.f32.xlu0 %v3324
        %v3370 = vpop.xlane.xlu0 %3369
        %3371 = vmax.xlane.f32.xlu0 %v3329
        %v3372 = vpop.xlane.xlu0 %3371
        %3373 = vmax.xlane.f32.xlu0 %v3334
        %v3374 = vpop.xlane.xlu0 %3373
        %3375 = vmax.xlane.f32.xlu0 %v3339
        %v3376 = vpop.xlane.xlu0 %3375
        %3377 = vmax.xlane.f32.xlu0 %v3344
        %v3378 = vpop.xlane.xlu0 %3377
        %v3379 = vsub.f32 %v3269, %v3348
        %v3380 = vsub.f32 %v3274, %v3350
        %v3381 = vsub.f32 %v3279, %v3352
        %v3382 = vsub.f32 %v3284, %v3354
        %v3383 = vsub.f32 %v3289, %v3356
        %v3384 = vsub.f32 %v3294, %v3358
        %v3385 = vsub.f32 %v3299, %v3360
        %v3386 = vsub.f32 %v3304, %v3362
        %v3387 = vsub.f32 %v3309, %v3364
        %v3388 = vsub.f32 %v3314, %v3366
        %v3389 = vsub.f32 %v3319, %v3368
        %v3390 = vsub.f32 %v3324, %v3370
        %v3391 = vsub.f32 %v3329, %v3372
        %v3392 = vsub.f32 %v3334, %v3374
        %v3393 = vsub.f32 %v3339, %v3376
        %v3394 = vsub.f32 %v3344, %v3378
        %v3395 = vmul.f32 %v3379, 1.442695
        %v3396 = vpow.pop %v3395
        %v3397 = vmul.f32 %v3380, 1.442695
        %v3398 = vpow.pop %v3397
        %v3399 = vmul.f32 %v3381, 1.442695
        %v3400 = vpow.pop %v3399
        %v3401 = vmul.f32 %v3382, 1.442695
        %v3402 = vpow.pop %v3401
        %v3403 = vmul.f32 %v3383, 1.442695
        %v3404 = vpow.pop %v3403
        %v3405 = vmul.f32 %v3384, 1.442695
        %v3406 = vpow.pop %v3405
        %v3407 = vmul.f32 %v3385, 1.442695
        %v3408 = vpow.pop %v3407
        %v3409 = vmul.f32 %v3386, 1.442695
        %v3410 = vpow.pop %v3409
        %v3411 = vmul.f32 %v3387, 1.442695
        %v3412 = vpow.pop %v3411
        %v3413 = vmul.f32 %v3388, 1.442695
        %v3414 = vpow.pop %v3413
        %v3415 = vmul.f32 %v3389, 1.442695
        %v3416 = vpow.pop %v3415
        %v3417 = vmul.f32 %v3390, 1.442695
        %v3418 = vpow.pop %v3417
        %v3419 = vmul.f32 %v3391, 1.442695
        %v3420 = vpow.pop %v3419
        %v3421 = vmul.f32 %v3392, 1.442695
        %v3422 = vpow.pop %v3421
        %v3423 = vmul.f32 %v3393, 1.442695
        %v3424 = vpow.pop %v3423
        %v3425 = vmul.f32 %v3394, 1.442695
        %v3426 = vpow.pop %v3425
        %3427 = vmatprep.subr.mxu0 0.0
        %3428 = vmatpush1.xpose.msra.mxu0 %v3396
        %3429 = vmatprep.subr.mxu0 0.0
        %3430 = vmatpush1.xpose.msra.mxu0 %v3398
        %3431 = vmatprep.subr.mxu0 0.0
        %3432 = vmatpush1.xpose.msra.mxu0 %v3400
        %3433 = vmatprep.subr.mxu0 0.0
        %3434 = vmatpush1.xpose.msra.mxu0 %v3402
        %3435 = vmatprep.subr.mxu0 0.0
        %3436 = vmatpush1.xpose.msra.mxu0 %v3404
        %3437 = vmatprep.subr.mxu0 0.0
        %3438 = vmatpush1.xpose.msra.mxu0 %v3406
        %3439 = vmatprep.subr.mxu0 0.0
        %3440 = vmatpush1.xpose.msra.mxu0 %v3408
        %3441 = vmatprep.subr.mxu0 0.0
        %3442 = vmatpush1.xpose.msra.mxu0 %v3410
        %3443 = vmatprep.subr.mxu0 0.0
        %3444 = vmatpush1.xpose.msra.mxu0 %v3412
        %3445 = vmatprep.subr.mxu0 0.0
        %3446 = vmatpush1.xpose.msra.mxu0 %v3414
        %3447 = vmatprep.subr.mxu0 0.0
        %3448 = vmatpush1.xpose.msra.mxu0 %v3416
        %3449 = vmatprep.subr.mxu0 0.0
        %3450 = vmatpush1.xpose.msra.mxu0 %v3418
        %3451 = vmatprep.subr.mxu0 0.0
        %3452 = vmatpush1.xpose.msra.mxu0 %v3420
        %3453 = vmatprep.subr.mxu0 0.0
        %3454 = vmatpush1.xpose.msra.mxu0 %v3422
        %3455 = vmatprep.subr.mxu0 0.0
        %3456 = vmatpush1.xpose.msra.mxu0 %v3424
        %3457 = vmatprep.subr.mxu0 0.0
        %3458 = vmatpush1.xpose.msra.mxu0 %v3426
        %3459 = vmatprep.subr.mxu0 0.0
        %3460 = vmatpush1.xpose.msra.mxu0 0.0
        %3461 = vmatprep.subr.mxu0 0.0
        %3462 = vmatpush1.xpose.msra.mxu0 0.0
        %3463 = vmatprep.subr.mxu0 0.0
        %3464 = vmatpush1.xpose.msra.mxu0 0.0
        %3465 = vmatprep.subr.mxu0 0.0
        %3466 = vmatpush1.xpose.msra.mxu0 0.0
        %3467 = vmatprep.subr.mxu0 0.0
        %3468 = vmatpush1.xpose.msra.mxu0 0.0
        %3469 = vmatprep.subr.mxu0 0.0
        %3470 = vmatpush1.xpose.msra.mxu0 0.0
        %3471 = vmatprep.subr.mxu0 0.0
        %3472 = vmatpush1.xpose.msra.mxu0 0.0
        %3473 = vmatprep.subr.mxu0 0.0
        %3474 = vmatpush1.xpose.msra.mxu0 0.0
        %3475 = vmatprep.subr.mxu0 0.0
        %3476 = vmatpush1.xpose.msra.mxu0 0.0
        %3477 = vmatprep.subr.mxu0 0.0
        %3478 = vmatpush1.xpose.msra.mxu0 0.0
        %3479 = vmatprep.subr.mxu0 0.0
        %3480 = vmatpush1.xpose.msra.mxu0 0.0
        %3481 = vmatprep.subr.mxu0 0.0
        %3482 = vmatpush1.xpose.msra.mxu0 0.0
        %3483 = vmatprep.subr.mxu0 0.0
        %3484 = vmatpush1.xpose.msra.mxu0 0.0
        %3485 = vmatprep.subr.mxu0 0.0
        %3486 = vmatpush1.xpose.msra.mxu0 0.0
        %3487 = vmatprep.subr.mxu0 0.0
        %3488 = vmatpush1.xpose.msra.mxu0 0.0
        %3489 = vmatprep.subr.mxu0 0.0
        %3490 = vmatpush1.xpose.msra.mxu0 0.0
        %3491 = vmatprep.mubr.f32.mxu0 0.0
        %3492 = vmatmul.mubr.f32.gmra.mrb[0].mxu0 1.0
        %v3493 = vpop.f32.mrb[0].mxu0
        %v3494 = vadd.f32 0.0, %v3493
        %v3495 = vpop.f32.mrb[0].mxu0
        %3496 = vdwg.mxu0
        %v3497 = vrcp.pop %v3494
        %3498 = vmatprep.subr.mxu0 0.0
        %3499 = vmatpush1.msra.mxu0 %v3396
        %3500 = vmatprep.subr.mxu0 0.0
        %3501 = vmatpush1.msra.mxu0 %v3398
        %3502 = vmatprep.subr.mxu0 0.0
        %3503 = vmatpush1.msra.mxu0 %v3400
        %3504 = vmatprep.subr.mxu0 0.0
        %3505 = vmatpush1.msra.mxu0 %v3402
        %3506 = vmatprep.subr.mxu0 0.0
        %3507 = vmatpush1.msra.mxu0 %v3404
        %3508 = vmatprep.subr.mxu0 0.0
        %3509 = vmatpush1.msra.mxu0 %v3406
        %3510 = vmatprep.subr.mxu0 0.0
        %3511 = vmatpush1.msra.mxu0 %v3408
        %3512 = vmatprep.subr.mxu0 0.0
        %3513 = vmatpush1.msra.mxu0 %v3410
        %3514 = vmatprep.subr.mxu0 0.0
        %3515 = vmatpush1.msra.mxu0 %v3412
        %3516 = vmatprep.subr.mxu0 0.0
        %3517 = vmatpush1.msra.mxu0 %v3414
        %3518 = vmatprep.subr.mxu0 0.0
        %3519 = vmatpush1.msra.mxu0 %v3416
        %3520 = vmatprep.subr.mxu0 0.0
        %3521 = vmatpush1.msra.mxu0 %v3418
        %3522 = vmatprep.subr.mxu0 0.0
        %3523 = vmatpush1.msra.mxu0 %v3420
        %3524 = vmatprep.subr.mxu0 0.0
        %3525 = vmatpush1.msra.mxu0 %v3422
        %3526 = vmatprep.subr.mxu0 0.0
        %3527 = vmatpush1.msra.mxu0 %v3424
        %3528 = vmatprep.subr.mxu0 0.0
        %3529 = vmatpush1.msra.mxu0 %v3426
        %3530 = vmatprep.subr.mxu0 0.0
        %3531 = vmatpush1.msra.mxu0 0.0
        %3532 = vmatprep.subr.mxu0 0.0
        %3533 = vmatpush1.msra.mxu0 0.0
        %3534 = vmatprep.subr.mxu0 0.0
        %3535 = vmatpush1.msra.mxu0 0.0
        %3536 = vmatprep.subr.mxu0 0.0
        %3537 = vmatpush1.msra.mxu0 0.0
        %3538 = vmatprep.subr.mxu0 0.0
        %3539 = vmatpush1.msra.mxu0 0.0
        %3540 = vmatprep.subr.mxu0 0.0
        %3541 = vmatpush1.msra.mxu0 0.0
        %3542 = vmatprep.subr.mxu0 0.0
        %3543 = vmatpush1.msra.mxu0 0.0
        %3544 = vmatprep.subr.mxu0 0.0
        %3545 = vmatpush1.msra.mxu0 0.0
        %3546 = vmatprep.subr.mxu0 0.0
        %3547 = vmatpush1.msra.mxu0 0.0
        %3548 = vmatprep.subr.mxu0 0.0
        %3549 = vmatpush1.msra.mxu0 0.0
        %3550 = vmatprep.subr.mxu0 0.0
        %3551 = vmatpush1.msra.mxu0 0.0
        %3552 = vmatprep.subr.mxu0 0.0
        %3553 = vmatpush1.msra.mxu0 0.0
        %3554 = vmatprep.subr.mxu0 0.0
        %3555 = vmatpush1.msra.mxu0 0.0
        %3556 = vmatprep.subr.mxu0 0.0
        %3557 = vmatpush1.msra.mxu0 0.0
        %3558 = vmatprep.subr.mxu0 0.0
        %3559 = vmatpush1.msra.mxu0 0.0
        %3560 = vmatprep.subr.mxu0 0.0
        %3561 = vmatpush1.msra.mxu0 0.0
        %3562 = vmatprep.mubr.f32.mxu0 0.0
        %3563 = vmatmul.mubr.f32.gmra.mrb[0].mxu0 %v3497
        %v3564 = vpop.f32.mrb[0].mxu0
        %v3565 = vadd.f32 1e-09, %v3564
        %v3566 = vpop.f32.mrb[0].mxu0
        %3567 = vdwg.mxu0
        %v3568 = vrcp.pop %v3565
        %v3569 = vlaneseq
        %v3570 = vshrl.u32 %v3569, 7
        %v3571 = vsub.s32 0, %v3570
        %v3572 = vrot.slane %v3497, %v3571
        %v3573 = vmul.f32 %v3104, %v3572
        %v3574 = vmul.f32 %v3109, %v3572
        %v3575 = vmul.f32 %v3114, %v3572
        %v3576 = vmul.f32 %v3119, %v3572
        %3577 = vmatprep.subr.mxu0 0.0
        %3578 = vmatpush1.msra.mxu0 %v3396
        %3579 = vmatprep.subr.mxu0 0.0
        %3580 = vmatpush1.msra.mxu0 %v3398
        %3581 = vmatprep.subr.mxu0 0.0
        %3582 = vmatpush1.msra.mxu0 %v3400
        %3583 = vmatprep.subr.mxu0 0.0
        %3584 = vmatpush1.msra.mxu0 %v3402
        %3585 = vmatprep.subr.mxu0 0.0
        %3586 = vmatpush1.msra.mxu0 %v3404
        %3587 = vmatprep.subr.mxu0 0.0
        %3588 = vmatpush1.msra.mxu0 %v3406
        %3589 = vmatprep.subr.mxu0 0.0
        %3590 = vmatpush1.msra.mxu0 %v3408
        %3591 = vmatprep.subr.mxu0 0.0
        %3592 = vmatpush1.msra.mxu0 %v3410
        %3593 = vmatprep.subr.mxu0 0.0
        %3594 = vmatpush1.msra.mxu0 %v3412
        %3595 = vmatprep.subr.mxu0 0.0
        %3596 = vmatpush1.msra.mxu0 %v3414
        %3597 = vmatprep.subr.mxu0 0.0
        %3598 = vmatpush1.msra.mxu0 %v3416
        %3599 = vmatprep.subr.mxu0 0.0
        %3600 = vmatpush1.msra.mxu0 %v3418
        %3601 = vmatprep.subr.mxu0 0.0
        %3602 = vmatpush1.msra.mxu0 %v3420
        %3603 = vmatprep.subr.mxu0 0.0
        %3604 = vmatpush1.msra.mxu0 %v3422
        %3605 = vmatprep.subr.mxu0 0.0
        %3606 = vmatpush1.msra.mxu0 %v3424
        %3607 = vmatprep.subr.mxu0 0.0
        %3608 = vmatpush1.msra.mxu0 %v3426
        %3609 = vmatprep.subr.mxu0 0.0
        %3610 = vmatpush1.msra.mxu0 0.0
        %3611 = vmatprep.subr.mxu0 0.0
        %3612 = vmatpush1.msra.mxu0 0.0
        %3613 = vmatprep.subr.mxu0 0.0
        %3614 = vmatpush1.msra.mxu0 0.0
        %3615 = vmatprep.subr.mxu0 0.0
        %3616 = vmatpush1.msra.mxu0 0.0
        %3617 = vmatprep.subr.mxu0 0.0
        %3618 = vmatpush1.msra.mxu0 0.0
        %3619 = vmatprep.subr.mxu0 0.0
        %3620 = vmatpush1.msra.mxu0 0.0
        %3621 = vmatprep.subr.mxu0 0.0
        %3622 = vmatpush1.msra.mxu0 0.0
        %3623 = vmatprep.subr.mxu0 0.0
        %3624 = vmatpush1.msra.mxu0 0.0
        %3625 = vmatprep.subr.mxu0 0.0
        %3626 = vmatpush1.msra.mxu0 0.0
        %3627 = vmatprep.subr.mxu0 0.0
        %3628 = vmatpush1.msra.mxu0 0.0
        %3629 = vmatprep.subr.mxu0 0.0
        %3630 = vmatpush1.msra.mxu0 0.0
        %3631 = vmatprep.subr.mxu0 0.0
        %3632 = vmatpush1.msra.mxu0 0.0
        %3633 = vmatprep.subr.mxu0 0.0
        %3634 = vmatpush1.msra.mxu0 0.0
        %3635 = vmatprep.subr.mxu0 0.0
        %3636 = vmatpush1.msra.mxu0 0.0
        %3637 = vmatprep.subr.mxu0 0.0
        %3638 = vmatpush1.msra.mxu0 0.0
        %3639 = vmatprep.subr.mxu0 0.0
        %3640 = vmatpush1.msra.mxu0 0.0
        %3641 = vmatprep.mubr.f32.mxu0 0.0
        %3642 = vmatmul.mubr.f32.gmra.mrb[0].mxu0 %v3573
        %v3643 = vpop.f32.mrb[0].mxu0
        %v3644 = vadd.f32 0.0, %v3643
        %v3645 = vpop.f32.mrb[0].mxu0
        %3646 = vmatprep.mubr.f32.mxu0 0.0
        %3647 = vmatmul.mubr.f32.gmra.mrb[0].mxu0 %v3574
        %v3648 = vpop.f32.mrb[0].mxu0
        %v3649 = vadd.f32 0.0, %v3648
        %v3650 = vpop.f32.mrb[0].mxu0
        %3651 = vmatprep.mubr.f32.mxu0 0.0
        %3652 = vmatmul.mubr.f32.gmra.mrb[0].mxu0 %v3575
        %v3653 = vpop.f32.mrb[0].mxu0
        %v3654 = vadd.f32 0.0, %v3653
        %v3655 = vpop.f32.mrb[0].mxu0
        %3656 = vmatprep.mubr.f32.mxu0 0.0
        %3657 = vmatmul.mubr.f32.gmra.mrb[0].mxu0 %v3576
        %v3658 = vpop.f32.mrb[0].mxu0
        %v3659 = vadd.f32 0.0, %v3658
        %v3660 = vpop.f32.mrb[0].mxu0
        %3661 = vdwg.mxu0
        %v3662 = vlaneseq
        %v3663 = vshrl.u32 %v3662, 7
        %v3664 = vsub.s32 0, %v3663
        %v3665 = vrot.slane %v3568, %v3664
        %v3666 = vmul.f32 %v3644, %v3665
        %v3667 = vmul.f32 %v3649, %v3665
        %v3668 = vmul.f32 %v3654, %v3665
        %v3669 = vmul.f32 %v3659, %v3665
        %v3670 = vsub.f32 %v2988, %v3666
        %v3671 = vsub.f32 %v2989, %v3667
        %v3672 = vsub.f32 %v2990, %v3668
        %v3673 = vsub.f32 %v2991, %v3669
        %s3674 = scalar_lea.vmem [#allocation5], 288
        %v3675 = vld [vmem:[%s3674] sm:$0xff]
        %v3676 = vld [vmem:[%s3674 + $0x8] sm:$0xff]
        %v3677 = vld [vmem:[%s3674 + $0x10] sm:$0xff]
        %v3678 = vld [vmem:[%s3674 + $0x18] sm:$0xff]
        %3679 = vset.pattern.permute.xlu0 15
        %3680 = vperm.xlu0 %3679, %v2996
        %v3681 = vpop.permute.xlu0 %3680
        %3683 = vset.pattern.permute.xlu0 15
        %3684 = vperm.xlu0 %3683, %v2997
        %v3685 = vpop.permute.xlu0 %3684
        %3687 = vset.pattern.permute.xlu0 15
        %3688 = vperm.xlu0 %3687, %v2998
        %v3689 = vpop.permute.xlu0 %3688
        %3691 = vset.pattern.permute.xlu0 15
        %3692 = vperm.xlu0 %3691, %v2999
        %v3693 = vpop.permute.xlu0 %3692
        %v3696 = vsel %vm236, %v3675, 0
        %v3699 = vsel %vm236, %v3676, 0
        %v3702 = vsel %vm236, %v3677, 0
        %v3705 = vsel %vm236, %v3678, 0
        %3707 = vmatprep.subr.mxu0 0.0
        %3708 = vmatpush1.msra.mxu0 %v3670
        %3709 = vmatprep.subr.mxu0 0.0
        %3710 = vmatpush1.msra.mxu0 %v3671
        %3711 = vmatprep.subr.mxu0 0.0
        %3712 = vmatpush1.msra.mxu0 %v3672
        %3713 = vmatprep.subr.mxu0 0.0
        %3714 = vmatpush1.msra.mxu0 %v3673
        %3715 = vmatprep.subr.mxu0 0.0
        %3716 = vmatpush1.msra.mxu0 0.0
        %3717 = vmatprep.subr.mxu0 0.0
        %3718 = vmatpush1.msra.mxu0 0.0
        %3719 = vmatprep.subr.mxu0 0.0
        %3720 = vmatpush1.msra.mxu0 0.0
        %3721 = vmatprep.subr.mxu0 0.0
        %3722 = vmatpush1.msra.mxu0 0.0
        %3723 = vmatprep.subr.mxu0 0.0
        %3724 = vmatpush1.msra.mxu0 0.0
        %3725 = vmatprep.subr.mxu0 0.0
        %3726 = vmatpush1.msra.mxu0 0.0
        %3727 = vmatprep.subr.mxu0 0.0
        %3728 = vmatpush1.msra.mxu0 0.0
        %3729 = vmatprep.subr.mxu0 0.0
        %3730 = vmatpush1.msra.mxu0 0.0
        %3731 = vmatprep.subr.mxu0 0.0
        %3732 = vmatpush1.msra.mxu0 0.0
        %3733 = vmatprep.subr.mxu0 0.0
        %3734 = vmatpush1.msra.mxu0 0.0
        %3735 = vmatprep.subr.mxu0 0.0
        %3736 = vmatpush1.msra.mxu0 0.0
        %3737 = vmatprep.subr.mxu0 0.0
        %3738 = vmatpush1.msra.mxu0 0.0
        %3739 = vmatprep.subr.mxu0 0.0
        %3740 = vmatpush1.msra.mxu0 0.0
        %3741 = vmatprep.subr.mxu0 0.0
        %3742 = vmatpush1.msra.mxu0 0.0
        %3743 = vmatprep.subr.mxu0 0.0
        %3744 = vmatpush1.msra.mxu0 0.0
        %3745 = vmatprep.subr.mxu0 0.0
        %3746 = vmatpush1.msra.mxu0 0.0
        %3747 = vmatprep.subr.mxu0 0.0
        %3748 = vmatpush1.msra.mxu0 0.0
        %3749 = vmatprep.subr.mxu0 0.0
        %3750 = vmatpush1.msra.mxu0 0.0
        %3751 = vmatprep.subr.mxu0 0.0
        %3752 = vmatpush1.msra.mxu0 0.0
        %3753 = vmatprep.subr.mxu0 0.0
        %3754 = vmatpush1.msra.mxu0 0.0
        %3755 = vmatprep.subr.mxu0 0.0
        %3756 = vmatpush1.msra.mxu0 0.0
        %3757 = vmatprep.subr.mxu0 0.0
        %3758 = vmatpush1.msra.mxu0 0.0
        %3759 = vmatprep.subr.mxu0 0.0
        %3760 = vmatpush1.msra.mxu0 0.0
        %3761 = vmatprep.subr.mxu0 0.0
        %3762 = vmatpush1.msra.mxu0 0.0
        %3763 = vmatprep.subr.mxu0 0.0
        %3764 = vmatpush1.msra.mxu0 0.0
        %3765 = vmatprep.subr.mxu0 0.0
        %3766 = vmatpush1.msra.mxu0 0.0
        %3767 = vmatprep.subr.mxu0 0.0
        %3768 = vmatpush1.msra.mxu0 0.0
        %3769 = vmatprep.subr.mxu0 0.0
        %3770 = vmatpush1.msra.mxu0 0.0
        %3771 = vmatprep.mubr.f32.mxu0 0.0
        %3772 = vmatmul.mubr.f32.gmra.mrb[0].mxu0 %v3696
        %v3773 = vpop.f32.mrb[0].mxu0
        %v3774 = vadd.f32 %v3681, %v3773
        %v3775 = vpop.f32.mrb[0].mxu0
        %3776 = vmatprep.mubr.f32.mxu0 0.0
        %3777 = vmatmul.mubr.f32.gmra.mrb[0].mxu0 %v3699
        %v3778 = vpop.f32.mrb[0].mxu0
        %v3779 = vadd.f32 %v3685, %v3778
        %v3780 = vpop.f32.mrb[0].mxu0
        %3781 = vmatprep.mubr.f32.mxu0 0.0
        %3782 = vmatmul.mubr.f32.gmra.mrb[0].mxu0 %v3702
        %v3783 = vpop.f32.mrb[0].mxu0
        %v3784 = vadd.f32 %v3689, %v3783
        %v3785 = vpop.f32.mrb[0].mxu0
        %3786 = vmatprep.mubr.f32.mxu0 0.0
        %3787 = vmatmul.mubr.f32.gmra.mrb[0].mxu0 %v3705
        %v3788 = vpop.f32.mrb[0].mxu0
        %v3789 = vadd.f32 %v3693, %v3788
        %v3790 = vpop.f32.mrb[0].mxu0
        %3791 = vdwg.mxu0
        %v3792 = vmax.f32 %v3774, 0.0
        %v3793 = vmax.f32 %v3779, 0.0
        %v3794 = vmax.f32 %v3784, 0.0
        %v3795 = vmax.f32 %v3789, 0.0
        %3796 = vset.pattern.permute.xlu0 16
        %3797 = vperm.xlu0 %3796, %v2996
        %v3798 = vpop.permute.xlu0 %3797
        %3800 = vset.pattern.permute.xlu0 16
        %3801 = vperm.xlu0 %3800, %v2997
        %v3802 = vpop.permute.xlu0 %3801
        %3804 = vset.pattern.permute.xlu0 16
        %3805 = vperm.xlu0 %3804, %v2998
        %v3806 = vpop.permute.xlu0 %3805
        %3808 = vset.pattern.permute.xlu0 16
        %3809 = vperm.xlu0 %3808, %v2999
        %v3810 = vpop.permute.xlu0 %3809
        %v3812 = vmul.f32 %v3798, %v3792
        %v3813 = vmul.f32 %v3802, %v3793
        %v3814 = vmul.f32 %v3806, %v3794
        %v3815 = vmul.f32 %v3810, %v3795
        %v3816 = vadd.f32 %v2988, %v3812
        %v3817 = vadd.f32 %v2989, %v3813
        %v3818 = vadd.f32 %v2990, %v3814
        %v3819 = vadd.f32 %v2991, %v3815
        %3820 = vset.pattern.permute.xlu0 17
        %3821 = vperm.xlu0 %3820, %v2996
        %v3822 = vpop.permute.xlu0 %3821
        %3824 = vset.pattern.permute.xlu0 17
        %3825 = vperm.xlu0 %3824, %v2997
        %v3826 = vpop.permute.xlu0 %3825
        %3828 = vset.pattern.permute.xlu0 17
        %3829 = vperm.xlu0 %3828, %v2998
        %v3830 = vpop.permute.xlu0 %3829
        %3832 = vset.pattern.permute.xlu0 17
        %3833 = vperm.xlu0 %3832, %v2999
        %v3834 = vpop.permute.xlu0 %3833
        %v3836 = vadd.f32 %v3816, %v3822
        %v3837 = vadd.f32 %v3817, %v3826
        %v3838 = vadd.f32 %v3818, %v3830
        %v3839 = vadd.f32 %v3819, %v3834
        %3840 = vst [vmem:[%s203 + $0x60] sm:$0xff] %v3836
        %3841 = vst [vmem:[%s203 + $0x68] sm:$0xff] %v3837
        %3842 = vst [vmem:[%s203 + $0x70] sm:$0xff] %v3838
        %3843 = vst [vmem:[%s203 + $0x78] sm:$0xff] %v3839
        %v3844 = vld [vmem:[%s2] sm:$0xff]
        %v3845 = vld [vmem:[%s2 + $0x8] sm:$0xff]
        %v3846 = vld [vmem:[%s2 + $0x10] sm:$0xff]
        %v3847 = vld [vmem:[%s2 + $0x18] sm:$0xff]
        %s3848 = scalar_lea.vmem [#allocation5], 320
        %v3849 = vld [vmem:[%s3848] sm:$0xff]
        %v3850 = vld [vmem:[%s3848 + $0x8] sm:$0xff]
        %v3851 = vld [vmem:[%s3848 + $0x10] sm:$0xff]
        %v3852 = vld [vmem:[%s3848 + $0x18] sm:$0xff]
        %3854 = vset.pattern.permute.xlu0 18
        %3855 = vperm.xlu0 %3854, %v3844
        %v3856 = vpop.permute.xlu0 %3855
        %3859 = vset.pattern.permute.xlu0 18
        %3860 = vperm.xlu0 %3859, %v3845
        %v3861 = vpop.permute.xlu0 %3860
        %3864 = vset.pattern.permute.xlu0 18
        %3865 = vperm.xlu0 %3864, %v3846
        %v3866 = vpop.permute.xlu0 %3865
        %3869 = vset.pattern.permute.xlu0 18
        %3870 = vperm.xlu0 %3869, %v3847
        %v3871 = vpop.permute.xlu0 %3870
        %v3874 = vsel %vm236, %v3849, 0
        %v3877 = vsel %vm236, %v3850, 0
        %v3880 = vsel %vm236, %v3851, 0
        %v3883 = vsel %vm236, %v3852, 0
        %3885 = vmatprep.subr.mxu0 0.0
        %3886 = vmatpush1.msra.mxu0 %v3836
        %3887 = vmatprep.subr.mxu0 0.0
        %3888 = vmatpush1.msra.mxu0 %v3837
        %3889 = vmatprep.subr.mxu0 0.0
        %3890 = vmatpush1.msra.mxu0 %v3838
        %3891 = vmatprep.subr.mxu0 0.0
        %3892 = vmatpush1.msra.mxu0 %v3839
        %3893 = vmatprep.subr.mxu0 0.0
        %3894 = vmatpush1.msra.mxu0 0.0
        %3895 = vmatprep.subr.mxu0 0.0
        %3896 = vmatpush1.msra.mxu0 0.0
        %3897 = vmatprep.subr.mxu0 0.0
        %3898 = vmatpush1.msra.mxu0 0.0
        %3899 = vmatprep.subr.mxu0 0.0
        %3900 = vmatpush1.msra.mxu0 0.0
        %3901 = vmatprep.subr.mxu0 0.0
        %3902 = vmatpush1.msra.mxu0 0.0
        %3903 = vmatprep.subr.mxu0 0.0
        %3904 = vmatpush1.msra.mxu0 0.0
        %3905 = vmatprep.subr.mxu0 0.0
        %3906 = vmatpush1.msra.mxu0 0.0
        %3907 = vmatprep.subr.mxu0 0.0
        %3908 = vmatpush1.msra.mxu0 0.0
        %3909 = vmatprep.subr.mxu0 0.0
        %3910 = vmatpush1.msra.mxu0 0.0
        %3911 = vmatprep.subr.mxu0 0.0
        %3912 = vmatpush1.msra.mxu0 0.0
        %3913 = vmatprep.subr.mxu0 0.0
        %3914 = vmatpush1.msra.mxu0 0.0
        %3915 = vmatprep.subr.mxu0 0.0
        %3916 = vmatpush1.msra.mxu0 0.0
        %3917 = vmatprep.subr.mxu0 0.0
        %3918 = vmatpush1.msra.mxu0 0.0
        %3919 = vmatprep.subr.mxu0 0.0
        %3920 = vmatpush1.msra.mxu0 0.0
        %3921 = vmatprep.subr.mxu0 0.0
        %3922 = vmatpush1.msra.mxu0 0.0
        %3923 = vmatprep.subr.mxu0 0.0
        %3924 = vmatpush1.msra.mxu0 0.0
        %3925 = vmatprep.subr.mxu0 0.0
        %3926 = vmatpush1.msra.mxu0 0.0
        %3927 = vmatprep.subr.mxu0 0.0
        %3928 = vmatpush1.msra.mxu0 0.0
        %3929 = vmatprep.subr.mxu0 0.0
        %3930 = vmatpush1.msra.mxu0 0.0
        %3931 = vmatprep.subr.mxu0 0.0
        %3932 = vmatpush1.msra.mxu0 0.0
        %3933 = vmatprep.subr.mxu0 0.0
        %3934 = vmatpush1.msra.mxu0 0.0
        %3935 = vmatprep.subr.mxu0 0.0
        %3936 = vmatpush1.msra.mxu0 0.0
        %3937 = vmatprep.subr.mxu0 0.0
        %3938 = vmatpush1.msra.mxu0 0.0
        %3939 = vmatprep.subr.mxu0 0.0
        %3940 = vmatpush1.msra.mxu0 0.0
        %3941 = vmatprep.subr.mxu0 0.0
        %3942 = vmatpush1.msra.mxu0 0.0
        %3943 = vmatprep.subr.mxu0 0.0
        %3944 = vmatpush1.msra.mxu0 0.0
        %3945 = vmatprep.subr.mxu0 0.0
        %3946 = vmatpush1.msra.mxu0 0.0
        %3947 = vmatprep.subr.mxu0 0.0
        %3948 = vmatpush1.msra.mxu0 0.0
        %3949 = vmatprep.mubr.f32.mxu0 0.0
        %3950 = vmatmul.mubr.f32.gmra.mrb[0].mxu0 %v3874
        %v3951 = vpop.f32.mrb[0].mxu0
        %v3952 = vadd.f32 %v3856, %v3951
        %v3953 = vpop.f32.mrb[0].mxu0
        %3954 = vmatprep.mubr.f32.mxu0 0.0
        %3955 = vmatmul.mubr.f32.gmra.mrb[0].mxu0 %v3877
        %v3956 = vpop.f32.mrb[0].mxu0
        %v3957 = vadd.f32 %v3861, %v3956
        %v3958 = vpop.f32.mrb[0].mxu0
        %3959 = vmatprep.mubr.f32.mxu0 0.0
        %3960 = vmatmul.mubr.f32.gmra.mrb[0].mxu0 %v3880
        %v3961 = vpop.f32.mrb[0].mxu0
        %v3962 = vadd.f32 %v3866, %v3961
        %v3963 = vpop.f32.mrb[0].mxu0
        %3964 = vmatprep.mubr.f32.mxu0 0.0
        %3965 = vmatmul.mubr.f32.gmra.mrb[0].mxu0 %v3883
        %v3966 = vpop.f32.mrb[0].mxu0
        %v3967 = vadd.f32 %v3871, %v3966
        %v3968 = vpop.f32.mrb[0].mxu0
        %3969 = vdwg.mxu0
        %3970 = vxpose.xlu0.b32.start [1/16] %v3836, 128
        %3971 = vxpose.xlu0.b32.cont [2/16] %v3837, 128
        %3972 = vxpose.xlu0.b32.cont [3/16] %v3838, 128
        %3973 = vxpose.xlu0.b32.cont [4/16] %v3839, 128
        %3974 = vxpose.xlu0.b32.cont [5/16] 0.0, 128
        %3975 = vxpose.xlu0.b32.cont [6/16] 0.0, 128
        %3976 = vxpose.xlu0.b32.cont [7/16] 0.0, 128
        %3977 = vxpose.xlu0.b32.cont [8/16] 0.0, 128
        %3978 = vxpose.xlu0.b32.cont [9/16] 0.0, 128
        %3979 = vxpose.xlu0.b32.cont [10/16] 0.0, 128
        %3980 = vxpose.xlu0.b32.cont [11/16] 0.0, 128
        %3981 = vxpose.xlu0.b32.cont [12/16] 0.0, 128
        %3982 = vxpose.xlu0.b32.cont [13/16] 0.0, 128
        %3983 = vxpose.xlu0.b32.cont [14/16] 0.0, 128
        %3984 = vxpose.xlu0.b32.cont [15/16] 0.0, 128
        %3985 = vxpose.xlu0.b32.end [16/16] 0.0, 128
        %v3986 = vpop.trf.xlu0
        %v3987 = vpop.trf.xlu0
        %v3988 = vpop.trf.xlu0
        %v3989 = vpop.trf.xlu0
        %v3990 = vpop.trf.xlu0
        %v3991 = vpop.trf.xlu0
        %v3992 = vpop.trf.xlu0
        %v3993 = vpop.trf.xlu0
        %v3994 = vpop.trf.xlu0
        %v3995 = vpop.trf.xlu0
        %v3996 = vpop.trf.xlu0
        %v3997 = vpop.trf.xlu0
        %v3998 = vpop.trf.xlu0
        %v3999 = vpop.trf.xlu0
        %v4000 = vpop.trf.xlu0
        %v4001 = vpop.trf.xlu0
        %v4003 = vsel %vm236, %v3986, 0
        %v4006 = vsel %vm236, %v3987, 0
        %v4009 = vsel %vm236, %v3988, 0
        %v4012 = vsel %vm236, %v3989, 0
        %v4015 = vsel %vm236, %v3990, 0
        %v4018 = vsel %vm236, %v3991, 0
        %v4021 = vsel %vm236, %v3992, 0
        %v4024 = vsel %vm236, %v3993, 0
        %v4027 = vsel %vm236, %v3994, 0
        %v4030 = vsel %vm236, %v3995, 0
        %v4033 = vsel %vm236, %v3996, 0
        %v4036 = vsel %vm236, %v3997, 0
        %v4039 = vsel %vm236, %v3998, 0
        %v4042 = vsel %vm236, %v3999, 0
        %v4045 = vsel %vm236, %v4000, 0
        %v4048 = vsel %vm236, %v4001, 0
        %4050 = vmatprep.subr.mxu0 0.0
        %4051 = vmatpush1.msra.mxu0 %v3952
        %4052 = vmatprep.subr.mxu0 0.0
        %4053 = vmatpush1.msra.mxu0 %v3957
        %4054 = vmatprep.subr.mxu0 0.0
        %4055 = vmatpush1.msra.mxu0 %v3962
        %4056 = vmatprep.subr.mxu0 0.0
        %4057 = vmatpush1.msra.mxu0 %v3967
        %4058 = vmatprep.subr.mxu0 0.0
        %4059 = vmatpush1.msra.mxu0 0.0
        %4060 = vmatprep.subr.mxu0 0.0
        %4061 = vmatpush1.msra.mxu0 0.0
        %4062 = vmatprep.subr.mxu0 0.0
        %4063 = vmatpush1.msra.mxu0 0.0
        %4064 = vmatprep.subr.mxu0 0.0
        %4065 = vmatpush1.msra.mxu0 0.0
        %4066 = vmatprep.subr.mxu0 0.0
        %4067 = vmatpush1.msra.mxu0 0.0
        %4068 = vmatprep.subr.mxu0 0.0
        %4069 = vmatpush1.msra.mxu0 0.0
        %4070 = vmatprep.subr.mxu0 0.0
        %4071 = vmatpush1.msra.mxu0 0.0
        %4072 = vmatprep.subr.mxu0 0.0
        %4073 = vmatpush1.msra.mxu0 0.0
        %4074 = vmatprep.subr.mxu0 0.0
        %4075 = vmatpush1.msra.mxu0 0.0
        %4076 = vmatprep.subr.mxu0 0.0
        %4077 = vmatpush1.msra.mxu0 0.0
        %4078 = vmatprep.subr.mxu0 0.0
        %4079 = vmatpush1.msra.mxu0 0.0
        %4080 = vmatprep.subr.mxu0 0.0
        %4081 = vmatpush1.msra.mxu0 0.0
        %4082 = vmatprep.subr.mxu0 0.0
        %4083 = vmatpush1.msra.mxu0 0.0
        %4084 = vmatprep.subr.mxu0 0.0
        %4085 = vmatpush1.msra.mxu0 0.0
        %4086 = vmatprep.subr.mxu0 0.0
        %4087 = vmatpush1.msra.mxu0 0.0
        %4088 = vmatprep.subr.mxu0 0.0
        %4089 = vmatpush1.msra.mxu0 0.0
        %4090 = vmatprep.subr.mxu0 0.0
        %4091 = vmatpush1.msra.mxu0 0.0
        %4092 = vmatprep.subr.mxu0 0.0
        %4093 = vmatpush1.msra.mxu0 0.0
        %4094 = vmatprep.subr.mxu0 0.0
        %4095 = vmatpush1.msra.mxu0 0.0
        %4096 = vmatprep.subr.mxu0 0.0
        %4097 = vmatpush1.msra.mxu0 0.0
        %4098 = vmatprep.subr.mxu0 0.0
        %4099 = vmatpush1.msra.mxu0 0.0
        %4100 = vmatprep.subr.mxu0 0.0
        %4101 = vmatpush1.msra.mxu0 0.0
        %4102 = vmatprep.subr.mxu0 0.0
        %4103 = vmatpush1.msra.mxu0 0.0
        %4104 = vmatprep.subr.mxu0 0.0
        %4105 = vmatpush1.msra.mxu0 0.0
        %4106 = vmatprep.subr.mxu0 0.0
        %4107 = vmatpush1.msra.mxu0 0.0
        %4108 = vmatprep.subr.mxu0 0.0
        %4109 = vmatpush1.msra.mxu0 0.0
        %4110 = vmatprep.subr.mxu0 0.0
        %4111 = vmatpush1.msra.mxu0 0.0
        %4112 = vmatprep.subr.mxu0 0.0
        %4113 = vmatpush1.msra.mxu0 0.0
        %4114 = vmatprep.mubr.f32.mxu0 0.0
        %4115 = vmatmul.mubr.f32.gmra.mrb[0].mxu0 %v4003
        %v4116 = vpop.f32.mrb[0].mxu0
        %v4117 = vadd.f32 0.0, %v4116
        %v4118 = vpop.f32.mrb[0].mxu0
        %4119 = vmatprep.mubr.f32.mxu0 0.0
        %4120 = vmatmul.mubr.f32.gmra.mrb[0].mxu0 %v4006
        %v4121 = vpop.f32.mrb[0].mxu0
        %v4122 = vadd.f32 0.0, %v4121
        %v4123 = vpop.f32.mrb[0].mxu0
        %4124 = vmatprep.mubr.f32.mxu0 0.0
        %4125 = vmatmul.mubr.f32.gmra.mrb[0].mxu0 %v4009
        %v4126 = vpop.f32.mrb[0].mxu0
        %v4127 = vadd.f32 0.0, %v4126
        %v4128 = vpop.f32.mrb[0].mxu0
        %4129 = vmatprep.mubr.f32.mxu0 0.0
        %4130 = vmatmul.mubr.f32.gmra.mrb[0].mxu0 %v4012
        %v4131 = vpop.f32.mrb[0].mxu0
        %v4132 = vadd.f32 0.0, %v4131
        %v4133 = vpop.f32.mrb[0].mxu0
        %4134 = vmatprep.mubr.f32.mxu0 0.0
        %4135 = vmatmul.mubr.f32.gmra.mrb[0].mxu0 %v4015
        %v4136 = vpop.f32.mrb[0].mxu0
        %v4137 = vadd.f32 0.0, %v4136
        %v4138 = vpop.f32.mrb[0].mxu0
        %4139 = vmatprep.mubr.f32.mxu0 0.0
        %4140 = vmatmul.mubr.f32.gmra.mrb[0].mxu0 %v4018
        %v4141 = vpop.f32.mrb[0].mxu0
        %v4142 = vadd.f32 0.0, %v4141
        %v4143 = vpop.f32.mrb[0].mxu0
        %4144 = vmatprep.mubr.f32.mxu0 0.0
        %4145 = vmatmul.mubr.f32.gmra.mrb[0].mxu0 %v4021
        %v4146 = vpop.f32.mrb[0].mxu0
        %v4147 = vadd.f32 0.0, %v4146
        %v4148 = vpop.f32.mrb[0].mxu0
        %4149 = vmatprep.mubr.f32.mxu0 0.0
        %4150 = vmatmul.mubr.f32.gmra.mrb[0].mxu0 %v4024
        %v4151 = vpop.f32.mrb[0].mxu0
        %v4152 = vadd.f32 0.0, %v4151
        %v4153 = vpop.f32.mrb[0].mxu0
        %4154 = vmatprep.mubr.f32.mxu0 0.0
        %4155 = vmatmul.mubr.f32.gmra.mrb[0].mxu0 %v4027
        %v4156 = vpop.f32.mrb[0].mxu0
        %v4157 = vadd.f32 0.0, %v4156
        %v4158 = vpop.f32.mrb[0].mxu0
        %4159 = vmatprep.mubr.f32.mxu0 0.0
        %4160 = vmatmul.mubr.f32.gmra.mrb[0].mxu0 %v4030
        %v4161 = vpop.f32.mrb[0].mxu0
        %v4162 = vadd.f32 0.0, %v4161
        %v4163 = vpop.f32.mrb[0].mxu0
        %4164 = vmatprep.mubr.f32.mxu0 0.0
        %4165 = vmatmul.mubr.f32.gmra.mrb[0].mxu0 %v4033
        %v4166 = vpop.f32.mrb[0].mxu0
        %v4167 = vadd.f32 0.0, %v4166
        %v4168 = vpop.f32.mrb[0].mxu0
        %4169 = vmatprep.mubr.f32.mxu0 0.0
        %4170 = vmatmul.mubr.f32.gmra.mrb[0].mxu0 %v4036
        %v4171 = vpop.f32.mrb[0].mxu0
        %v4172 = vadd.f32 0.0, %v4171
        %v4173 = vpop.f32.mrb[0].mxu0
        %4174 = vmatprep.mubr.f32.mxu0 0.0
        %4175 = vmatmul.mubr.f32.gmra.mrb[0].mxu0 %v4039
        %v4176 = vpop.f32.mrb[0].mxu0
        %v4177 = vadd.f32 0.0, %v4176
        %v4178 = vpop.f32.mrb[0].mxu0
        %4179 = vmatprep.mubr.f32.mxu0 0.0
        %4180 = vmatmul.mubr.f32.gmra.mrb[0].mxu0 %v4042
        %v4181 = vpop.f32.mrb[0].mxu0
        %v4182 = vadd.f32 0.0, %v4181
        %v4183 = vpop.f32.mrb[0].mxu0
        %4184 = vmatprep.mubr.f32.mxu0 0.0
        %4185 = vmatmul.mubr.f32.gmra.mrb[0].mxu0 %v4045
        %v4186 = vpop.f32.mrb[0].mxu0
        %v4187 = vadd.f32 0.0, %v4186
        %v4188 = vpop.f32.mrb[0].mxu0
        %4189 = vmatprep.mubr.f32.mxu0 0.0
        %4190 = vmatmul.mubr.f32.gmra.mrb[0].mxu0 %v4048
        %v4191 = vpop.f32.mrb[0].mxu0
        %v4192 = vadd.f32 0.0, %v4191
        %v4193 = vpop.f32.mrb[0].mxu0
        %4194 = vdwg.mxu0
        %4195 = vmax.xlane.f32.xlu0 %v4117
        %v4196 = vpop.xlane.xlu0 %4195
        %4197 = vmax.xlane.f32.xlu0 %v4122
        %v4198 = vpop.xlane.xlu0 %4197
        %4199 = vmax.xlane.f32.xlu0 %v4127
        %v4200 = vpop.xlane.xlu0 %4199
        %4201 = vmax.xlane.f32.xlu0 %v4132
        %v4202 = vpop.xlane.xlu0 %4201
        %4203 = vmax.xlane.f32.xlu0 %v4137
        %v4204 = vpop.xlane.xlu0 %4203
        %4205 = vmax.xlane.f32.xlu0 %v4142
        %v4206 = vpop.xlane.xlu0 %4205
        %4207 = vmax.xlane.f32.xlu0 %v4147
        %v4208 = vpop.xlane.xlu0 %4207
        %4209 = vmax.xlane.f32.xlu0 %v4152
        %v4210 = vpop.xlane.xlu0 %4209
        %4211 = vmax.xlane.f32.xlu0 %v4157
        %v4212 = vpop.xlane.xlu0 %4211
        %4213 = vmax.xlane.f32.xlu0 %v4162
        %v4214 = vpop.xlane.xlu0 %4213
        %4215 = vmax.xlane.f32.xlu0 %v4167
        %v4216 = vpop.xlane.xlu0 %4215
        %4217 = vmax.xlane.f32.xlu0 %v4172
        %v4218 = vpop.xlane.xlu0 %4217
        %4219 = vmax.xlane.f32.xlu0 %v4177
        %v4220 = vpop.xlane.xlu0 %4219
        %4221 = vmax.xlane.f32.xlu0 %v4182
        %v4222 = vpop.xlane.xlu0 %4221
        %4223 = vmax.xlane.f32.xlu0 %v4187
        %v4224 = vpop.xlane.xlu0 %4223
        %4225 = vmax.xlane.f32.xlu0 %v4192
        %v4226 = vpop.xlane.xlu0 %4225
        %v4227 = vsub.f32 %v4117, %v4196
        %v4228 = vsub.f32 %v4122, %v4198
        %v4229 = vsub.f32 %v4127, %v4200
        %v4230 = vsub.f32 %v4132, %v4202
        %v4231 = vsub.f32 %v4137, %v4204
        %v4232 = vsub.f32 %v4142, %v4206
        %v4233 = vsub.f32 %v4147, %v4208
        %v4234 = vsub.f32 %v4152, %v4210
        %v4235 = vsub.f32 %v4157, %v4212
        %v4236 = vsub.f32 %v4162, %v4214
        %v4237 = vsub.f32 %v4167, %v4216
        %v4238 = vsub.f32 %v4172, %v4218
        %v4239 = vsub.f32 %v4177, %v4220
        %v4240 = vsub.f32 %v4182, %v4222
        %v4241 = vsub.f32 %v4187, %v4224
        %v4242 = vsub.f32 %v4192, %v4226
        %v4243 = vmul.f32 %v4227, 1.442695
        %v4244 = vpow.pop %v4243
        %v4245 = vmul.f32 %v4228, 1.442695
        %v4246 = vpow.pop %v4245
        %v4247 = vmul.f32 %v4229, 1.442695
        %v4248 = vpow.pop %v4247
        %v4249 = vmul.f32 %v4230, 1.442695
        %v4250 = vpow.pop %v4249
        %v4251 = vmul.f32 %v4231, 1.442695
        %v4252 = vpow.pop %v4251
        %v4253 = vmul.f32 %v4232, 1.442695
        %v4254 = vpow.pop %v4253
        %v4255 = vmul.f32 %v4233, 1.442695
        %v4256 = vpow.pop %v4255
        %v4257 = vmul.f32 %v4234, 1.442695
        %v4258 = vpow.pop %v4257
        %v4259 = vmul.f32 %v4235, 1.442695
        %v4260 = vpow.pop %v4259
        %v4261 = vmul.f32 %v4236, 1.442695
        %v4262 = vpow.pop %v4261
        %v4263 = vmul.f32 %v4237, 1.442695
        %v4264 = vpow.pop %v4263
        %v4265 = vmul.f32 %v4238, 1.442695
        %v4266 = vpow.pop %v4265
        %v4267 = vmul.f32 %v4239, 1.442695
        %v4268 = vpow.pop %v4267
        %v4269 = vmul.f32 %v4240, 1.442695
        %v4270 = vpow.pop %v4269
        %v4271 = vmul.f32 %v4241, 1.442695
        %v4272 = vpow.pop %v4271
        %v4273 = vmul.f32 %v4242, 1.442695
        %v4274 = vpow.pop %v4273
        %4275 = vmatprep.subr.mxu0 0.0
        %4276 = vmatpush1.xpose.msra.mxu0 %v4244
        %4277 = vmatprep.subr.mxu0 0.0
        %4278 = vmatpush1.xpose.msra.mxu0 %v4246
        %4279 = vmatprep.subr.mxu0 0.0
        %4280 = vmatpush1.xpose.msra.mxu0 %v4248
        %4281 = vmatprep.subr.mxu0 0.0
        %4282 = vmatpush1.xpose.msra.mxu0 %v4250
        %4283 = vmatprep.subr.mxu0 0.0
        %4284 = vmatpush1.xpose.msra.mxu0 %v4252
        %4285 = vmatprep.subr.mxu0 0.0
        %4286 = vmatpush1.xpose.msra.mxu0 %v4254
        %4287 = vmatprep.subr.mxu0 0.0
        %4288 = vmatpush1.xpose.msra.mxu0 %v4256
        %4289 = vmatprep.subr.mxu0 0.0
        %4290 = vmatpush1.xpose.msra.mxu0 %v4258
        %4291 = vmatprep.subr.mxu0 0.0
        %4292 = vmatpush1.xpose.msra.mxu0 %v4260
        %4293 = vmatprep.subr.mxu0 0.0
        %4294 = vmatpush1.xpose.msra.mxu0 %v4262
        %4295 = vmatprep.subr.mxu0 0.0
        %4296 = vmatpush1.xpose.msra.mxu0 %v4264
        %4297 = vmatprep.subr.mxu0 0.0
        %4298 = vmatpush1.xpose.msra.mxu0 %v4266
        %4299 = vmatprep.subr.mxu0 0.0
        %4300 = vmatpush1.xpose.msra.mxu0 %v4268
        %4301 = vmatprep.subr.mxu0 0.0
        %4302 = vmatpush1.xpose.msra.mxu0 %v4270
        %4303 = vmatprep.subr.mxu0 0.0
        %4304 = vmatpush1.xpose.msra.mxu0 %v4272
        %4305 = vmatprep.subr.mxu0 0.0
        %4306 = vmatpush1.xpose.msra.mxu0 %v4274
        %4307 = vmatprep.subr.mxu0 0.0
        %4308 = vmatpush1.xpose.msra.mxu0 0.0
        %4309 = vmatprep.subr.mxu0 0.0
        %4310 = vmatpush1.xpose.msra.mxu0 0.0
        %4311 = vmatprep.subr.mxu0 0.0
        %4312 = vmatpush1.xpose.msra.mxu0 0.0
        %4313 = vmatprep.subr.mxu0 0.0
        %4314 = vmatpush1.xpose.msra.mxu0 0.0
        %4315 = vmatprep.subr.mxu0 0.0
        %4316 = vmatpush1.xpose.msra.mxu0 0.0
        %4317 = vmatprep.subr.mxu0 0.0
        %4318 = vmatpush1.xpose.msra.mxu0 0.0
        %4319 = vmatprep.subr.mxu0 0.0
        %4320 = vmatpush1.xpose.msra.mxu0 0.0
        %4321 = vmatprep.subr.mxu0 0.0
        %4322 = vmatpush1.xpose.msra.mxu0 0.0
        %4323 = vmatprep.subr.mxu0 0.0
        %4324 = vmatpush1.xpose.msra.mxu0 0.0
        %4325 = vmatprep.subr.mxu0 0.0
        %4326 = vmatpush1.xpose.msra.mxu0 0.0
        %4327 = vmatprep.subr.mxu0 0.0
        %4328 = vmatpush1.xpose.msra.mxu0 0.0
        %4329 = vmatprep.subr.mxu0 0.0
        %4330 = vmatpush1.xpose.msra.mxu0 0.0
        %4331 = vmatprep.subr.mxu0 0.0
        %4332 = vmatpush1.xpose.msra.mxu0 0.0
        %4333 = vmatprep.subr.mxu0 0.0
        %4334 = vmatpush1.xpose.msra.mxu0 0.0
        %4335 = vmatprep.subr.mxu0 0.0
        %4336 = vmatpush1.xpose.msra.mxu0 0.0
        %4337 = vmatprep.subr.mxu0 0.0
        %4338 = vmatpush1.xpose.msra.mxu0 0.0
        %4339 = vmatprep.mubr.f32.mxu0 0.0
        %4340 = vmatmul.mubr.f32.gmra.mrb[0].mxu0 1.0
        %v4341 = vpop.f32.mrb[0].mxu0
        %v4342 = vadd.f32 0.0, %v4341
        %v4343 = vpop.f32.mrb[0].mxu0
        %4344 = vdwg.mxu0
        %v4345 = vrcp.pop %v4342
        %4346 = vmatprep.subr.mxu0 0.0
        %4347 = vmatpush1.msra.mxu0 %v4244
        %4348 = vmatprep.subr.mxu0 0.0
        %4349 = vmatpush1.msra.mxu0 %v4246
        %4350 = vmatprep.subr.mxu0 0.0
        %4351 = vmatpush1.msra.mxu0 %v4248
        %4352 = vmatprep.subr.mxu0 0.0
        %4353 = vmatpush1.msra.mxu0 %v4250
        %4354 = vmatprep.subr.mxu0 0.0
        %4355 = vmatpush1.msra.mxu0 %v4252
        %4356 = vmatprep.subr.mxu0 0.0
        %4357 = vmatpush1.msra.mxu0 %v4254
        %4358 = vmatprep.subr.mxu0 0.0
        %4359 = vmatpush1.msra.mxu0 %v4256
        %4360 = vmatprep.subr.mxu0 0.0
        %4361 = vmatpush1.msra.mxu0 %v4258
        %4362 = vmatprep.subr.mxu0 0.0
        %4363 = vmatpush1.msra.mxu0 %v4260
        %4364 = vmatprep.subr.mxu0 0.0
        %4365 = vmatpush1.msra.mxu0 %v4262
        %4366 = vmatprep.subr.mxu0 0.0
        %4367 = vmatpush1.msra.mxu0 %v4264
        %4368 = vmatprep.subr.mxu0 0.0
        %4369 = vmatpush1.msra.mxu0 %v4266
        %4370 = vmatprep.subr.mxu0 0.0
        %4371 = vmatpush1.msra.mxu0 %v4268
        %4372 = vmatprep.subr.mxu0 0.0
        %4373 = vmatpush1.msra.mxu0 %v4270
        %4374 = vmatprep.subr.mxu0 0.0
        %4375 = vmatpush1.msra.mxu0 %v4272
        %4376 = vmatprep.subr.mxu0 0.0
        %4377 = vmatpush1.msra.mxu0 %v4274
        %4378 = vmatprep.subr.mxu0 0.0
        %4379 = vmatpush1.msra.mxu0 0.0
        %4380 = vmatprep.subr.mxu0 0.0
        %4381 = vmatpush1.msra.mxu0 0.0
        %4382 = vmatprep.subr.mxu0 0.0
        %4383 = vmatpush1.msra.mxu0 0.0
        %4384 = vmatprep.subr.mxu0 0.0
        %4385 = vmatpush1.msra.mxu0 0.0
        %4386 = vmatprep.subr.mxu0 0.0
        %4387 = vmatpush1.msra.mxu0 0.0
        %4388 = vmatprep.subr.mxu0 0.0
        %4389 = vmatpush1.msra.mxu0 0.0
        %4390 = vmatprep.subr.mxu0 0.0
        %4391 = vmatpush1.msra.mxu0 0.0
        %4392 = vmatprep.subr.mxu0 0.0
        %4393 = vmatpush1.msra.mxu0 0.0
        %4394 = vmatprep.subr.mxu0 0.0
        %4395 = vmatpush1.msra.mxu0 0.0
        %4396 = vmatprep.subr.mxu0 0.0
        %4397 = vmatpush1.msra.mxu0 0.0
        %4398 = vmatprep.subr.mxu0 0.0
        %4399 = vmatpush1.msra.mxu0 0.0
        %4400 = vmatprep.subr.mxu0 0.0
        %4401 = vmatpush1.msra.mxu0 0.0
        %4402 = vmatprep.subr.mxu0 0.0
        %4403 = vmatpush1.msra.mxu0 0.0
        %4404 = vmatprep.subr.mxu0 0.0
        %4405 = vmatpush1.msra.mxu0 0.0
        %4406 = vmatprep.subr.mxu0 0.0
        %4407 = vmatpush1.msra.mxu0 0.0
        %4408 = vmatprep.subr.mxu0 0.0
        %4409 = vmatpush1.msra.mxu0 0.0
        %4410 = vmatprep.mubr.f32.mxu0 0.0
        %4411 = vmatmul.mubr.f32.gmra.mrb[0].mxu0 %v4345
        %v4412 = vpop.f32.mrb[0].mxu0
        %v4413 = vadd.f32 1e-09, %v4412
        %v4414 = vpop.f32.mrb[0].mxu0
        %4415 = vdwg.mxu0
        %v4416 = vrcp.pop %v4413
        %v4417 = vlaneseq
        %v4418 = vshrl.u32 %v4417, 7
        %v4419 = vsub.s32 0, %v4418
        %v4420 = vrot.slane %v4345, %v4419
        %v4421 = vmul.f32 %v3952, %v4420
        %v4422 = vmul.f32 %v3957, %v4420
        %v4423 = vmul.f32 %v3962, %v4420
        %v4424 = vmul.f32 %v3967, %v4420
        %4425 = vmatprep.subr.mxu0 0.0
        %4426 = vmatpush1.msra.mxu0 %v4244
        %4427 = vmatprep.subr.mxu0 0.0
        %4428 = vmatpush1.msra.mxu0 %v4246
        %4429 = vmatprep.subr.mxu0 0.0
        %4430 = vmatpush1.msra.mxu0 %v4248
        %4431 = vmatprep.subr.mxu0 0.0
        %4432 = vmatpush1.msra.mxu0 %v4250
        %4433 = vmatprep.subr.mxu0 0.0
        %4434 = vmatpush1.msra.mxu0 %v4252
        %4435 = vmatprep.subr.mxu0 0.0
        %4436 = vmatpush1.msra.mxu0 %v4254
        %4437 = vmatprep.subr.mxu0 0.0
        %4438 = vmatpush1.msra.mxu0 %v4256
        %4439 = vmatprep.subr.mxu0 0.0
        %4440 = vmatpush1.msra.mxu0 %v4258
        %4441 = vmatprep.subr.mxu0 0.0
        %4442 = vmatpush1.msra.mxu0 %v4260
        %4443 = vmatprep.subr.mxu0 0.0
        %4444 = vmatpush1.msra.mxu0 %v4262
        %4445 = vmatprep.subr.mxu0 0.0
        %4446 = vmatpush1.msra.mxu0 %v4264
        %4447 = vmatprep.subr.mxu0 0.0
        %4448 = vmatpush1.msra.mxu0 %v4266
        %4449 = vmatprep.subr.mxu0 0.0
        %4450 = vmatpush1.msra.mxu0 %v4268
        %4451 = vmatprep.subr.mxu0 0.0
        %4452 = vmatpush1.msra.mxu0 %v4270
        %4453 = vmatprep.subr.mxu0 0.0
        %4454 = vmatpush1.msra.mxu0 %v4272
        %4455 = vmatprep.subr.mxu0 0.0
        %4456 = vmatpush1.msra.mxu0 %v4274
        %4457 = vmatprep.subr.mxu0 0.0
        %4458 = vmatpush1.msra.mxu0 0.0
        %4459 = vmatprep.subr.mxu0 0.0
        %4460 = vmatpush1.msra.mxu0 0.0
        %4461 = vmatprep.subr.mxu0 0.0
        %4462 = vmatpush1.msra.mxu0 0.0
        %4463 = vmatprep.subr.mxu0 0.0
        %4464 = vmatpush1.msra.mxu0 0.0
        %4465 = vmatprep.subr.mxu0 0.0
        %4466 = vmatpush1.msra.mxu0 0.0
        %4467 = vmatprep.subr.mxu0 0.0
        %4468 = vmatpush1.msra.mxu0 0.0
        %4469 = vmatprep.subr.mxu0 0.0
        %4470 = vmatpush1.msra.mxu0 0.0
        %4471 = vmatprep.subr.mxu0 0.0
        %4472 = vmatpush1.msra.mxu0 0.0
        %4473 = vmatprep.subr.mxu0 0.0
        %4474 = vmatpush1.msra.mxu0 0.0
        %4475 = vmatprep.subr.mxu0 0.0
        %4476 = vmatpush1.msra.mxu0 0.0
        %4477 = vmatprep.subr.mxu0 0.0
        %4478 = vmatpush1.msra.mxu0 0.0
        %4479 = vmatprep.subr.mxu0 0.0
        %4480 = vmatpush1.msra.mxu0 0.0
        %4481 = vmatprep.subr.mxu0 0.0
        %4482 = vmatpush1.msra.mxu0 0.0
        %4483 = vmatprep.subr.mxu0 0.0
        %4484 = vmatpush1.msra.mxu0 0.0
        %4485 = vmatprep.subr.mxu0 0.0
        %4486 = vmatpush1.msra.mxu0 0.0
        %4487 = vmatprep.subr.mxu0 0.0
        %4488 = vmatpush1.msra.mxu0 0.0
        %4489 = vmatprep.mubr.f32.mxu0 0.0
        %4490 = vmatmul.mubr.f32.gmra.mrb[0].mxu0 %v4421
        %v4491 = vpop.f32.mrb[0].mxu0
        %v4492 = vadd.f32 0.0, %v4491
        %v4493 = vpop.f32.mrb[0].mxu0
        %4494 = vmatprep.mubr.f32.mxu0 0.0
        %4495 = vmatmul.mubr.f32.gmra.mrb[0].mxu0 %v4422
        %v4496 = vpop.f32.mrb[0].mxu0
        %v4497 = vadd.f32 0.0, %v4496
        %v4498 = vpop.f32.mrb[0].mxu0
        %4499 = vmatprep.mubr.f32.mxu0 0.0
        %4500 = vmatmul.mubr.f32.gmra.mrb[0].mxu0 %v4423
        %v4501 = vpop.f32.mrb[0].mxu0
        %v4502 = vadd.f32 0.0, %v4501
        %v4503 = vpop.f32.mrb[0].mxu0
        %4504 = vmatprep.mubr.f32.mxu0 0.0
        %4505 = vmatmul.mubr.f32.gmra.mrb[0].mxu0 %v4424
        %v4506 = vpop.f32.mrb[0].mxu0
        %v4507 = vadd.f32 0.0, %v4506
        %v4508 = vpop.f32.mrb[0].mxu0
        %4509 = vdwg.mxu0
        %v4510 = vlaneseq
        %v4511 = vshrl.u32 %v4510, 7
        %v4512 = vsub.s32 0, %v4511
        %v4513 = vrot.slane %v4416, %v4512
        %v4514 = vmul.f32 %v4492, %v4513
        %v4515 = vmul.f32 %v4497, %v4513
        %v4516 = vmul.f32 %v4502, %v4513
        %v4517 = vmul.f32 %v4507, %v4513
        %v4518 = vsub.f32 %v3836, %v4514
        %v4519 = vsub.f32 %v3837, %v4515
        %v4520 = vsub.f32 %v3838, %v4516
        %v4521 = vsub.f32 %v3839, %v4517
        %s4522 = scalar_lea.vmem [#allocation5], 352
        %v4523 = vld [vmem:[%s4522] sm:$0xff]
        %v4524 = vld [vmem:[%s4522 + $0x8] sm:$0xff]
        %v4525 = vld [vmem:[%s4522 + $0x10] sm:$0xff]
        %v4526 = vld [vmem:[%s4522 + $0x18] sm:$0xff]
        %4527 = vset.pattern.permute.xlu0 19
        %4528 = vperm.xlu0 %4527, %v3844
        %v4529 = vpop.permute.xlu0 %4528
        %4531 = vset.pattern.permute.xlu0 19
        %4532 = vperm.xlu0 %4531, %v3845
        %v4533 = vpop.permute.xlu0 %4532
        %4535 = vset.pattern.permute.xlu0 19
        %4536 = vperm.xlu0 %4535, %v3846
        %v4537 = vpop.permute.xlu0 %4536
        %4539 = vset.pattern.permute.xlu0 19
        %4540 = vperm.xlu0 %4539, %v3847
        %v4541 = vpop.permute.xlu0 %4540
        %v4544 = vsel %vm236, %v4523, 0
        %v4547 = vsel %vm236, %v4524, 0
        %v4550 = vsel %vm236, %v4525, 0
        %v4553 = vsel %vm236, %v4526, 0
        %4555 = vmatprep.subr.mxu0 0.0
        %4556 = vmatpush1.msra.mxu0 %v4518
        %4557 = vmatprep.subr.mxu0 0.0
        %4558 = vmatpush1.msra.mxu0 %v4519
        %4559 = vmatprep.subr.mxu0 0.0
        %4560 = vmatpush1.msra.mxu0 %v4520
        %4561 = vmatprep.subr.mxu0 0.0
        %4562 = vmatpush1.msra.mxu0 %v4521
        %4563 = vmatprep.subr.mxu0 0.0
        %4564 = vmatpush1.msra.mxu0 0.0
        %4565 = vmatprep.subr.mxu0 0.0
        %4566 = vmatpush1.msra.mxu0 0.0
        %4567 = vmatprep.subr.mxu0 0.0
        %4568 = vmatpush1.msra.mxu0 0.0
        %4569 = vmatprep.subr.mxu0 0.0
        %4570 = vmatpush1.msra.mxu0 0.0
        %4571 = vmatprep.subr.mxu0 0.0
        %4572 = vmatpush1.msra.mxu0 0.0
        %4573 = vmatprep.subr.mxu0 0.0
        %4574 = vmatpush1.msra.mxu0 0.0
        %4575 = vmatprep.subr.mxu0 0.0
        %4576 = vmatpush1.msra.mxu0 0.0
        %4577 = vmatprep.subr.mxu0 0.0
        %4578 = vmatpush1.msra.mxu0 0.0
        %4579 = vmatprep.subr.mxu0 0.0
        %4580 = vmatpush1.msra.mxu0 0.0
        %4581 = vmatprep.subr.mxu0 0.0
        %4582 = vmatpush1.msra.mxu0 0.0
        %4583 = vmatprep.subr.mxu0 0.0
        %4584 = vmatpush1.msra.mxu0 0.0
        %4585 = vmatprep.subr.mxu0 0.0
        %4586 = vmatpush1.msra.mxu0 0.0
        %4587 = vmatprep.subr.mxu0 0.0
        %4588 = vmatpush1.msra.mxu0 0.0
        %4589 = vmatprep.subr.mxu0 0.0
        %4590 = vmatpush1.msra.mxu0 0.0
        %4591 = vmatprep.subr.mxu0 0.0
        %4592 = vmatpush1.msra.mxu0 0.0
        %4593 = vmatprep.subr.mxu0 0.0
        %4594 = vmatpush1.msra.mxu0 0.0
        %4595 = vmatprep.subr.mxu0 0.0
        %4596 = vmatpush1.msra.mxu0 0.0
        %4597 = vmatprep.subr.mxu0 0.0
        %4598 = vmatpush1.msra.mxu0 0.0
        %4599 = vmatprep.subr.mxu0 0.0
        %4600 = vmatpush1.msra.mxu0 0.0
        %4601 = vmatprep.subr.mxu0 0.0
        %4602 = vmatpush1.msra.mxu0 0.0
        %4603 = vmatprep.subr.mxu0 0.0
        %4604 = vmatpush1.msra.mxu0 0.0
        %4605 = vmatprep.subr.mxu0 0.0
        %4606 = vmatpush1.msra.mxu0 0.0
        %4607 = vmatprep.subr.mxu0 0.0
        %4608 = vmatpush1.msra.mxu0 0.0
        %4609 = vmatprep.subr.mxu0 0.0
        %4610 = vmatpush1.msra.mxu0 0.0
        %4611 = vmatprep.subr.mxu0 0.0
        %4612 = vmatpush1.msra.mxu0 0.0
        %4613 = vmatprep.subr.mxu0 0.0
        %4614 = vmatpush1.msra.mxu0 0.0
        %4615 = vmatprep.subr.mxu0 0.0
        %4616 = vmatpush1.msra.mxu0 0.0
        %4617 = vmatprep.subr.mxu0 0.0
        %4618 = vmatpush1.msra.mxu0 0.0
        %4619 = vmatprep.mubr.f32.mxu0 0.0
        %4620 = vmatmul.mubr.f32.gmra.mrb[0].mxu0 %v4544
        %v4621 = vpop.f32.mrb[0].mxu0
        %v4622 = vadd.f32 %v4529, %v4621
        %v4623 = vpop.f32.mrb[0].mxu0
        %4624 = vmatprep.mubr.f32.mxu0 0.0
        %4625 = vmatmul.mubr.f32.gmra.mrb[0].mxu0 %v4547
        %v4626 = vpop.f32.mrb[0].mxu0
        %v4627 = vadd.f32 %v4533, %v4626
        %v4628 = vpop.f32.mrb[0].mxu0
        %4629 = vmatprep.mubr.f32.mxu0 0.0
        %4630 = vmatmul.mubr.f32.gmra.mrb[0].mxu0 %v4550
        %v4631 = vpop.f32.mrb[0].mxu0
        %v4632 = vadd.f32 %v4537, %v4631
        %v4633 = vpop.f32.mrb[0].mxu0
        %4634 = vmatprep.mubr.f32.mxu0 0.0
        %4635 = vmatmul.mubr.f32.gmra.mrb[0].mxu0 %v4553
        %v4636 = vpop.f32.mrb[0].mxu0
        %v4637 = vadd.f32 %v4541, %v4636
        %v4638 = vpop.f32.mrb[0].mxu0
        %4639 = vdwg.mxu0
        %v4640 = vmax.f32 %v4622, 0.0
        %v4641 = vmax.f32 %v4627, 0.0
        %v4642 = vmax.f32 %v4632, 0.0
        %v4643 = vmax.f32 %v4637, 0.0
        %4644 = vset.pattern.permute.xlu0 20
        %4645 = vperm.xlu0 %4644, %v3844
        %v4646 = vpop.permute.xlu0 %4645
        %4648 = vset.pattern.permute.xlu0 20
        %4649 = vperm.xlu0 %4648, %v3845
        %v4650 = vpop.permute.xlu0 %4649
        %4652 = vset.pattern.permute.xlu0 20
        %4653 = vperm.xlu0 %4652, %v3846
        %v4654 = vpop.permute.xlu0 %4653
        %4656 = vset.pattern.permute.xlu0 20
        %4657 = vperm.xlu0 %4656, %v3847
        %v4658 = vpop.permute.xlu0 %4657
        %v4660 = vmul.f32 %v4646, %v4640
        %v4661 = vmul.f32 %v4650, %v4641
        %v4662 = vmul.f32 %v4654, %v4642
        %v4663 = vmul.f32 %v4658, %v4643
        %v4664 = vadd.f32 %v3836, %v4660
        %v4665 = vadd.f32 %v3837, %v4661
        %v4666 = vadd.f32 %v3838, %v4662
        %v4667 = vadd.f32 %v3839, %v4663
        %4668 = vset.pattern.permute.xlu0 21
        %4669 = vperm.xlu0 %4668, %v3844
        %v4670 = vpop.permute.xlu0 %4669
        %4672 = vset.pattern.permute.xlu0 21
        %4673 = vperm.xlu0 %4672, %v3845
        %v4674 = vpop.permute.xlu0 %4673
        %4676 = vset.pattern.permute.xlu0 21
        %4677 = vperm.xlu0 %4676, %v3846
        %v4678 = vpop.permute.xlu0 %4677
        %4680 = vset.pattern.permute.xlu0 21
        %4681 = vperm.xlu0 %4680, %v3847
        %v4682 = vpop.permute.xlu0 %4681
        %v4684 = vadd.f32 %v4664, %v4670
        %v4685 = vadd.f32 %v4665, %v4674
        %v4686 = vadd.f32 %v4666, %v4678
        %v4687 = vadd.f32 %v4667, %v4682
        %4688 = vst [vmem:[%s203 + $0x80] sm:$0xff] %v4684
        %4689 = vst [vmem:[%s203 + $0x88] sm:$0xff] %v4685
        %4690 = vst [vmem:[%s203 + $0x90] sm:$0xff] %v4686
        %4691 = vst [vmem:[%s203 + $0x98] sm:$0xff] %v4687
        %s4692 = sand.u32 %s97, 1
        %s4693 = scalar_lea.sflag [#allocation4], %s4692
        %s4694 = sand.u32 %s97, 1
        %s4695 = smul.addr %s4694, 160
        %s4696 = scalar_lea.vmem [#allocation7], %s4695
        // Predicated region
        $region41: #{tpu_custom_call.1} parent=31 // pred_check
          %p4697 = pneg %p107
        $region42: #{tpu_custom_call.1} parent=31 // pred_check_branch
          %4699 = sbr.rel (%p4697) target = $region44
        $region43: #{tpu_custom_call.1} parent=31 // pred_region
          %s4701 = ssub.s32 2560, 2560
          %4702 = vsyncadd %s4693, %s4701
          %s4703 = smul.addr %s21, 20
          %s4704 = smul.addr %s4703, 128
          %s4705 = scalar_lea.hbm %s3, %s4704
          %s4706 = sshll.u32 %s4696, 4
          %s4707 = int_to_ptr.vmem [resolvable:$true] %s4706
          %4712 = dma.vmem_to_hbm [thread:$0]  %s4707, 2560, %s4705, %s4693, 128, 128, 8
        $region44: #{tpu_custom_call.1} parent=31 // pred_fallthru
          _
      $region32: #{tpu_custom_call.1} parent=5 // pred_fallthru
        _
      %p4713 = scmp.le.s32.totalorder 2, %s16
      // Predicated region
      $region45: #{tpu_custom_call.1} parent=5 // pred_check
        %p4714 = pneg %p4713
      $region46: #{tpu_custom_call.1} parent=5 // pred_check_branch
        %4716 = sbr.rel (%p4714) target = $region48
      $region47: #{tpu_custom_call.1} parent=5 // pred_region
        %s4717 = ssub.s32 %s16, 2
        // Predicated region
        $region49: #{tpu_custom_call.1} parent=47 // pred_check
          %p4718 = pneg %p113
        $region50: #{tpu_custom_call.1} parent=47 // pred_check_branch
          %4720 = sbr.rel (%p4718) target = $region52
        $region51: #{tpu_custom_call.1} parent=47 // pred_region
          %s4721 = sand.u32 %s98, 1
          %s4722 = scalar_lea.sflag [#allocation4], %s4721
          %s4723 = sand.u32 %s98, 1
          %s4724 = smul.addr %s4723, 160
          %s4725 = scalar_lea.vmem [#allocation7], %s4724
          %4726 = dma.done %s4722, 2560
        $region52: #{tpu_custom_call.1} parent=47 // pred_fallthru
          _
      $region48: #{tpu_custom_call.1} parent=5 // pred_fallthru
        _
    $region6: #{tpu_custom_call.1} parent=1 // loop_footer
      %s20 = sadd.s32 1, %s16
    $region7: #{tpu_custom_call.1} parent=1 // loop_footer_branch
      %15 = sbr.rel target = $region3
    $region8: #{tpu_custom_call.1} parent=1 // loop_exit
      _
    %4727 = vsyncpa [#allocation3], 1
    %s4728 = scalar_lea.sflag [#allocation3], 1
    %4729 = vsyncpa %s4728, 1
    %4730 = vsyncpa [#allocation6], 1
    %4731 = vsyncpa [#allocation4], 1
    %s4732 = scalar_lea.sflag [#allocation4], 1
    %4733 = vsyncpa %s4732, 1

</llo_original>
